<compile_context>
chip_gen: v5e
topology: v5e:2x2
jax: 0.10.0
libtpu: 0.0.40
codegen_flags: <defaults>
</compile_context>

<pallas_src>
import jax
import jax.numpy as jnp
from jax.experimental import pallas as pl
from jax.experimental.pallas import tpu as pltpu


# ---------------------------------------------------------------------------
# Helpers
# ---------------------------------------------------------------------------
def _pick_chunk(total, cap, multiple=1):
    """Largest divisor of `total` that is <= cap and a multiple of `multiple`
    (full extent always allowed)."""
    if total <= cap:
        return total
    for d in range(cap, 0, -1):
        if total % d == 0 and d % multiple == 0:
            return d
    return total


# ---------------------------------------------------------------------------
# Kernel 1: hoisted input-side gate matmul (fully parallel over row chunks)
#   gx_fwd = X @ Wih_f^T + bih_f ,  gx_bwd = X @ Wih_b^T + bih_b
#   X is the flattened (T*B, F) layer input; for layers > 0 the concat of the
#   previous layer's fwd/bwd streams is replaced by `n_in` accumulated matmuls.
# ---------------------------------------------------------------------------
def _make_gate_kernel(n_in):
    def kernel(*args):
        xs = args[:n_in]                       # (rc, Fi) row chunks
        wf = args[n_in:2 * n_in]               # (Fi, 3H)
        wb = args[2 * n_in:3 * n_in]           # (Fi, 3H)
        bf = args[3 * n_in]                    # (1, 3H)
        bb = args[3 * n_in + 1]                # (1, 3H)
        gxf_ref = args[3 * n_in + 2]
        gxb_ref = args[3 * n_in + 3]

        gf = jnp.dot(xs[0][...], wf[0][...], preferred_element_type=jnp.float32)
        gb = jnp.dot(xs[0][...], wb[0][...], preferred_element_type=jnp.float32)
        for i in range(1, n_in):
            gf = gf + jnp.dot(xs[i][...], wf[i][...],
                              preferred_element_type=jnp.float32)
            gb = gb + jnp.dot(xs[i][...], wb[i][...],
                              preferred_element_type=jnp.float32)
        gxf_ref[...] = (gf + bf[...]).astype(gxf_ref.dtype)
        gxb_ref[...] = (gb + bb[...]).astype(gxb_ref.dtype)

    return kernel


def _gate_precompute(xs2d, wf_parts, wb_parts, bih_f, bih_b, H,
                     gate_dtype=jnp.float32):
    R = xs2d[0].shape[0]
    n_in = len(xs2d)
    Fs = [int(x.shape[-1]) for x in xs2d]
    rc = _pick_chunk(R, 1024, 8)               # sublane dim: multiple of 8 or full
    grid = (R // rc,)

    row_map = lambda r: (r, 0)
    const = lambda r: (0, 0)
    in_specs = ([pl.BlockSpec((rc, F), row_map) for F in Fs]
                + [pl.BlockSpec((F, 3 * H), const) for F in Fs]
                + [pl.BlockSpec((F, 3 * H), const) for F in Fs]
                + [pl.BlockSpec((1, 3 * H), const)] * 2)
    out_specs = [pl.BlockSpec((rc, 3 * H), row_map)] * 2

    gxf, gxb = pl.pallas_call(
        _make_gate_kernel(n_in),
        grid=grid,
        in_specs=in_specs,
        out_specs=out_specs,
        out_shape=[jax.ShapeDtypeStruct((R, 3 * H), gate_dtype)] * 2,
        compiler_params=pltpu.CompilerParams(
            dimension_semantics=("parallel",)),
    )(*xs2d, *wf_parts, *wb_parts, bih_f, bih_b)
    return gxf, gxb


# ---------------------------------------------------------------------------
# Kernel 2: fused bidirectional recurrence over time chunks
#   grid=(T//Tc,), hidden states live in VMEM scratch across grid steps.
#   Forward direction consumes chunk c in forward order; backward direction
#   consumes chunk (n_chunks-1-c), iterating it in reverse, in the SAME step.
#   For the last layer the FFC head is fused into the final grid step.
# ---------------------------------------------------------------------------
def _make_recurrent_kernel(Tc, H, has_h0, fuse_head):
    def cell(gx, h, whh, bhh):
        gh = jnp.dot(h, whh, preferred_element_type=jnp.float32) + bhh
        r = jax.nn.sigmoid(gx[:, :H] + gh[:, :H])
        z = jax.nn.sigmoid(gx[:, H:2 * H] + gh[:, H:2 * H])
        n = jnp.tanh(gx[:, 2 * H:] + r * gh[:, 2 * H:])
        return (1.0 - z) * n + z * h

    def run(gxf_ref, gxb_ref, whhf_ref, whhb_ref, bhhf_ref, bhhb_ref,
            h0f_ref, h0b_ref, hf_s, hb_s, outf_ref=None, outb_ref=None):
        c = pl.program_id(0)

        @pl.when(c == 0)
        def _():
            if has_h0:
                hf_s[...] = h0f_ref[...].astype(jnp.float32)
                hb_s[...] = h0b_ref[...].astype(jnp.float32)
            else:
                hf_s[...] = jnp.zeros_like(hf_s)
                hb_s[...] = jnp.zeros_like(hb_s)

        h_f = hf_s[...]
        h_b = hb_s[...]
        whh_f = whhf_ref[...]
        whh_b = whhb_ref[...]
        bhh_f = bhhf_ref[...]
        bhh_b = bhhb_ref[...]

        # Statically unrolled inner loop (Tc is small); only the hidden-side
        # (B,H)@(H,3H) matmul remains in the recurrence.
        for i in range(Tc):
            h_f = cell(gxf_ref[i].astype(jnp.float32), h_f, whh_f, bhh_f)
            h_b = cell(gxb_ref[Tc - 1 - i].astype(jnp.float32), h_b, whh_b, bhh_b)
            if outf_ref is not None:
                outf_ref[i] = h_f.astype(outf_ref.dtype)
                outb_ref[Tc - 1 - i] = h_b.astype(outb_ref.dtype)

        hf_s[...] = h_f
        hb_s[...] = h_b
        return h_f, h_b

    def head(h_f, h_b, wffc_ref, bffc_ref, out_ref):
        @pl.when(pl.program_id(0) == pl.num_programs(0) - 1)
        def _():
            h = h_f + h_b                       # out_f[T-1] + out_b[0]
            out_ref[...] = (jnp.dot(h, wffc_ref[...],
                                    preferred_element_type=jnp.float32)
                            + bffc_ref[...]).astype(out_ref.dtype)

    if fuse_head:
        if has_h0:
            def kernel(gxf, gxb, whhf, whhb, bhhf, bhhb, h0f, h0b, wffc, bffc,
                       out_ref, hf_s, hb_s):
                h_f, h_b = run(gxf, gxb, whhf, whhb, bhhf, bhhb,
                               h0f, h0b, hf_s, hb_s)
                head(h_f, h_b, wffc, bffc, out_ref)
        else:
            def kernel(gxf, gxb, whhf, whhb, bhhf, bhhb, wffc, bffc,
                       out_ref, hf_s, hb_s):
                h_f, h_b = run(gxf, gxb, whhf, whhb, bhhf, bhhb,
                               None, None, hf_s, hb_s)
                head(h_f, h_b, wffc, bffc, out_ref)
    else:
        if has_h0:
            def kernel(gxf, gxb, whhf, whhb, bhhf, bhhb, h0f, h0b,
                       outf_ref, outb_ref, hf_s, hb_s):
                run(gxf, gxb, whhf, whhb, bhhf, bhhb, h0f, h0b,
                    hf_s, hb_s, outf_ref, outb_ref)
        else:
            def kernel(gxf, gxb, whhf, whhb, bhhf, bhhb,
                       outf_ref, outb_ref, hf_s, hb_s):
                run(gxf, gxb, whhf, whhb, bhhf, bhhb, None, None,
                    hf_s, hb_s, outf_ref, outb_ref)
    return kernel


def _bigru_layer(xs, p, h0_f, h0_b, *, ffc=None, tc_max=32,
                 out_dtype=jnp.float32, gate_dtype=jnp.float32):
    """One bidirectional GRU layer.
    xs: list of (T, B, Fi) input streams (1 stream for layer 0; fwd/bwd of the
        previous layer for deeper layers — the PyTorch concat is never built).
    ffc: None for hidden layers; (ffc_w_t (H,W), ffc_b (1,W)) for the last
         layer (FFC head fused into the final grid step, no (T,B,H) output)."""
    T, B = xs[0].shape[0], xs[0].shape[1]
    H = p["whh_f_t"].shape[0]
    has_h0 = h0_f is not None
    fuse_head = ffc is not None

    # --- 1) hoisted input-side gate matmul (parallel, M = T*B) --------------
    xs2d = [x.reshape(T * B, x.shape[-1]) for x in xs]
    gxf, gxb = _gate_precompute(xs2d, p["wih_f_t_parts"], p["wih_b_t_parts"],
                                p["bih_f"], p["bih_b"], H, gate_dtype)
    gxf = gxf.reshape(T, B, 3 * H)
    gxb = gxb.reshape(T, B, 3 * H)

    # --- 2) sequential recurrence over time chunks ---------------------------
    Tc = _pick_chunk(T, tc_max, 1)
    n_chunks = T // Tc
    fwd_map = lambda c: (c, 0, 0)
    bwd_map = lambda c: (n_chunks - 1 - c, 0, 0)
    const = lambda c: (0, 0)

    in_specs = [pl.BlockSpec((Tc, B, 3 * H), fwd_map),
                pl.BlockSpec((Tc, B, 3 * H), bwd_map),
                pl.BlockSpec((H, 3 * H), const),
                pl.BlockSpec((H, 3 * H), const),
                pl.BlockSpec((1, 3 * H), const),
                pl.BlockSpec((1, 3 * H), const)]
    inputs = [gxf, gxb, p["whh_f_t"], p["whh_b_t"], p["bhh_f"], p["bhh_b"]]
    if has_h0:
        in_specs += [pl.BlockSpec((B, H), const)] * 2
        inputs += [h0_f, h0_b]
    if fuse_head:
        ffc_w_t, ffc_b = ffc
        W = ffc_w_t.shape[1]
        in_specs += [pl.BlockSpec((H, W), const), pl.BlockSpec((1, W), const)]
        inputs += [ffc_w_t, ffc_b]
        out_specs = pl.BlockSpec((B, W), const)
        out_shape = jax.ShapeDtypeStruct((B, W), jnp.float32)
    else:
        out_specs = [pl.BlockSpec((Tc, B, H), fwd_map),
                     pl.BlockSpec((Tc, B, H), bwd_map)]
        out_shape = [jax.ShapeDtypeStruct((T, B, H), out_dtype)] * 2

    return pl.pallas_call(
        _make_recurrent_kernel(Tc, H, has_h0, fuse_head),
        grid=(n_chunks,),
        in_specs=in_specs,
        out_specs=out_specs,
        out_shape=out_shape,
        scratch_shapes=[pltpu.VMEM((B, H), jnp.float32),
                        pltpu.VMEM((B, H), jnp.float32)],
        compiler_params=pltpu.CompilerParams(
            dimension_semantics=("arbitrary",)),   # sequential recurrence
    )(*inputs)


# ---------------------------------------------------------------------------
# Parameter preparation (once, outside the per-call path)
# ---------------------------------------------------------------------------
def prepare_number_enc_params(gru_params, ffc_w, ffc_b):
    layers = []
    for l, p in enumerate(gru_params):
        H = p["whh_f"].shape[1]
        wih_f_t = jnp.transpose(p["wih_f"])        # (F, 3H)
        wih_b_t = jnp.transpose(p["wih_b"])
        if l == 0:
            f_parts, b_parts = [wih_f_t], [wih_b_t]
        else:  # concat(fwd_prev, bwd_prev) input -> row-split transposed weight
            f_parts = [wih_f_t[:H], wih_f_t[H:]]
            b_parts = [wih_b_t[:H], wih_b_t[H:]]
        layers.append(dict(
            wih_f_t_parts=f_parts, wih_b_t_parts=b_parts,
            whh_f_t=jnp.transpose(p["whh_f"]),     # (H, 3H)
            whh_b_t=jnp.transpose(p["whh_b"]),
            bih_f=p["bih_f"].reshape(1, -1), bih_b=p["bih_b"].reshape(1, -1),
            bhh_f=p["bhh_f"].reshape(1, -1), bhh_b=p["bhh_b"].reshape(1, -1)))
    return dict(layers=layers, ffc_w_t=jnp.transpose(ffc_w),
                ffc_b=ffc_b.reshape(1, -1))


def number_enc_forward(char_emb, params, hidden=None):
    """char_emb: (T, B, input_size) float32 (PyTorch seq-first layout).
    params: output of prepare_number_enc_params.
    hidden: optional (2*num_layers, B, H).  Returns (B, word_hidden) float32."""
    layers = params["layers"]
    num_layers = len(layers)

    xs = [char_emb]
    for l, p in enumerate(layers):
        h0_f = hidden[2 * l] if hidden is not None else None
        h0_b = hidden[2 * l + 1] if hidden is not None else None
        if l == num_layers - 1:
            # Last layer: head fused, no (T,B,H) writeback.
            # TODO(synk): nn.Dropout on the head output is identity at inference.
            return _bigru_layer(xs, p, h0_f, h0_b,
                                ffc=(params["ffc_w_t"], params["ffc_b"]))
        out_f, out_b = _bigru_layer(xs, p, h0_f, h0_b)
        # TODO(synk): training-mode inter-layer GRU dropout is identity here.
        xs = [out_f, out_b]


# ---------------------------------------------------------------------------
# Pure-JAX reference (independent of the kernel code)
# ---------------------------------------------------------------------------
def _reference(char_emb, gru_params, ffc_w, ffc_b, hidden=None):
    T, B, _ = char_emb.shape
    H = gru_params[0]["whh_f"].shape[1]
    num_layers = len(gru_params)
    if hidden is None:
        hidden = jnp.zeros((2 * num_layers, B, H), jnp.float32)

    def cell(x_t, h, wih, whh, bih, bhh):
        gx = x_t @ wih.T + bih
        gh = h @ whh.T + bhh
        r = jax.nn.sigmoid(gx[:, :H] + gh[:, :H])
        z = jax.nn.sigmoid(gx[:, H:2 * H] + gh[:, H:2 * H])
        n = jnp.tanh(gx[:, 2 * H:] + r * gh[:, 2 * H:])
        return (1.0 - z) * n + z * h

    layer_in = char_emb
    out_f = out_b = None
    for l, p in enumerate(gru_params):
        hf, hb = hidden[2 * l], hidden[2 * l + 1]
        fs, bs = [], [None] * T
        for t in range(T):
            hf = cell(layer_in[t], hf, p["wih_f"], p["whh_f"],
                      p["bih_f"], p["bhh_f"])
            fs.append(hf)
        for t in range(T - 1, -1, -1):
            hb = cell(layer_in[t], hb, p["wih_b"], p["whh_b"],
                      p["bih_b"], p["bhh_b"])
            bs[t] = hb
        out_f, out_b = jnp.stack(fs), jnp.stack(bs)
        layer_in = jnp.concatenate([out_f, out_b], axis=-1)

    nums_gru_final = out_f[-1] + out_b[0]
    return nums_gru_final @ ffc_w.T + ffc_b


def _init_gru_params(key, input_size, hidden_size, num_layers):
    params = []
    bound = 1.0 / jnp.sqrt(jnp.float32(hidden_size))
    for l in range(num_layers):
        in_size = input_size if l == 0 else 2 * hidden_size
        key, *ks = jax.random.split(key, 9)
        params.append(dict(
            wih_f=jax.random.uniform(ks[0], (3 * hidden_size, in_size),
                                     jnp.float32, -bound, bound),
            whh_f=jax.random.uniform(ks[1], (3 * hidden_size, hidden_size),
                                     jnp.float32, -bound, bound),
            bih_f=jax.random.uniform(ks[2], (3 * hidden_size,),
                                     jnp.float32, -bound, bound),
            bhh_f=jax.random.uniform(ks[3], (3 * hidden_size,),
                                     jnp.float32, -bound, bound),
            wih_b=jax.random.uniform(ks[4], (3 * hidden_size, in_size),
                                     jnp.float32, -bound, bound),
            whh_b=jax.random.uniform(ks[5], (3 * hidden_size, hidden_size),
                                     jnp.float32, -bound, bound),
            bih_b=jax.random.uniform(ks[6], (3 * hidden_size,),
                                     jnp.float32, -bound, bound),
            bhh_b=jax.random.uniform(ks[7], (3 * hidden_size,),
                                     jnp.float32, -bound, bound),
        ))
    return params, key


if __name__ == "__main__":
    # Small deterministic example: seq=8, batch=2, input=32, hidden=32,
    # word_hidden=32, gru_layers=2 (exercises the multi-layer / split-concat
    # path and the fused head on the final layer).
    T, B, I, H, W, NL = 8, 2, 32, 32, 32, 2
    key = jax.random.PRNGKey(0)
    key, k_x, k_w, k_b = jax.random.split(key, 4)

    char_emb = jax.random.normal(k_x, (T, B, I), dtype=jnp.float32)
    gru_params, key = _init_gru_params(key, I, H, NL)
    bound = 1.0 / jnp.sqrt(jnp.float32(H))
    ffc_w = jax.random.uniform(k_w, (W, H), jnp.float32, -bound, bound)
    ffc_b = jax.random.uniform(k_b, (W,), jnp.float32, -bound, bound)

    params = prepare_number_enc_params(gru_params, ffc_w, ffc_b)
    out = jax.jit(number_enc_forward)(char_emb, params)
    out = jax.block_until_ready(out)

    ref = _reference(char_emb, gru_params, ffc_w, ffc_b)
    assert out.shape == (B, W)
    assert jnp.allclose(out, ref, atol=5e-3, rtol=5e-3), "mismatch vs reference"

    print("KERNEL_OK")
</pallas_src>

<mosaic_0001>
module attributes {stable_mosaic.version = 11 : i64} {
  func.func @kernel(%arg0: i32, %arg1: memref<16x32xf32, #tpu.memory_space<vmem>>, %arg2: memref<32x96xf32, #tpu.memory_space<vmem>>, %arg3: memref<32x96xf32, #tpu.memory_space<vmem>>, %arg4: memref<1x96xf32, #tpu.memory_space<vmem>>, %arg5: memref<1x96xf32, #tpu.memory_space<vmem>>, %arg6: memref<16x96xf32, #tpu.memory_space<vmem>>, %arg7: memref<16x96xf32, #tpu.memory_space<vmem>>) attributes {dimension_semantics = [#tpu.dimension_semantics<parallel>], iteration_bounds = array<i64: 1>, scalar_prefetch = 0 : i64, scratch_operands = 0 : i64, tpu.core_type = #tpu.core_type<tc>, window_params = [{transform_indices = @transform_0, window_bounds = array<i64: 16, 32>}, {pipeline_mode = #tpu.pipeline_mode<synchronous>, transform_indices = @transform_1, window_bounds = array<i64: 32, 96>}, {pipeline_mode = #tpu.pipeline_mode<synchronous>, transform_indices = @transform_2, window_bounds = array<i64: 32, 96>}, {pipeline_mode = #tpu.pipeline_mode<synchronous>, transform_indices = @transform_3, window_bounds = array<i64: 1, 96>}, {pipeline_mode = #tpu.pipeline_mode<synchronous>, transform_indices = @transform_4, window_bounds = array<i64: 1, 96>}, {transform_indices = @transform_5, window_bounds = array<i64: 16, 96>}, {transform_indices = @transform_6, window_bounds = array<i64: 16, 96>}]} {
    %c0 = arith.constant 0 : index
    %c0_0 = arith.constant 0 : index
    %0 = vector.load %arg1[%c0, %c0_0] : memref<16x32xf32, #tpu.memory_space<vmem>>, vector<16x32xf32>
    %c0_1 = arith.constant 0 : index
    %c0_2 = arith.constant 0 : index
    %1 = vector.load %arg2[%c0_1, %c0_2] : memref<32x96xf32, #tpu.memory_space<vmem>>, vector<32x96xf32>
    %cst = arith.constant dense<0.000000e+00> : vector<16x96xf32>
    %2 = tpu.matmul %0, %1, %cst {dimension_numbers = #tpu.dot_dimension_numbers<[1], [0], [0], [1], [0, 0, 1, 1], [], []>} : vector<16x32xf32>, vector<32x96xf32>, vector<16x96xf32> -> vector<16x96xf32>
    %c0_3 = arith.constant 0 : index
    %c0_4 = arith.constant 0 : index
    %3 = vector.load %arg1[%c0_3, %c0_4] : memref<16x32xf32, #tpu.memory_space<vmem>>, vector<16x32xf32>
    %c0_5 = arith.constant 0 : index
    %c0_6 = arith.constant 0 : index
    %4 = vector.load %arg3[%c0_5, %c0_6] : memref<32x96xf32, #tpu.memory_space<vmem>>, vector<32x96xf32>
    %cst_7 = arith.constant dense<0.000000e+00> : vector<16x96xf32>
    %5 = tpu.matmul %3, %4, %cst_7 {dimension_numbers = #tpu.dot_dimension_numbers<[1], [0], [0], [1], [0, 0, 1, 1], [], []>} : vector<16x32xf32>, vector<32x96xf32>, vector<16x96xf32> -> vector<16x96xf32>
    %c0_8 = arith.constant 0 : index
    %c0_9 = arith.constant 0 : index
    %6 = vector.load %arg4[%c0_8, %c0_9] : memref<1x96xf32, #tpu.memory_space<vmem>>, vector<1x96xf32>
    %7 = vector.broadcast %6 : vector<1x96xf32> to vector<16x96xf32>
    %8 = arith.addf %2, %7 : vector<16x96xf32>
    %c0_10 = arith.constant 0 : index
    %c0_11 = arith.constant 0 : index
    %9 = vector.load %arg6[%c0_10, %c0_11] : memref<16x96xf32, #tpu.memory_space<vmem>>, vector<16x96xf32>
    tpu.vector_store %arg6[%c0_10, %c0_11], %8 {strides = array<i32>} : memref<16x96xf32, #tpu.memory_space<vmem>>, vector<16x96xf32>,
    %c0_12 = arith.constant 0 : index
    %c0_13 = arith.constant 0 : index
    %10 = vector.load %arg5[%c0_12, %c0_13] : memref<1x96xf32, #tpu.memory_space<vmem>>, vector<1x96xf32>
    %11 = vector.broadcast %10 : vector<1x96xf32> to vector<16x96xf32>
    %12 = arith.addf %5, %11 : vector<16x96xf32>
    %c0_14 = arith.constant 0 : index
    %c0_15 = arith.constant 0 : index
    %13 = vector.load %arg7[%c0_14, %c0_15] : memref<16x96xf32, #tpu.memory_space<vmem>>, vector<16x96xf32>
    tpu.vector_store %arg7[%c0_14, %c0_15], %12 {strides = array<i32>} : memref<16x96xf32, #tpu.memory_space<vmem>>, vector<16x96xf32>,
    return
  }
  func.func @transform_0(%arg0: i32) -> (i32, i32) {
    %c0_i32 = arith.constant 0 : i32
    %c0_i32_0 = arith.constant 0 : i32
    return %arg0, %c0_i32 : i32, i32
  }
  func.func @transform_1(%arg0: i32) -> (i32, i32) {
    %c0_i32 = arith.constant 0 : i32
    %c0_i32_0 = arith.constant 0 : i32
    %c0_i32_1 = arith.constant 0 : i32
    return %c0_i32, %c0_i32_0 : i32, i32
  }
  func.func @transform_2(%arg0: i32) -> (i32, i32) {
    %c0_i32 = arith.constant 0 : i32
    %c0_i32_0 = arith.constant 0 : i32
    %c0_i32_1 = arith.constant 0 : i32
    return %c0_i32, %c0_i32_0 : i32, i32
  }
  func.func @transform_3(%arg0: i32) -> (i32, i32) {
    %c0_i32 = arith.constant 0 : i32
    %c0_i32_0 = arith.constant 0 : i32
    %c0_i32_1 = arith.constant 0 : i32
    return %c0_i32, %c0_i32_0 : i32, i32
  }
  func.func @transform_4(%arg0: i32) -> (i32, i32) {
    %c0_i32 = arith.constant 0 : i32
    %c0_i32_0 = arith.constant 0 : i32
    %c0_i32_1 = arith.constant 0 : i32
    return %c0_i32, %c0_i32_0 : i32, i32
  }
  func.func @transform_5(%arg0: i32) -> (i32, i32) {
    %c0_i32 = arith.constant 0 : i32
    %c0_i32_0 = arith.constant 0 : i32
    return %arg0, %c0_i32 : i32, i32
  }
  func.func @transform_6(%arg0: i32) -> (i32, i32) {
    %c0_i32 = arith.constant 0 : i32
    %c0_i32_0 = arith.constant 0 : i32
    return %arg0, %c0_i32 : i32, i32
  }
}

module attributes {stable_mosaic.version = 11 : i64} {
  func.func @kernel(%arg0: i32, %arg1: memref<16x32xf32, #tpu.memory_space<vmem>>, %arg2: memref<16x32xf32, #tpu.memory_space<vmem>>, %arg3: memref<32x96xf32, #tpu.memory_space<vmem>>, %arg4: memref<32x96xf32, #tpu.memory_space<vmem>>, %arg5: memref<32x96xf32, #tpu.memory_space<vmem>>, %arg6: memref<32x96xf32, #tpu.memory_space<vmem>>, %arg7: memref<1x96xf32, #tpu.memory_space<vmem>>, %arg8: memref<1x96xf32, #tpu.memory_space<vmem>>, %arg9: memref<16x96xf32, #tpu.memory_space<vmem>>, %arg10: memref<16x96xf32, #tpu.memory_space<vmem>>) attributes {dimension_semantics = [#tpu.dimension_semantics<parallel>], iteration_bounds = array<i64: 1>, scalar_prefetch = 0 : i64, scratch_operands = 0 : i64, tpu.core_type = #tpu.core_type<tc>, window_params = [{transform_indices = @transform_0, window_bounds = array<i64: 16, 32>}, {transform_indices = @transform_1, window_bounds = array<i64: 16, 32>}, {pipeline_mode = #tpu.pipeline_mode<synchronous>, transform_indices = @transform_2, window_bounds = array<i64: 32, 96>}, {pipeline_mode = #tpu.pipeline_mode<synchronous>, transform_indices = @transform_3, window_bounds = array<i64: 32, 96>}, {pipeline_mode = #tpu.pipeline_mode<synchronous>, transform_indices = @transform_4, window_bounds = array<i64: 32, 96>}, {pipeline_mode = #tpu.pipeline_mode<synchronous>, transform_indices = @transform_5, window_bounds = array<i64: 32, 96>}, {pipeline_mode = #tpu.pipeline_mode<synchronous>, transform_indices = @transform_6, window_bounds = array<i64: 1, 96>}, {pipeline_mode = #tpu.pipeline_mode<synchronous>, transform_indices = @transform_7, window_bounds = array<i64: 1, 96>}, {transform_indices = @transform_8, window_bounds = array<i64: 16, 96>}, {transform_indices = @transform_9, window_bounds = array<i64: 16, 96>}]} {
    %c0 = arith.constant 0 : index
    %c0_0 = arith.constant 0 : index
    %0 = vector.load %arg1[%c0, %c0_0] : memref<16x32xf32, #tpu.memory_space<vmem>>, vector<16x32xf32>
    %c0_1 = arith.constant 0 : index
    %c0_2 = arith.constant 0 : index
    %1 = vector.load %arg3[%c0_1, %c0_2] : memref<32x96xf32, #tpu.memory_space<vmem>>, vector<32x96xf32>
    %cst = arith.constant dense<0.000000e+00> : vector<16x96xf32>
    %2 = tpu.matmul %0, %1, %cst {dimension_numbers = #tpu.dot_dimension_numbers<[1], [0], [0], [1], [0, 0, 1, 1], [], []>} : vector<16x32xf32>, vector<32x96xf32>, vector<16x96xf32> -> vector<16x96xf32>
    %c0_3 = arith.constant 0 : index
    %c0_4 = arith.constant 0 : index
    %3 = vector.load %arg1[%c0_3, %c0_4] : memref<16x32xf32, #tpu.memory_space<vmem>>, vector<16x32xf32>
    %c0_5 = arith.constant 0 : index
    %c0_6 = arith.constant 0 : index
    %4 = vector.load %arg5[%c0_5, %c0_6] : memref<32x96xf32, #tpu.memory_space<vmem>>, vector<32x96xf32>
    %cst_7 = arith.constant dense<0.000000e+00> : vector<16x96xf32>
    %5 = tpu.matmul %3, %4, %cst_7 {dimension_numbers = #tpu.dot_dimension_numbers<[1], [0], [0], [1], [0, 0, 1, 1], [], []>} : vector<16x32xf32>, vector<32x96xf32>, vector<16x96xf32> -> vector<16x96xf32>
    %c0_8 = arith.constant 0 : index
    %c0_9 = arith.constant 0 : index
    %6 = vector.load %arg2[%c0_8, %c0_9] : memref<16x32xf32, #tpu.memory_space<vmem>>, vector<16x32xf32>
    %c0_10 = arith.constant 0 : index
    %c0_11 = arith.constant 0 : index
    %7 = vector.load %arg4[%c0_10, %c0_11] : memref<32x96xf32, #tpu.memory_space<vmem>>, vector<32x96xf32>
    %cst_12 = arith.constant dense<0.000000e+00> : vector<16x96xf32>
    %8 = tpu.matmul %6, %7, %cst_12 {dimension_numbers = #tpu.dot_dimension_numbers<[1], [0], [0], [1], [0, 0, 1, 1], [], []>} : vector<16x32xf32>, vector<32x96xf32>, vector<16x96xf32> -> vector<16x96xf32>
    %9 = arith.addf %2, %8 : vector<16x96xf32>
    %c0_13 = arith.constant 0 : index
    %c0_14 = arith.constant 0 : index
    %10 = vector.load %arg2[%c0_13, %c0_14] : memref<16x32xf32, #tpu.memory_space<vmem>>, vector<16x32xf32>
    %c0_15 = arith.constant 0 : index
    %c0_16 = arith.constant 0 : index
    %11 = vector.load %arg6[%c0_15, %c0_16] : memref<32x96xf32, #tpu.memory_space<vmem>>, vector<32x96xf32>
    %cst_17 = arith.constant dense<0.000000e+00> : vector<16x96xf32>
    %12 = tpu.matmul %10, %11, %cst_17 {dimension_numbers = #tpu.dot_dimension_numbers<[1], [0], [0], [1], [0, 0, 1, 1], [], []>} : vector<16x32xf32>, vector<32x96xf32>, vector<16x96xf32> -> vector<16x96xf32>
    %13 = arith.addf %5, %12 : vector<16x96xf32>
    %c0_18 = arith.constant 0 : index
    %c0_19 = arith.constant 0 : index
    %14 = vector.load %arg7[%c0_18, %c0_19] : memref<1x96xf32, #tpu.memory_space<vmem>>, vector<1x96xf32>
    %15 = vector.broadcast %14 : vector<1x96xf32> to vector<16x96xf32>
    %16 = arith.addf %9, %15 : vector<16x96xf32>
    %c0_20 = arith.constant 0 : index
    %c0_21 = arith.constant 0 : index
    %17 = vector.load %arg9[%c0_20, %c0_21] : memref<16x96xf32, #tpu.memory_space<vmem>>, vector<16x96xf32>
    tpu.vector_store %arg9[%c0_20, %c0_21], %16 {strides = array<i32>} : memref<16x96xf32, #tpu.memory_space<vmem>>, vector<16x96xf32>,
    %c0_22 = arith.constant 0 : index
    %c0_23 = arith.constant 0 : index
    %18 = vector.load %arg8[%c0_22, %c0_23] : memref<1x96xf32, #tpu.memory_space<vmem>>, vector<1x96xf32>
    %19 = vector.broadcast %18 : vector<1x96xf32> to vector<16x96xf32>
    %20 = arith.addf %13, %19 : vector<16x96xf32>
    %c0_24 = arith.constant 0 : index
    %c0_25 = arith.constant 0 : index
    %21 = vector.load %arg10[%c0_24, %c0_25] : memref<16x96xf32, #tpu.memory_space<vmem>>, vector<16x96xf32>
    tpu.vector_store %arg10[%c0_24, %c0_25], %20 {strides = array<i32>} : memref<16x96xf32, #tpu.memory_space<vmem>>, vector<16x96xf32>,
    return
  }
  func.func @transform_0(%arg0: i32) -> (i32, i32) {
    %c0_i32 = arith.constant 0 : i32
    %c0_i32_0 = arith.constant 0 : i32
    return %arg0, %c0_i32 : i32, i32
  }
  func.func @transform_1(%arg0: i32) -> (i32, i32) {
    %c0_i32 = arith.constant 0 : i32
    %c0_i32_0 = arith.constant 0 : i32
    return %arg0, %c0_i32 : i32, i32
  }
  func.func @transform_2(%arg0: i32) -> (i32, i32) {
    %c0_i32 = arith.constant 0 : i32
    %c0_i32_0 = arith.constant 0 : i32
    %c0_i32_1 = arith.constant 0 : i32
    return %c0_i32, %c0_i32_0 : i32, i32
  }
  func.func @transform_3(%arg0: i32) -> (i32, i32) {
    %c0_i32 = arith.constant 0 : i32
    %c0_i32_0 = arith.constant 0 : i32
    %c0_i32_1 = arith.constant 0 : i32
    return %c0_i32, %c0_i32_0 : i32, i32
  }
  func.func @transform_4(%arg0: i32) -> (i32, i32) {
    %c0_i32 = arith.constant 0 : i32
    %c0_i32_0 = arith.constant 0 : i32
    %c0_i32_1 = arith.constant 0 : i32
    return %c0_i32, %c0_i32_0 : i32, i32
  }
  func.func @transform_5(%arg0: i32) -> (i32, i32) {
    %c0_i32 = arith.constant 0 : i32
    %c0_i32_0 = arith.constant 0 : i32
    %c0_i32_1 = arith.constant 0 : i32
    return %c0_i32, %c0_i32_0 : i32, i32
  }
  func.func @transform_6(%arg0: i32) -> (i32, i32) {
    %c0_i32 = arith.constant 0 : i32
    %c0_i32_0 = arith.constant 0 : i32
    %c0_i32_1 = arith.constant 0 : i32
    return %c0_i32, %c0_i32_0 : i32, i32
  }
  func.func @transform_7(%arg0: i32) -> (i32, i32) {
    %c0_i32 = arith.constant 0 : i32
    %c0_i32_0 = arith.constant 0 : i32
    %c0_i32_1 = arith.constant 0 : i32
    return %c0_i32, %c0_i32_0 : i32, i32
  }
  func.func @transform_8(%arg0: i32) -> (i32, i32) {
    %c0_i32 = arith.constant 0 : i32
    %c0_i32_0 = arith.constant 0 : i32
    return %arg0, %c0_i32 : i32, i32
  }
  func.func @transform_9(%arg0: i32) -> (i32, i32) {
    %c0_i32 = arith.constant 0 : i32
    %c0_i32_0 = arith.constant 0 : i32
    return %arg0, %c0_i32 : i32, i32
  }
}

module attributes {stable_mosaic.version = 11 : i64} {
  func.func @kernel(%arg0: i32, %arg1: memref<8x2x96xf32, #tpu.memory_space<vmem>>, %arg2: memref<8x2x96xf32, #tpu.memory_space<vmem>>, %arg3: memref<32x96xf32, #tpu.memory_space<vmem>>, %arg4: memref<32x96xf32, #tpu.memory_space<vmem>>, %arg5: memref<1x96xf32, #tpu.memory_space<vmem>>, %arg6: memref<1x96xf32, #tpu.memory_space<vmem>>, %arg7: memref<32x32xf32, #tpu.memory_space<vmem>>, %arg8: memref<1x32xf32, #tpu.memory_space<vmem>>, %arg9: memref<2x32xf32, #tpu.memory_space<vmem>>, %arg10: memref<2x32xf32, #tpu.memory_space<vmem>>, %arg11: memref<2x32xf32, #tpu.memory_space<vmem>>) attributes {dimension_semantics = [#tpu.dimension_semantics<arbitrary>], iteration_bounds = array<i64: 1>, scalar_prefetch = 0 : i64, scratch_operands = 2 : i64, tpu.core_type = #tpu.core_type<tc>, window_params = [{transform_indices = @transform_0, window_bounds = array<i64: 8, 2, 96>}, {transform_indices = @transform_1, window_bounds = array<i64: 8, 2, 96>}, {pipeline_mode = #tpu.pipeline_mode<synchronous>, transform_indices = @transform_2, window_bounds = array<i64: 32, 96>}, {pipeline_mode = #tpu.pipeline_mode<synchronous>, transform_indices = @transform_3, window_bounds = array<i64: 32, 96>}, {pipeline_mode = #tpu.pipeline_mode<synchronous>, transform_indices = @transform_4, window_bounds = array<i64: 1, 96>}, {pipeline_mode = #tpu.pipeline_mode<synchronous>, transform_indices = @transform_5, window_bounds = array<i64: 1, 96>}, {pipeline_mode = #tpu.pipeline_mode<synchronous>, transform_indices = @transform_6, window_bounds = array<i64: 32, 32>}, {pipeline_mode = #tpu.pipeline_mode<synchronous>, transform_indices = @transform_7, window_bounds = array<i64: 1, 32>}, {pipeline_mode = #tpu.pipeline_mode<synchronous>, transform_indices = @transform_8, window_bounds = array<i64: 2, 32>}]} {
    %c0_i32 = arith.constant 0 : i32
    %0 = arith.cmpi eq, %arg0, %c0_i32 : i32
    %1 = arith.extui %0 : i1 to i32
    %c0_i32_0 = arith.constant 0 : i32
    %2 = arith.cmpi ne, %1, %c0_i32_0 : i32
    scf.if %2 {
      %cst_122 = arith.constant 0.000000e+00 : f32
      %510 = vector.broadcast %cst_122 : f32 to vector<2x32xf32>
      %c0_123 = arith.constant 0 : index
      %c0_124 = arith.constant 0 : index
      %511 = vector.load %arg10[%c0_123, %c0_124] : memref<2x32xf32, #tpu.memory_space<vmem>>, vector<2x32xf32>
      tpu.vector_store %arg10[%c0_123, %c0_124], %510 {strides = array<i32>} : memref<2x32xf32, #tpu.memory_space<vmem>>, vector<2x32xf32>,
      %cst_125 = arith.constant 0.000000e+00 : f32
      %512 = vector.broadcast %cst_125 : f32 to vector<2x32xf32>
      %c0_126 = arith.constant 0 : index
      %c0_127 = arith.constant 0 : index
      %513 = vector.load %arg11[%c0_126, %c0_127] : memref<2x32xf32, #tpu.memory_space<vmem>>, vector<2x32xf32>
      tpu.vector_store %arg11[%c0_126, %c0_127], %512 {strides = array<i32>} : memref<2x32xf32, #tpu.memory_space<vmem>>, vector<2x32xf32>,
    } else {
    }
    %c0 = arith.constant 0 : index
    %c0_1 = arith.constant 0 : index
    %3 = vector.load %arg10[%c0, %c0_1] : memref<2x32xf32, #tpu.memory_space<vmem>>, vector<2x32xf32>
    %c0_2 = arith.constant 0 : index
    %c0_3 = arith.constant 0 : index
    %4 = vector.load %arg11[%c0_2, %c0_3] : memref<2x32xf32, #tpu.memory_space<vmem>>, vector<2x32xf32>
    %c0_4 = arith.constant 0 : index
    %c0_5 = arith.constant 0 : index
    %5 = vector.load %arg3[%c0_4, %c0_5] : memref<32x96xf32, #tpu.memory_space<vmem>>, vector<32x96xf32>
    %c0_6 = arith.constant 0 : index
    %c0_7 = arith.constant 0 : index
    %6 = vector.load %arg4[%c0_6, %c0_7] : memref<32x96xf32, #tpu.memory_space<vmem>>, vector<32x96xf32>
    %c0_8 = arith.constant 0 : index
    %c0_9 = arith.constant 0 : index
    %7 = vector.load %arg5[%c0_8, %c0_9] : memref<1x96xf32, #tpu.memory_space<vmem>>, vector<1x96xf32>
    %c0_10 = arith.constant 0 : index
    %c0_11 = arith.constant 0 : index
    %8 = vector.load %arg6[%c0_10, %c0_11] : memref<1x96xf32, #tpu.memory_space<vmem>>, vector<1x96xf32>
    %c0_12 = arith.constant 0 : index
    %c0_13 = arith.constant 0 : index
    %c0_14 = arith.constant 0 : index
    %9 = vector.load %arg1[%c0_12, %c0_13, %c0_14] : memref<8x2x96xf32, #tpu.memory_space<vmem>>, vector<1x2x96xf32>
    %10 = vector.shape_cast %9 : vector<1x2x96xf32> to vector<2x96xf32>
    %cst = arith.constant dense<0.000000e+00> : vector<2x96xf32>
    %11 = tpu.matmul %3, %5, %cst {dimension_numbers = #tpu.dot_dimension_numbers<[1], [0], [0], [1], [0, 0, 1, 1], [], []>} : vector<2x32xf32>, vector<32x96xf32>, vector<2x96xf32> -> vector<2x96xf32>
    %12 = vector.broadcast %7 : vector<1x96xf32> to vector<2x96xf32>
    %13 = arith.addf %11, %12 : vector<2x96xf32>
    %14 = vector.extract_strided_slice %10 {offsets = [0, 0], sizes = [2, 32], strides = [1, 1]} : vector<2x96xf32> to vector<2x32xf32>
    %15 = vector.extract_strided_slice %13 {offsets = [0, 0], sizes = [2, 32], strides = [1, 1]} : vector<2x96xf32> to vector<2x32xf32>
    %16 = arith.addf %14, %15 : vector<2x32xf32>
    %17 = arith.negf %16 : vector<2x32xf32>
    %18 = math.exp %17 : vector<2x32xf32>
    %cst_15 = arith.constant 1.000000e+00 : f32
    %19 = vector.broadcast %cst_15 : f32 to vector<2x32xf32>
    %20 = arith.addf %19, %18 : vector<2x32xf32>
    %21 = arith.divf %19, %20 : vector<2x32xf32>
    %22 = vector.extract_strided_slice %10 {offsets = [0, 32], sizes = [2, 32], strides = [1, 1]} : vector<2x96xf32> to vector<2x32xf32>
    %23 = vector.extract_strided_slice %13 {offsets = [0, 32], sizes = [2, 32], strides = [1, 1]} : vector<2x96xf32> to vector<2x32xf32>
    %24 = arith.addf %22, %23 : vector<2x32xf32>
    %25 = arith.negf %24 : vector<2x32xf32>
    %26 = math.exp %25 : vector<2x32xf32>
    %cst_16 = arith.constant 1.000000e+00 : f32
    %27 = vector.broadcast %cst_16 : f32 to vector<2x32xf32>
    %28 = arith.addf %27, %26 : vector<2x32xf32>
    %29 = arith.divf %27, %28 : vector<2x32xf32>
    %30 = vector.extract_strided_slice %10 {offsets = [0, 64], sizes = [2, 32], strides = [1, 1]} : vector<2x96xf32> to vector<2x32xf32>
    %31 = vector.extract_strided_slice %13 {offsets = [0, 64], sizes = [2, 32], strides = [1, 1]} : vector<2x96xf32> to vector<2x32xf32>
    %32 = arith.mulf %21, %31 : vector<2x32xf32>
    %33 = arith.addf %30, %32 : vector<2x32xf32>
    %34 = math.tanh %33 : vector<2x32xf32>
    %cst_17 = arith.constant 1.000000e+00 : f32
    %35 = vector.broadcast %cst_17 : f32 to vector<2x32xf32>
    %36 = arith.subf %35, %29 : vector<2x32xf32>
    %37 = arith.mulf %36, %34 : vector<2x32xf32>
    %38 = arith.mulf %29, %3 : vector<2x32xf32>
    %39 = arith.addf %37, %38 : vector<2x32xf32>
    %c7 = arith.constant 7 : index
    %c0_18 = arith.constant 0 : index
    %c0_19 = arith.constant 0 : index
    %40 = vector.load %arg2[%c7, %c0_18, %c0_19] : memref<8x2x96xf32, #tpu.memory_space<vmem>>, vector<1x2x96xf32>
    %41 = vector.shape_cast %40 : vector<1x2x96xf32> to vector<2x96xf32>
    %cst_20 = arith.constant dense<0.000000e+00> : vector<2x96xf32>
    %42 = tpu.matmul %4, %6, %cst_20 {dimension_numbers = #tpu.dot_dimension_numbers<[1], [0], [0], [1], [0, 0, 1, 1], [], []>} : vector<2x32xf32>, vector<32x96xf32>, vector<2x96xf32> -> vector<2x96xf32>
    %43 = vector.broadcast %8 : vector<1x96xf32> to vector<2x96xf32>
    %44 = arith.addf %42, %43 : vector<2x96xf32>
    %45 = vector.extract_strided_slice %41 {offsets = [0, 0], sizes = [2, 32], strides = [1, 1]} : vector<2x96xf32> to vector<2x32xf32>
    %46 = vector.extract_strided_slice %44 {offsets = [0, 0], sizes = [2, 32], strides = [1, 1]} : vector<2x96xf32> to vector<2x32xf32>
    %47 = arith.addf %45, %46 : vector<2x32xf32>
    %48 = arith.negf %47 : vector<2x32xf32>
    %49 = math.exp %48 : vector<2x32xf32>
    %cst_21 = arith.constant 1.000000e+00 : f32
    %50 = vector.broadcast %cst_21 : f32 to vector<2x32xf32>
    %51 = arith.addf %50, %49 : vector<2x32xf32>
    %52 = arith.divf %50, %51 : vector<2x32xf32>
    %53 = vector.extract_strided_slice %41 {offsets = [0, 32], sizes = [2, 32], strides = [1, 1]} : vector<2x96xf32> to vector<2x32xf32>
    %54 = vector.extract_strided_slice %44 {offsets = [0, 32], sizes = [2, 32], strides = [1, 1]} : vector<2x96xf32> to vector<2x32xf32>
    %55 = arith.addf %53, %54 : vector<2x32xf32>
    %56 = arith.negf %55 : vector<2x32xf32>
    %57 = math.exp %56 : vector<2x32xf32>
    %cst_22 = arith.constant 1.000000e+00 : f32
    %58 = vector.broadcast %cst_22 : f32 to vector<2x32xf32>
    %59 = arith.addf %58, %57 : vector<2x32xf32>
    %60 = arith.divf %58, %59 : vector<2x32xf32>
    %61 = vector.extract_strided_slice %41 {offsets = [0, 64], sizes = [2, 32], strides = [1, 1]} : vector<2x96xf32> to vector<2x32xf32>
    %62 = vector.extract_strided_slice %44 {offsets = [0, 64], sizes = [2, 32], strides = [1, 1]} : vector<2x96xf32> to vector<2x32xf32>
    %63 = arith.mulf %52, %62 : vector<2x32xf32>
    %64 = arith.addf %61, %63 : vector<2x32xf32>
    %65 = math.tanh %64 : vector<2x32xf32>
    %cst_23 = arith.constant 1.000000e+00 : f32
    %66 = vector.broadcast %cst_23 : f32 to vector<2x32xf32>
    %67 = arith.subf %66, %60 : vector<2x32xf32>
    %68 = arith.mulf %67, %65 : vector<2x32xf32>
    %69 = arith.mulf %60, %4 : vector<2x32xf32>
    %70 = arith.addf %68, %69 : vector<2x32xf32>
    %c1 = arith.constant 1 : index
    %c0_24 = arith.constant 0 : index
    %c0_25 = arith.constant 0 : index
    %71 = vector.load %arg1[%c1, %c0_24, %c0_25] : memref<8x2x96xf32, #tpu.memory_space<vmem>>, vector<1x2x96xf32>
    %72 = vector.shape_cast %71 : vector<1x2x96xf32> to vector<2x96xf32>
    %cst_26 = arith.constant dense<0.000000e+00> : vector<2x96xf32>
    %73 = tpu.matmul %39, %5, %cst_26 {dimension_numbers = #tpu.dot_dimension_numbers<[1], [0], [0], [1], [0, 0, 1, 1], [], []>} : vector<2x32xf32>, vector<32x96xf32>, vector<2x96xf32> -> vector<2x96xf32>
    %74 = vector.broadcast %7 : vector<1x96xf32> to vector<2x96xf32>
    %75 = arith.addf %73, %74 : vector<2x96xf32>
    %76 = vector.extract_strided_slice %72 {offsets = [0, 0], sizes = [2, 32], strides = [1, 1]} : vector<2x96xf32> to vector<2x32xf32>
    %77 = vector.extract_strided_slice %75 {offsets = [0, 0], sizes = [2, 32], strides = [1, 1]} : vector<2x96xf32> to vector<2x32xf32>
    %78 = arith.addf %76, %77 : vector<2x32xf32>
    %79 = arith.negf %78 : vector<2x32xf32>
    %80 = math.exp %79 : vector<2x32xf32>
    %cst_27 = arith.constant 1.000000e+00 : f32
    %81 = vector.broadcast %cst_27 : f32 to vector<2x32xf32>
    %82 = arith.addf %81, %80 : vector<2x32xf32>
    %83 = arith.divf %81, %82 : vector<2x32xf32>
    %84 = vector.extract_strided_slice %72 {offsets = [0, 32], sizes = [2, 32], strides = [1, 1]} : vector<2x96xf32> to vector<2x32xf32>
    %85 = vector.extract_strided_slice %75 {offsets = [0, 32], sizes = [2, 32], strides = [1, 1]} : vector<2x96xf32> to vector<2x32xf32>
    %86 = arith.addf %84, %85 : vector<2x32xf32>
    %87 = arith.negf %86 : vector<2x32xf32>
    %88 = math.exp %87 : vector<2x32xf32>
    %cst_28 = arith.constant 1.000000e+00 : f32
    %89 = vector.broadcast %cst_28 : f32 to vector<2x32xf32>
    %90 = arith.addf %89, %88 : vector<2x32xf32>
    %91 = arith.divf %89, %90 : vector<2x32xf32>
    %92 = vector.extract_strided_slice %72 {offsets = [0, 64], sizes = [2, 32], strides = [1, 1]} : vector<2x96xf32> to vector<2x32xf32>
    %93 = vector.extract_strided_slice %75 {offsets = [0, 64], sizes = [2, 32], strides = [1, 1]} : vector<2x96xf32> to vector<2x32xf32>
    %94 = arith.mulf %83, %93 : vector<2x32xf32>
    %95 = arith.addf %92, %94 : vector<2x32xf32>
    %96 = math.tanh %95 : vector<2x32xf32>
    %cst_29 = arith.constant 1.000000e+00 : f32
    %97 = vector.broadcast %cst_29 : f32 to vector<2x32xf32>
    %98 = arith.subf %97, %91 : vector<2x32xf32>
    %99 = arith.mulf %98, %96 : vector<2x32xf32>
    %100 = arith.mulf %91, %39 : vector<2x32xf32>
    %101 = arith.addf %99, %100 : vector<2x32xf32>
    %c6 = arith.constant 6 : index
    %c0_30 = arith.constant 0 : index
    %c0_31 = arith.constant 0 : index
    %102 = vector.load %arg2[%c6, %c0_30, %c0_31] : memref<8x2x96xf32, #tpu.memory_space<vmem>>, vector<1x2x96xf32>
    %103 = vector.shape_cast %102 : vector<1x2x96xf32> to vector<2x96xf32>
    %cst_32 = arith.constant dense<0.000000e+00> : vector<2x96xf32>
    %104 = tpu.matmul %70, %6, %cst_32 {dimension_numbers = #tpu.dot_dimension_numbers<[1], [0], [0], [1], [0, 0, 1, 1], [], []>} : vector<2x32xf32>, vector<32x96xf32>, vector<2x96xf32> -> vector<2x96xf32>
    %105 = vector.broadcast %8 : vector<1x96xf32> to vector<2x96xf32>
    %106 = arith.addf %104, %105 : vector<2x96xf32>
    %107 = vector.extract_strided_slice %103 {offsets = [0, 0], sizes = [2, 32], strides = [1, 1]} : vector<2x96xf32> to vector<2x32xf32>
    %108 = vector.extract_strided_slice %106 {offsets = [0, 0], sizes = [2, 32], strides = [1, 1]} : vector<2x96xf32> to vector<2x32xf32>
    %109 = arith.addf %107, %108 : vector<2x32xf32>
    %110 = arith.negf %109 : vector<2x32xf32>
    %111 = math.exp %110 : vector<2x32xf32>
    %cst_33 = arith.constant 1.000000e+00 : f32
    %112 = vector.broadcast %cst_33 : f32 to vector<2x32xf32>
    %113 = arith.addf %112, %111 : vector<2x32xf32>
    %114 = arith.divf %112, %113 : vector<2x32xf32>
    %115 = vector.extract_strided_slice %103 {offsets = [0, 32], sizes = [2, 32], strides = [1, 1]} : vector<2x96xf32> to vector<2x32xf32>
    %116 = vector.extract_strided_slice %106 {offsets = [0, 32], sizes = [2, 32], strides = [1, 1]} : vector<2x96xf32> to vector<2x32xf32>
    %117 = arith.addf %115, %116 : vector<2x32xf32>
    %118 = arith.negf %117 : vector<2x32xf32>
    %119 = math.exp %118 : vector<2x32xf32>
    %cst_34 = arith.constant 1.000000e+00 : f32
    %120 = vector.broadcast %cst_34 : f32 to vector<2x32xf32>
    %121 = arith.addf %120, %119 : vector<2x32xf32>
    %122 = arith.divf %120, %121 : vector<2x32xf32>
    %123 = vector.extract_strided_slice %103 {offsets = [0, 64], sizes = [2, 32], strides = [1, 1]} : vector<2x96xf32> to vector<2x32xf32>
    %124 = vector.extract_strided_slice %106 {offsets = [0, 64], sizes = [2, 32], strides = [1, 1]} : vector<2x96xf32> to vector<2x32xf32>
    %125 = arith.mulf %114, %124 : vector<2x32xf32>
    %126 = arith.addf %123, %125 : vector<2x32xf32>
    %127 = math.tanh %126 : vector<2x32xf32>
    %cst_35 = arith.constant 1.000000e+00 : f32
    %128 = vector.broadcast %cst_35 : f32 to vector<2x32xf32>
    %129 = arith.subf %128, %122 : vector<2x32xf32>
    %130 = arith.mulf %129, %127 : vector<2x32xf32>
    %131 = arith.mulf %122, %70 : vector<2x32xf32>
    %132 = arith.addf %130, %131 : vector<2x32xf32>
    %c2 = arith.constant 2 : index
    %c0_36 = arith.constant 0 : index
    %c0_37 = arith.constant 0 : index
    %133 = vector.load %arg1[%c2, %c0_36, %c0_37] : memref<8x2x96xf32, #tpu.memory_space<vmem>>, vector<1x2x96xf32>
    %134 = vector.shape_cast %133 : vector<1x2x96xf32> to vector<2x96xf32>
    %cst_38 = arith.constant dense<0.000000e+00> : vector<2x96xf32>
    %135 = tpu.matmul %101, %5, %cst_38 {dimension_numbers = #tpu.dot_dimension_numbers<[1], [0], [0], [1], [0, 0, 1, 1], [], []>} : vector<2x32xf32>, vector<32x96xf32>, vector<2x96xf32> -> vector<2x96xf32>
    %136 = vector.broadcast %7 : vector<1x96xf32> to vector<2x96xf32>
    %137 = arith.addf %135, %136 : vector<2x96xf32>
    %138 = vector.extract_strided_slice %134 {offsets = [0, 0], sizes = [2, 32], strides = [1, 1]} : vector<2x96xf32> to vector<2x32xf32>
    %139 = vector.extract_strided_slice %137 {offsets = [0, 0], sizes = [2, 32], strides = [1, 1]} : vector<2x96xf32> to vector<2x32xf32>
    %140 = arith.addf %138, %139 : vector<2x32xf32>
    %141 = arith.negf %140 : vector<2x32xf32>
    %142 = math.exp %141 : vector<2x32xf32>
    %cst_39 = arith.constant 1.000000e+00 : f32
    %143 = vector.broadcast %cst_39 : f32 to vector<2x32xf32>
    %144 = arith.addf %143, %142 : vector<2x32xf32>
    %145 = arith.divf %143, %144 : vector<2x32xf32>
    %146 = vector.extract_strided_slice %134 {offsets = [0, 32], sizes = [2, 32], strides = [1, 1]} : vector<2x96xf32> to vector<2x32xf32>
    %147 = vector.extract_strided_slice %137 {offsets = [0, 32], sizes = [2, 32], strides = [1, 1]} : vector<2x96xf32> to vector<2x32xf32>
    %148 = arith.addf %146, %147 : vector<2x32xf32>
    %149 = arith.negf %148 : vector<2x32xf32>
    %150 = math.exp %149 : vector<2x32xf32>
    %cst_40 = arith.constant 1.000000e+00 : f32
    %151 = vector.broadcast %cst_40 : f32 to vector<2x32xf32>
    %152 = arith.addf %151, %150 : vector<2x32xf32>
    %153 = arith.divf %151, %152 : vector<2x32xf32>
    %154 = vector.extract_strided_slice %134 {offsets = [0, 64], sizes = [2, 32], strides = [1, 1]} : vector<2x96xf32> to vector<2x32xf32>
    %155 = vector.extract_strided_slice %137 {offsets = [0, 64], sizes = [2, 32], strides = [1, 1]} : vector<2x96xf32> to vector<2x32xf32>
    %156 = arith.mulf %145, %155 : vector<2x32xf32>
    %157 = arith.addf %154, %156 : vector<2x32xf32>
    %158 = math.tanh %157 : vector<2x32xf32>
    %cst_41 = arith.constant 1.000000e+00 : f32
    %159 = vector.broadcast %cst_41 : f32 to vector<2x32xf32>
    %160 = arith.subf %159, %153 : vector<2x32xf32>
    %161 = arith.mulf %160, %158 : vector<2x32xf32>
    %162 = arith.mulf %153, %101 : vector<2x32xf32>
    %163 = arith.addf %161, %162 : vector<2x32xf32>
    %c5 = arith.constant 5 : index
    %c0_42 = arith.constant 0 : index
    %c0_43 = arith.constant 0 : index
    %164 = vector.load %arg2[%c5, %c0_42, %c0_43] : memref<8x2x96xf32, #tpu.memory_space<vmem>>, vector<1x2x96xf32>
    %165 = vector.shape_cast %164 : vector<1x2x96xf32> to vector<2x96xf32>
    %cst_44 = arith.constant dense<0.000000e+00> : vector<2x96xf32>
    %166 = tpu.matmul %132, %6, %cst_44 {dimension_numbers = #tpu.dot_dimension_numbers<[1], [0], [0], [1], [0, 0, 1, 1], [], []>} : vector<2x32xf32>, vector<32x96xf32>, vector<2x96xf32> -> vector<2x96xf32>
    %167 = vector.broadcast %8 : vector<1x96xf32> to vector<2x96xf32>
    %168 = arith.addf %166, %167 : vector<2x96xf32>
    %169 = vector.extract_strided_slice %165 {offsets = [0, 0], sizes = [2, 32], strides = [1, 1]} : vector<2x96xf32> to vector<2x32xf32>
    %170 = vector.extract_strided_slice %168 {offsets = [0, 0], sizes = [2, 32], strides = [1, 1]} : vector<2x96xf32> to vector<2x32xf32>
    %171 = arith.addf %169, %170 : vector<2x32xf32>
    %172 = arith.negf %171 : vector<2x32xf32>
    %173 = math.exp %172 : vector<2x32xf32>
    %cst_45 = arith.constant 1.000000e+00 : f32
    %174 = vector.broadcast %cst_45 : f32 to vector<2x32xf32>
    %175 = arith.addf %174, %173 : vector<2x32xf32>
    %176 = arith.divf %174, %175 : vector<2x32xf32>
    %177 = vector.extract_strided_slice %165 {offsets = [0, 32], sizes = [2, 32], strides = [1, 1]} : vector<2x96xf32> to vector<2x32xf32>
    %178 = vector.extract_strided_slice %168 {offsets = [0, 32], sizes = [2, 32], strides = [1, 1]} : vector<2x96xf32> to vector<2x32xf32>
    %179 = arith.addf %177, %178 : vector<2x32xf32>
    %180 = arith.negf %179 : vector<2x32xf32>
    %181 = math.exp %180 : vector<2x32xf32>
    %cst_46 = arith.constant 1.000000e+00 : f32
    %182 = vector.broadcast %cst_46 : f32 to vector<2x32xf32>
    %183 = arith.addf %182, %181 : vector<2x32xf32>
    %184 = arith.divf %182, %183 : vector<2x32xf32>
    %185 = vector.extract_strided_slice %165 {offsets = [0, 64], sizes = [2, 32], strides = [1, 1]} : vector<2x96xf32> to vector<2x32xf32>
    %186 = vector.extract_strided_slice %168 {offsets = [0, 64], sizes = [2, 32], strides = [1, 1]} : vector<2x96xf32> to vector<2x32xf32>
    %187 = arith.mulf %176, %186 : vector<2x32xf32>
    %188 = arith.addf %185, %187 : vector<2x32xf32>
    %189 = math.tanh %188 : vector<2x32xf32>
    %cst_47 = arith.constant 1.000000e+00 : f32
    %190 = vector.broadcast %cst_47 : f32 to vector<2x32xf32>
    %191 = arith.subf %190, %184 : vector<2x32xf32>
    %192 = arith.mulf %191, %189 : vector<2x32xf32>
    %193 = arith.mulf %184, %132 : vector<2x32xf32>
    %194 = arith.addf %192, %193 : vector<2x32xf32>
    %c3 = arith.constant 3 : index
    %c0_48 = arith.constant 0 : index
    %c0_49 = arith.constant 0 : index
    %195 = vector.load %arg1[%c3, %c0_48, %c0_49] : memref<8x2x96xf32, #tpu.memory_space<vmem>>, vector<1x2x96xf32>
    %196 = vector.shape_cast %195 : vector<1x2x96xf32> to vector<2x96xf32>
    %cst_50 = arith.constant dense<0.000000e+00> : vector<2x96xf32>
    %197 = tpu.matmul %163, %5, %cst_50 {dimension_numbers = #tpu.dot_dimension_numbers<[1], [0], [0], [1], [0, 0, 1, 1], [], []>} : vector<2x32xf32>, vector<32x96xf32>, vector<2x96xf32> -> vector<2x96xf32>
    %198 = vector.broadcast %7 : vector<1x96xf32> to vector<2x96xf32>
    %199 = arith.addf %197, %198 : vector<2x96xf32>
    %200 = vector.extract_strided_slice %196 {offsets = [0, 0], sizes = [2, 32], strides = [1, 1]} : vector<2x96xf32> to vector<2x32xf32>
    %201 = vector.extract_strided_slice %199 {offsets = [0, 0], sizes = [2, 32], strides = [1, 1]} : vector<2x96xf32> to vector<2x32xf32>
    %202 = arith.addf %200, %201 : vector<2x32xf32>
    %203 = arith.negf %202 : vector<2x32xf32>
    %204 = math.exp %203 : vector<2x32xf32>
    %cst_51 = arith.constant 1.000000e+00 : f32
    %205 = vector.broadcast %cst_51 : f32 to vector<2x32xf32>
    %206 = arith.addf %205, %204 : vector<2x32xf32>
    %207 = arith.divf %205, %206 : vector<2x32xf32>
    %208 = vector.extract_strided_slice %196 {offsets = [0, 32], sizes = [2, 32], strides = [1, 1]} : vector<2x96xf32> to vector<2x32xf32>
    %209 = vector.extract_strided_slice %199 {offsets = [0, 32], sizes = [2, 32], strides = [1, 1]} : vector<2x96xf32> to vector<2x32xf32>
    %210 = arith.addf %208, %209 : vector<2x32xf32>
    %211 = arith.negf %210 : vector<2x32xf32>
    %212 = math.exp %211 : vector<2x32xf32>
    %cst_52 = arith.constant 1.000000e+00 : f32
    %213 = vector.broadcast %cst_52 : f32 to vector<2x32xf32>
    %214 = arith.addf %213, %212 : vector<2x32xf32>
    %215 = arith.divf %213, %214 : vector<2x32xf32>
    %216 = vector.extract_strided_slice %196 {offsets = [0, 64], sizes = [2, 32], strides = [1, 1]} : vector<2x96xf32> to vector<2x32xf32>
    %217 = vector.extract_strided_slice %199 {offsets = [0, 64], sizes = [2, 32], strides = [1, 1]} : vector<2x96xf32> to vector<2x32xf32>
    %218 = arith.mulf %207, %217 : vector<2x32xf32>
    %219 = arith.addf %216, %218 : vector<2x32xf32>
    %220 = math.tanh %219 : vector<2x32xf32>
    %cst_53 = arith.constant 1.000000e+00 : f32
    %221 = vector.broadcast %cst_53 : f32 to vector<2x32xf32>
    %222 = arith.subf %221, %215 : vector<2x32xf32>
    %223 = arith.mulf %222, %220 : vector<2x32xf32>
    %224 = arith.mulf %215, %163 : vector<2x32xf32>
    %225 = arith.addf %223, %224 : vector<2x32xf32>
    %c4 = arith.constant 4 : index
    %c0_54 = arith.constant 0 : index
    %c0_55 = arith.constant 0 : index
    %226 = vector.load %arg2[%c4, %c0_54, %c0_55] : memref<8x2x96xf32, #tpu.memory_space<vmem>>, vector<1x2x96xf32>
    %227 = vector.shape_cast %226 : vector<1x2x96xf32> to vector<2x96xf32>
    %cst_56 = arith.constant dense<0.000000e+00> : vector<2x96xf32>
    %228 = tpu.matmul %194, %6, %cst_56 {dimension_numbers = #tpu.dot_dimension_numbers<[1], [0], [0], [1], [0, 0, 1, 1], [], []>} : vector<2x32xf32>, vector<32x96xf32>, vector<2x96xf32> -> vector<2x96xf32>
    %229 = vector.broadcast %8 : vector<1x96xf32> to vector<2x96xf32>
    %230 = arith.addf %228, %229 : vector<2x96xf32>
    %231 = vector.extract_strided_slice %227 {offsets = [0, 0], sizes = [2, 32], strides = [1, 1]} : vector<2x96xf32> to vector<2x32xf32>
    %232 = vector.extract_strided_slice %230 {offsets = [0, 0], sizes = [2, 32], strides = [1, 1]} : vector<2x96xf32> to vector<2x32xf32>
    %233 = arith.addf %231, %232 : vector<2x32xf32>
    %234 = arith.negf %233 : vector<2x32xf32>
    %235 = math.exp %234 : vector<2x32xf32>
    %cst_57 = arith.constant 1.000000e+00 : f32
    %236 = vector.broadcast %cst_57 : f32 to vector<2x32xf32>
    %237 = arith.addf %236, %235 : vector<2x32xf32>
    %238 = arith.divf %236, %237 : vector<2x32xf32>
    %239 = vector.extract_strided_slice %227 {offsets = [0, 32], sizes = [2, 32], strides = [1, 1]} : vector<2x96xf32> to vector<2x32xf32>
    %240 = vector.extract_strided_slice %230 {offsets = [0, 32], sizes = [2, 32], strides = [1, 1]} : vector<2x96xf32> to vector<2x32xf32>
    %241 = arith.addf %239, %240 : vector<2x32xf32>
    %242 = arith.negf %241 : vector<2x32xf32>
    %243 = math.exp %242 : vector<2x32xf32>
    %cst_58 = arith.constant 1.000000e+00 : f32
    %244 = vector.broadcast %cst_58 : f32 to vector<2x32xf32>
    %245 = arith.addf %244, %243 : vector<2x32xf32>
    %246 = arith.divf %244, %245 : vector<2x32xf32>
    %247 = vector.extract_strided_slice %227 {offsets = [0, 64], sizes = [2, 32], strides = [1, 1]} : vector<2x96xf32> to vector<2x32xf32>
    %248 = vector.extract_strided_slice %230 {offsets = [0, 64], sizes = [2, 32], strides = [1, 1]} : vector<2x96xf32> to vector<2x32xf32>
    %249 = arith.mulf %238, %248 : vector<2x32xf32>
    %250 = arith.addf %247, %249 : vector<2x32xf32>
    %251 = math.tanh %250 : vector<2x32xf32>
    %cst_59 = arith.constant 1.000000e+00 : f32
    %252 = vector.broadcast %cst_59 : f32 to vector<2x32xf32>
    %253 = arith.subf %252, %246 : vector<2x32xf32>
    %254 = arith.mulf %253, %251 : vector<2x32xf32>
    %255 = arith.mulf %246, %194 : vector<2x32xf32>
    %256 = arith.addf %254, %255 : vector<2x32xf32>
    %c4_60 = arith.constant 4 : index
    %c0_61 = arith.constant 0 : index
    %c0_62 = arith.constant 0 : index
    %257 = vector.load %arg1[%c4_60, %c0_61, %c0_62] : memref<8x2x96xf32, #tpu.memory_space<vmem>>, vector<1x2x96xf32>
    %258 = vector.shape_cast %257 : vector<1x2x96xf32> to vector<2x96xf32>
    %cst_63 = arith.constant dense<0.000000e+00> : vector<2x96xf32>
    %259 = tpu.matmul %225, %5, %cst_63 {dimension_numbers = #tpu.dot_dimension_numbers<[1], [0], [0], [1], [0, 0, 1, 1], [], []>} : vector<2x32xf32>, vector<32x96xf32>, vector<2x96xf32> -> vector<2x96xf32>
    %260 = vector.broadcast %7 : vector<1x96xf32> to vector<2x96xf32>
    %261 = arith.addf %259, %260 : vector<2x96xf32>
    %262 = vector.extract_strided_slice %258 {offsets = [0, 0], sizes = [2, 32], strides = [1, 1]} : vector<2x96xf32> to vector<2x32xf32>
    %263 = vector.extract_strided_slice %261 {offsets = [0, 0], sizes = [2, 32], strides = [1, 1]} : vector<2x96xf32> to vector<2x32xf32>
    %264 = arith.addf %262, %263 : vector<2x32xf32>
    %265 = arith.negf %264 : vector<2x32xf32>
    %266 = math.exp %265 : vector<2x32xf32>
    %cst_64 = arith.constant 1.000000e+00 : f32
    %267 = vector.broadcast %cst_64 : f32 to vector<2x32xf32>
    %268 = arith.addf %267, %266 : vector<2x32xf32>
    %269 = arith.divf %267, %268 : vector<2x32xf32>
    %270 = vector.extract_strided_slice %258 {offsets = [0, 32], sizes = [2, 32], strides = [1, 1]} : vector<2x96xf32> to vector<2x32xf32>
    %271 = vector.extract_strided_slice %261 {offsets = [0, 32], sizes = [2, 32], strides = [1, 1]} : vector<2x96xf32> to vector<2x32xf32>
    %272 = arith.addf %270, %271 : vector<2x32xf32>
    %273 = arith.negf %272 : vector<2x32xf32>
    %274 = math.exp %273 : vector<2x32xf32>
    %cst_65 = arith.constant 1.000000e+00 : f32
    %275 = vector.broadcast %cst_65 : f32 to vector<2x32xf32>
    %276 = arith.addf %275, %274 : vector<2x32xf32>
    %277 = arith.divf %275, %276 : vector<2x32xf32>
    %278 = vector.extract_strided_slice %258 {offsets = [0, 64], sizes = [2, 32], strides = [1, 1]} : vector<2x96xf32> to vector<2x32xf32>
    %279 = vector.extract_strided_slice %261 {offsets = [0, 64], sizes = [2, 32], strides = [1, 1]} : vector<2x96xf32> to vector<2x32xf32>
    %280 = arith.mulf %269, %279 : vector<2x32xf32>
    %281 = arith.addf %278, %280 : vector<2x32xf32>
    %282 = math.tanh %281 : vector<2x32xf32>
    %cst_66 = arith.constant 1.000000e+00 : f32
    %283 = vector.broadcast %cst_66 : f32 to vector<2x32xf32>
    %284 = arith.subf %283, %277 : vector<2x32xf32>
    %285 = arith.mulf %284, %282 : vector<2x32xf32>
    %286 = arith.mulf %277, %225 : vector<2x32xf32>
    %287 = arith.addf %285, %286 : vector<2x32xf32>
    %c3_67 = arith.constant 3 : index
    %c0_68 = arith.constant 0 : index
    %c0_69 = arith.constant 0 : index
    %288 = vector.load %arg2[%c3_67, %c0_68, %c0_69] : memref<8x2x96xf32, #tpu.memory_space<vmem>>, vector<1x2x96xf32>
    %289 = vector.shape_cast %288 : vector<1x2x96xf32> to vector<2x96xf32>
    %cst_70 = arith.constant dense<0.000000e+00> : vector<2x96xf32>
    %290 = tpu.matmul %256, %6, %cst_70 {dimension_numbers = #tpu.dot_dimension_numbers<[1], [0], [0], [1], [0, 0, 1, 1], [], []>} : vector<2x32xf32>, vector<32x96xf32>, vector<2x96xf32> -> vector<2x96xf32>
    %291 = vector.broadcast %8 : vector<1x96xf32> to vector<2x96xf32>
    %292 = arith.addf %290, %291 : vector<2x96xf32>
    %293 = vector.extract_strided_slice %289 {offsets = [0, 0], sizes = [2, 32], strides = [1, 1]} : vector<2x96xf32> to vector<2x32xf32>
    %294 = vector.extract_strided_slice %292 {offsets = [0, 0], sizes = [2, 32], strides = [1, 1]} : vector<2x96xf32> to vector<2x32xf32>
    %295 = arith.addf %293, %294 : vector<2x32xf32>
    %296 = arith.negf %295 : vector<2x32xf32>
    %297 = math.exp %296 : vector<2x32xf32>
    %cst_71 = arith.constant 1.000000e+00 : f32
    %298 = vector.broadcast %cst_71 : f32 to vector<2x32xf32>
    %299 = arith.addf %298, %297 : vector<2x32xf32>
    %300 = arith.divf %298, %299 : vector<2x32xf32>
    %301 = vector.extract_strided_slice %289 {offsets = [0, 32], sizes = [2, 32], strides = [1, 1]} : vector<2x96xf32> to vector<2x32xf32>
    %302 = vector.extract_strided_slice %292 {offsets = [0, 32], sizes = [2, 32], strides = [1, 1]} : vector<2x96xf32> to vector<2x32xf32>
    %303 = arith.addf %301, %302 : vector<2x32xf32>
    %304 = arith.negf %303 : vector<2x32xf32>
    %305 = math.exp %304 : vector<2x32xf32>
    %cst_72 = arith.constant 1.000000e+00 : f32
    %306 = vector.broadcast %cst_72 : f32 to vector<2x32xf32>
    %307 = arith.addf %306, %305 : vector<2x32xf32>
    %308 = arith.divf %306, %307 : vector<2x32xf32>
    %309 = vector.extract_strided_slice %289 {offsets = [0, 64], sizes = [2, 32], strides = [1, 1]} : vector<2x96xf32> to vector<2x32xf32>
    %310 = vector.extract_strided_slice %292 {offsets = [0, 64], sizes = [2, 32], strides = [1, 1]} : vector<2x96xf32> to vector<2x32xf32>
    %311 = arith.mulf %300, %310 : vector<2x32xf32>
    %312 = arith.addf %309, %311 : vector<2x32xf32>
    %313 = math.tanh %312 : vector<2x32xf32>
    %cst_73 = arith.constant 1.000000e+00 : f32
    %314 = vector.broadcast %cst_73 : f32 to vector<2x32xf32>
    %315 = arith.subf %314, %308 : vector<2x32xf32>
    %316 = arith.mulf %315, %313 : vector<2x32xf32>
    %317 = arith.mulf %308, %256 : vector<2x32xf32>
    %318 = arith.addf %316, %317 : vector<2x32xf32>
    %c5_74 = arith.constant 5 : index
    %c0_75 = arith.constant 0 : index
    %c0_76 = arith.constant 0 : index
    %319 = vector.load %arg1[%c5_74, %c0_75, %c0_76] : memref<8x2x96xf32, #tpu.memory_space<vmem>>, vector<1x2x96xf32>
    %320 = vector.shape_cast %319 : vector<1x2x96xf32> to vector<2x96xf32>
    %cst_77 = arith.constant dense<0.000000e+00> : vector<2x96xf32>
    %321 = tpu.matmul %287, %5, %cst_77 {dimension_numbers = #tpu.dot_dimension_numbers<[1], [0], [0], [1], [0, 0, 1, 1], [], []>} : vector<2x32xf32>, vector<32x96xf32>, vector<2x96xf32> -> vector<2x96xf32>
    %322 = vector.broadcast %7 : vector<1x96xf32> to vector<2x96xf32>
    %323 = arith.addf %321, %322 : vector<2x96xf32>
    %324 = vector.extract_strided_slice %320 {offsets = [0, 0], sizes = [2, 32], strides = [1, 1]} : vector<2x96xf32> to vector<2x32xf32>
    %325 = vector.extract_strided_slice %323 {offsets = [0, 0], sizes = [2, 32], strides = [1, 1]} : vector<2x96xf32> to vector<2x32xf32>
    %326 = arith.addf %324, %325 : vector<2x32xf32>
    %327 = arith.negf %326 : vector<2x32xf32>
    %328 = math.exp %327 : vector<2x32xf32>
    %cst_78 = arith.constant 1.000000e+00 : f32
    %329 = vector.broadcast %cst_78 : f32 to vector<2x32xf32>
    %330 = arith.addf %329, %328 : vector<2x32xf32>
    %331 = arith.divf %329, %330 : vector<2x32xf32>
    %332 = vector.extract_strided_slice %320 {offsets = [0, 32], sizes = [2, 32], strides = [1, 1]} : vector<2x96xf32> to vector<2x32xf32>
    %333 = vector.extract_strided_slice %323 {offsets = [0, 32], sizes = [2, 32], strides = [1, 1]} : vector<2x96xf32> to vector<2x32xf32>
    %334 = arith.addf %332, %333 : vector<2x32xf32>
    %335 = arith.negf %334 : vector<2x32xf32>
    %336 = math.exp %335 : vector<2x32xf32>
    %cst_79 = arith.constant 1.000000e+00 : f32
    %337 = vector.broadcast %cst_79 : f32 to vector<2x32xf32>
    %338 = arith.addf %337, %336 : vector<2x32xf32>
    %339 = arith.divf %337, %338 : vector<2x32xf32>
    %340 = vector.extract_strided_slice %320 {offsets = [0, 64], sizes = [2, 32], strides = [1, 1]} : vector<2x96xf32> to vector<2x32xf32>
    %341 = vector.extract_strided_slice %323 {offsets = [0, 64], sizes = [2, 32], strides = [1, 1]} : vector<2x96xf32> to vector<2x32xf32>
    %342 = arith.mulf %331, %341 : vector<2x32xf32>
    %343 = arith.addf %340, %342 : vector<2x32xf32>
    %344 = math.tanh %343 : vector<2x32xf32>
    %cst_80 = arith.constant 1.000000e+00 : f32
    %345 = vector.broadcast %cst_80 : f32 to vector<2x32xf32>
    %346 = arith.subf %345, %339 : vector<2x32xf32>
    %347 = arith.mulf %346, %344 : vector<2x32xf32>
    %348 = arith.mulf %339, %287 : vector<2x32xf32>
    %349 = arith.addf %347, %348 : vector<2x32xf32>
    %c2_81 = arith.constant 2 : index
    %c0_82 = arith.constant 0 : index
    %c0_83 = arith.constant 0 : index
    %350 = vector.load %arg2[%c2_81, %c0_82, %c0_83] : memref<8x2x96xf32, #tpu.memory_space<vmem>>, vector<1x2x96xf32>
    %351 = vector.shape_cast %350 : vector<1x2x96xf32> to vector<2x96xf32>
    %cst_84 = arith.constant dense<0.000000e+00> : vector<2x96xf32>
    %352 = tpu.matmul %318, %6, %cst_84 {dimension_numbers = #tpu.dot_dimension_numbers<[1], [0], [0], [1], [0, 0, 1, 1], [], []>} : vector<2x32xf32>, vector<32x96xf32>, vector<2x96xf32> -> vector<2x96xf32>
    %353 = vector.broadcast %8 : vector<1x96xf32> to vector<2x96xf32>
    %354 = arith.addf %352, %353 : vector<2x96xf32>
    %355 = vector.extract_strided_slice %351 {offsets = [0, 0], sizes = [2, 32], strides = [1, 1]} : vector<2x96xf32> to vector<2x32xf32>
    %356 = vector.extract_strided_slice %354 {offsets = [0, 0], sizes = [2, 32], strides = [1, 1]} : vector<2x96xf32> to vector<2x32xf32>
    %357 = arith.addf %355, %356 : vector<2x32xf32>
    %358 = arith.negf %357 : vector<2x32xf32>
    %359 = math.exp %358 : vector<2x32xf32>
    %cst_85 = arith.constant 1.000000e+00 : f32
    %360 = vector.broadcast %cst_85 : f32 to vector<2x32xf32>
    %361 = arith.addf %360, %359 : vector<2x32xf32>
    %362 = arith.divf %360, %361 : vector<2x32xf32>
    %363 = vector.extract_strided_slice %351 {offsets = [0, 32], sizes = [2, 32], strides = [1, 1]} : vector<2x96xf32> to vector<2x32xf32>
    %364 = vector.extract_strided_slice %354 {offsets = [0, 32], sizes = [2, 32], strides = [1, 1]} : vector<2x96xf32> to vector<2x32xf32>
    %365 = arith.addf %363, %364 : vector<2x32xf32>
    %366 = arith.negf %365 : vector<2x32xf32>
    %367 = math.exp %366 : vector<2x32xf32>
    %cst_86 = arith.constant 1.000000e+00 : f32
    %368 = vector.broadcast %cst_86 : f32 to vector<2x32xf32>
    %369 = arith.addf %368, %367 : vector<2x32xf32>
    %370 = arith.divf %368, %369 : vector<2x32xf32>
    %371 = vector.extract_strided_slice %351 {offsets = [0, 64], sizes = [2, 32], strides = [1, 1]} : vector<2x96xf32> to vector<2x32xf32>
    %372 = vector.extract_strided_slice %354 {offsets = [0, 64], sizes = [2, 32], strides = [1, 1]} : vector<2x96xf32> to vector<2x32xf32>
    %373 = arith.mulf %362, %372 : vector<2x32xf32>
    %374 = arith.addf %371, %373 : vector<2x32xf32>
    %375 = math.tanh %374 : vector<2x32xf32>
    %cst_87 = arith.constant 1.000000e+00 : f32
    %376 = vector.broadcast %cst_87 : f32 to vector<2x32xf32>
    %377 = arith.subf %376, %370 : vector<2x32xf32>
    %378 = arith.mulf %377, %375 : vector<2x32xf32>
    %379 = arith.mulf %370, %318 : vector<2x32xf32>
    %380 = arith.addf %378, %379 : vector<2x32xf32>
    %c6_88 = arith.constant 6 : index
    %c0_89 = arith.constant 0 : index
    %c0_90 = arith.constant 0 : index
    %381 = vector.load %arg1[%c6_88, %c0_89, %c0_90] : memref<8x2x96xf32, #tpu.memory_space<vmem>>, vector<1x2x96xf32>
    %382 = vector.shape_cast %381 : vector<1x2x96xf32> to vector<2x96xf32>
    %cst_91 = arith.constant dense<0.000000e+00> : vector<2x96xf32>
    %383 = tpu.matmul %349, %5, %cst_91 {dimension_numbers = #tpu.dot_dimension_numbers<[1], [0], [0], [1], [0, 0, 1, 1], [], []>} : vector<2x32xf32>, vector<32x96xf32>, vector<2x96xf32> -> vector<2x96xf32>
    %384 = vector.broadcast %7 : vector<1x96xf32> to vector<2x96xf32>
    %385 = arith.addf %383, %384 : vector<2x96xf32>
    %386 = vector.extract_strided_slice %382 {offsets = [0, 0], sizes = [2, 32], strides = [1, 1]} : vector<2x96xf32> to vector<2x32xf32>
    %387 = vector.extract_strided_slice %385 {offsets = [0, 0], sizes = [2, 32], strides = [1, 1]} : vector<2x96xf32> to vector<2x32xf32>
    %388 = arith.addf %386, %387 : vector<2x32xf32>
    %389 = arith.negf %388 : vector<2x32xf32>
    %390 = math.exp %389 : vector<2x32xf32>
    %cst_92 = arith.constant 1.000000e+00 : f32
    %391 = vector.broadcast %cst_92 : f32 to vector<2x32xf32>
    %392 = arith.addf %391, %390 : vector<2x32xf32>
    %393 = arith.divf %391, %392 : vector<2x32xf32>
    %394 = vector.extract_strided_slice %382 {offsets = [0, 32], sizes = [2, 32], strides = [1, 1]} : vector<2x96xf32> to vector<2x32xf32>
    %395 = vector.extract_strided_slice %385 {offsets = [0, 32], sizes = [2, 32], strides = [1, 1]} : vector<2x96xf32> to vector<2x32xf32>
    %396 = arith.addf %394, %395 : vector<2x32xf32>
    %397 = arith.negf %396 : vector<2x32xf32>
    %398 = math.exp %397 : vector<2x32xf32>
    %cst_93 = arith.constant 1.000000e+00 : f32
    %399 = vector.broadcast %cst_93 : f32 to vector<2x32xf32>
    %400 = arith.addf %399, %398 : vector<2x32xf32>
    %401 = arith.divf %399, %400 : vector<2x32xf32>
    %402 = vector.extract_strided_slice %382 {offsets = [0, 64], sizes = [2, 32], strides = [1, 1]} : vector<2x96xf32> to vector<2x32xf32>
    %403 = vector.extract_strided_slice %385 {offsets = [0, 64], sizes = [2, 32], strides = [1, 1]} : vector<2x96xf32> to vector<2x32xf32>
    %404 = arith.mulf %393, %403 : vector<2x32xf32>
    %405 = arith.addf %402, %404 : vector<2x32xf32>
    %406 = math.tanh %405 : vector<2x32xf32>
    %cst_94 = arith.constant 1.000000e+00 : f32
    %407 = vector.broadcast %cst_94 : f32 to vector<2x32xf32>
    %408 = arith.subf %407, %401 : vector<2x32xf32>
    %409 = arith.mulf %408, %406 : vector<2x32xf32>
    %410 = arith.mulf %401, %349 : vector<2x32xf32>
    %411 = arith.addf %409, %410 : vector<2x32xf32>
    %c1_95 = arith.constant 1 : index
    %c0_96 = arith.constant 0 : index
    %c0_97 = arith.constant 0 : index
    %412 = vector.load %arg2[%c1_95, %c0_96, %c0_97] : memref<8x2x96xf32, #tpu.memory_space<vmem>>, vector<1x2x96xf32>
    %413 = vector.shape_cast %412 : vector<1x2x96xf32> to vector<2x96xf32>
    %cst_98 = arith.constant dense<0.000000e+00> : vector<2x96xf32>
    %414 = tpu.matmul %380, %6, %cst_98 {dimension_numbers = #tpu.dot_dimension_numbers<[1], [0], [0], [1], [0, 0, 1, 1], [], []>} : vector<2x32xf32>, vector<32x96xf32>, vector<2x96xf32> -> vector<2x96xf32>
    %415 = vector.broadcast %8 : vector<1x96xf32> to vector<2x96xf32>
    %416 = arith.addf %414, %415 : vector<2x96xf32>
    %417 = vector.extract_strided_slice %413 {offsets = [0, 0], sizes = [2, 32], strides = [1, 1]} : vector<2x96xf32> to vector<2x32xf32>
    %418 = vector.extract_strided_slice %416 {offsets = [0, 0], sizes = [2, 32], strides = [1, 1]} : vector<2x96xf32> to vector<2x32xf32>
    %419 = arith.addf %417, %418 : vector<2x32xf32>
    %420 = arith.negf %419 : vector<2x32xf32>
    %421 = math.exp %420 : vector<2x32xf32>
    %cst_99 = arith.constant 1.000000e+00 : f32
    %422 = vector.broadcast %cst_99 : f32 to vector<2x32xf32>
    %423 = arith.addf %422, %421 : vector<2x32xf32>
    %424 = arith.divf %422, %423 : vector<2x32xf32>
    %425 = vector.extract_strided_slice %413 {offsets = [0, 32], sizes = [2, 32], strides = [1, 1]} : vector<2x96xf32> to vector<2x32xf32>
    %426 = vector.extract_strided_slice %416 {offsets = [0, 32], sizes = [2, 32], strides = [1, 1]} : vector<2x96xf32> to vector<2x32xf32>
    %427 = arith.addf %425, %426 : vector<2x32xf32>
    %428 = arith.negf %427 : vector<2x32xf32>
    %429 = math.exp %428 : vector<2x32xf32>
    %cst_100 = arith.constant 1.000000e+00 : f32
    %430 = vector.broadcast %cst_100 : f32 to vector<2x32xf32>
    %431 = arith.addf %430, %429 : vector<2x32xf32>
    %432 = arith.divf %430, %431 : vector<2x32xf32>
    %433 = vector.extract_strided_slice %413 {offsets = [0, 64], sizes = [2, 32], strides = [1, 1]} : vector<2x96xf32> to vector<2x32xf32>
    %434 = vector.extract_strided_slice %416 {offsets = [0, 64], sizes = [2, 32], strides = [1, 1]} : vector<2x96xf32> to vector<2x32xf32>
    %435 = arith.mulf %424, %434 : vector<2x32xf32>
    %436 = arith.addf %433, %435 : vector<2x32xf32>
    %437 = math.tanh %436 : vector<2x32xf32>
    %cst_101 = arith.constant 1.000000e+00 : f32
    %438 = vector.broadcast %cst_101 : f32 to vector<2x32xf32>
    %439 = arith.subf %438, %432 : vector<2x32xf32>
    %440 = arith.mulf %439, %437 : vector<2x32xf32>
    %441 = arith.mulf %432, %380 : vector<2x32xf32>
    %442 = arith.addf %440, %441 : vector<2x32xf32>
    %c7_102 = arith.constant 7 : index
    %c0_103 = arith.constant 0 : index
    %c0_104 = arith.constant 0 : index
    %443 = vector.load %arg1[%c7_102, %c0_103, %c0_104] : memref<8x2x96xf32, #tpu.memory_space<vmem>>, vector<1x2x96xf32>
    %444 = vector.shape_cast %443 : vector<1x2x96xf32> to vector<2x96xf32>
    %cst_105 = arith.constant dense<0.000000e+00> : vector<2x96xf32>
    %445 = tpu.matmul %411, %5, %cst_105 {dimension_numbers = #tpu.dot_dimension_numbers<[1], [0], [0], [1], [0, 0, 1, 1], [], []>} : vector<2x32xf32>, vector<32x96xf32>, vector<2x96xf32> -> vector<2x96xf32>
    %446 = vector.broadcast %7 : vector<1x96xf32> to vector<2x96xf32>
    %447 = arith.addf %445, %446 : vector<2x96xf32>
    %448 = vector.extract_strided_slice %444 {offsets = [0, 0], sizes = [2, 32], strides = [1, 1]} : vector<2x96xf32> to vector<2x32xf32>
    %449 = vector.extract_strided_slice %447 {offsets = [0, 0], sizes = [2, 32], strides = [1, 1]} : vector<2x96xf32> to vector<2x32xf32>
    %450 = arith.addf %448, %449 : vector<2x32xf32>
    %451 = arith.negf %450 : vector<2x32xf32>
    %452 = math.exp %451 : vector<2x32xf32>
    %cst_106 = arith.constant 1.000000e+00 : f32
    %453 = vector.broadcast %cst_106 : f32 to vector<2x32xf32>
    %454 = arith.addf %453, %452 : vector<2x32xf32>
    %455 = arith.divf %453, %454 : vector<2x32xf32>
    %456 = vector.extract_strided_slice %444 {offsets = [0, 32], sizes = [2, 32], strides = [1, 1]} : vector<2x96xf32> to vector<2x32xf32>
    %457 = vector.extract_strided_slice %447 {offsets = [0, 32], sizes = [2, 32], strides = [1, 1]} : vector<2x96xf32> to vector<2x32xf32>
    %458 = arith.addf %456, %457 : vector<2x32xf32>
    %459 = arith.negf %458 : vector<2x32xf32>
    %460 = math.exp %459 : vector<2x32xf32>
    %cst_107 = arith.constant 1.000000e+00 : f32
    %461 = vector.broadcast %cst_107 : f32 to vector<2x32xf32>
    %462 = arith.addf %461, %460 : vector<2x32xf32>
    %463 = arith.divf %461, %462 : vector<2x32xf32>
    %464 = vector.extract_strided_slice %444 {offsets = [0, 64], sizes = [2, 32], strides = [1, 1]} : vector<2x96xf32> to vector<2x32xf32>
    %465 = vector.extract_strided_slice %447 {offsets = [0, 64], sizes = [2, 32], strides = [1, 1]} : vector<2x96xf32> to vector<2x32xf32>
    %466 = arith.mulf %455, %465 : vector<2x32xf32>
    %467 = arith.addf %464, %466 : vector<2x32xf32>
    %468 = math.tanh %467 : vector<2x32xf32>
    %cst_108 = arith.constant 1.000000e+00 : f32
    %469 = vector.broadcast %cst_108 : f32 to vector<2x32xf32>
    %470 = arith.subf %469, %463 : vector<2x32xf32>
    %471 = arith.mulf %470, %468 : vector<2x32xf32>
    %472 = arith.mulf %463, %411 : vector<2x32xf32>
    %473 = arith.addf %471, %472 : vector<2x32xf32>
    %c0_109 = arith.constant 0 : index
    %c0_110 = arith.constant 0 : index
    %c0_111 = arith.constant 0 : index
    %474 = vector.load %arg2[%c0_109, %c0_110, %c0_111] : memref<8x2x96xf32, #tpu.memory_space<vmem>>, vector<1x2x96xf32>
    %475 = vector.shape_cast %474 : vector<1x2x96xf32> to vector<2x96xf32>
    %cst_112 = arith.constant dense<0.000000e+00> : vector<2x96xf32>
    %476 = tpu.matmul %442, %6, %cst_112 {dimension_numbers = #tpu.dot_dimension_numbers<[1], [0], [0], [1], [0, 0, 1, 1], [], []>} : vector<2x32xf32>, vector<32x96xf32>, vector<2x96xf32> -> vector<2x96xf32>
    %477 = vector.broadcast %8 : vector<1x96xf32> to vector<2x96xf32>
    %478 = arith.addf %476, %477 : vector<2x96xf32>
    %479 = vector.extract_strided_slice %475 {offsets = [0, 0], sizes = [2, 32], strides = [1, 1]} : vector<2x96xf32> to vector<2x32xf32>
    %480 = vector.extract_strided_slice %478 {offsets = [0, 0], sizes = [2, 32], strides = [1, 1]} : vector<2x96xf32> to vector<2x32xf32>
    %481 = arith.addf %479, %480 : vector<2x32xf32>
    %482 = arith.negf %481 : vector<2x32xf32>
    %483 = math.exp %482 : vector<2x32xf32>
    %cst_113 = arith.constant 1.000000e+00 : f32
    %484 = vector.broadcast %cst_113 : f32 to vector<2x32xf32>
    %485 = arith.addf %484, %483 : vector<2x32xf32>
    %486 = arith.divf %484, %485 : vector<2x32xf32>
    %487 = vector.extract_strided_slice %475 {offsets = [0, 32], sizes = [2, 32], strides = [1, 1]} : vector<2x96xf32> to vector<2x32xf32>
    %488 = vector.extract_strided_slice %478 {offsets = [0, 32], sizes = [2, 32], strides = [1, 1]} : vector<2x96xf32> to vector<2x32xf32>
    %489 = arith.addf %487, %488 : vector<2x32xf32>
    %490 = arith.negf %489 : vector<2x32xf32>
    %491 = math.exp %490 : vector<2x32xf32>
    %cst_114 = arith.constant 1.000000e+00 : f32
    %492 = vector.broadcast %cst_114 : f32 to vector<2x32xf32>
    %493 = arith.addf %492, %491 : vector<2x32xf32>
    %494 = arith.divf %492, %493 : vector<2x32xf32>
    %495 = vector.extract_strided_slice %475 {offsets = [0, 64], sizes = [2, 32], strides = [1, 1]} : vector<2x96xf32> to vector<2x32xf32>
    %496 = vector.extract_strided_slice %478 {offsets = [0, 64], sizes = [2, 32], strides = [1, 1]} : vector<2x96xf32> to vector<2x32xf32>
    %497 = arith.mulf %486, %496 : vector<2x32xf32>
    %498 = arith.addf %495, %497 : vector<2x32xf32>
    %499 = math.tanh %498 : vector<2x32xf32>
    %cst_115 = arith.constant 1.000000e+00 : f32
    %500 = vector.broadcast %cst_115 : f32 to vector<2x32xf32>
    %501 = arith.subf %500, %494 : vector<2x32xf32>
    %502 = arith.mulf %501, %499 : vector<2x32xf32>
    %503 = arith.mulf %494, %442 : vector<2x32xf32>
    %504 = arith.addf %502, %503 : vector<2x32xf32>
    %c0_116 = arith.constant 0 : index
    %c0_117 = arith.constant 0 : index
    %505 = vector.load %arg10[%c0_116, %c0_117] : memref<2x32xf32, #tpu.memory_space<vmem>>, vector<2x32xf32>
    tpu.vector_store %arg10[%c0_116, %c0_117], %473 {strides = array<i32>} : memref<2x32xf32, #tpu.memory_space<vmem>>, vector<2x32xf32>,
    %c0_118 = arith.constant 0 : index
    %c0_119 = arith.constant 0 : index
    %506 = vector.load %arg11[%c0_118, %c0_119] : memref<2x32xf32, #tpu.memory_space<vmem>>, vector<2x32xf32>
    tpu.vector_store %arg11[%c0_118, %c0_119], %504 {strides = array<i32>} : memref<2x32xf32, #tpu.memory_space<vmem>>, vector<2x32xf32>,
    %c0_i32_120 = arith.constant 0 : i32
    %507 = arith.cmpi eq, %arg0, %c0_i32_120 : i32
    %508 = arith.extui %507 : i1 to i32
    %c0_i32_121 = arith.constant 0 : i32
    %509 = arith.cmpi ne, %508, %c0_i32_121 : i32
    scf.if %509 {
      %510 = arith.addf %473, %504 : vector<2x32xf32>
      %c0_122 = arith.constant 0 : index
      %c0_123 = arith.constant 0 : index
      %511 = vector.load %arg7[%c0_122, %c0_123] : memref<32x32xf32, #tpu.memory_space<vmem>>, vector<32x32xf32>
      %cst_124 = arith.constant dense<0.000000e+00> : vector<2x32xf32>
      %512 = tpu.matmul %510, %511, %cst_124 {dimension_numbers = #tpu.dot_dimension_numbers<[1], [0], [0], [1], [0, 0, 1, 1], [], []>} : vector<2x32xf32>, vector<32x32xf32>, vector<2x32xf32> -> vector<2x32xf32>
      %c0_125 = arith.constant 0 : index
      %c0_126 = arith.constant 0 : index
      %513 = vector.load %arg8[%c0_125, %c0_126] : memref<1x32xf32, #tpu.memory_space<vmem>>, vector<1x32xf32>
      %514 = vector.broadcast %513 : vector<1x32xf32> to vector<2x32xf32>
      %515 = arith.addf %512, %514 : vector<2x32xf32>
      %c0_127 = arith.constant 0 : index
      %c0_128 = arith.constant 0 : index
      %516 = vector.load %arg9[%c0_127, %c0_128] : memref<2x32xf32, #tpu.memory_space<vmem>>, vector<2x32xf32>
      tpu.vector_store %arg9[%c0_127, %c0_128], %515 {strides = array<i32>} : memref<2x32xf32, #tpu.memory_space<vmem>>, vector<2x32xf32>,
    } else {
    }
    return
  }
  func.func @transform_0(%arg0: i32) -> (i32, i32, i32) {
    %c0_i32 = arith.constant 0 : i32
    %c0_i32_0 = arith.constant 0 : i32
    %c0_i32_1 = arith.constant 0 : i32
    return %arg0, %c0_i32, %c0_i32_0 : i32, i32, i32
  }
  func.func @transform_1(%arg0: i32) -> (i32, i32, i32) {
    %c0_i32 = arith.constant 0 : i32
    %0 = arith.subi %c0_i32, %arg0 : i32
    %c0_i32_0 = arith.constant 0 : i32
    %c0_i32_1 = arith.constant 0 : i32
    %c0_i32_2 = arith.constant 0 : i32
    return %0, %c0_i32_0, %c0_i32_1 : i32, i32, i32
  }
  func.func @transform_2(%arg0: i32) -> (i32, i32) {
    %c0_i32 = arith.constant 0 : i32
    %c0_i32_0 = arith.constant 0 : i32
    %c0_i32_1 = arith.constant 0 : i32
    return %c0_i32, %c0_i32_0 : i32, i32
  }
  func.func @transform_3(%arg0: i32) -> (i32, i32) {
    %c0_i32 = arith.constant 0 : i32
    %c0_i32_0 = arith.constant 0 : i32
    %c0_i32_1 = arith.constant 0 : i32
    return %c0_i32, %c0_i32_0 : i32, i32
  }
  func.func @transform_4(%arg0: i32) -> (i32, i32) {
    %c0_i32 = arith.constant 0 : i32
    %c0_i32_0 = arith.constant 0 : i32
    %c0_i32_1 = arith.constant 0 : i32
    return %c0_i32, %c0_i32_0 : i32, i32
  }
  func.func @transform_5(%arg0: i32) -> (i32, i32) {
    %c0_i32 = arith.constant 0 : i32
    %c0_i32_0 = arith.constant 0 : i32
    %c0_i32_1 = arith.constant 0 : i32
    return %c0_i32, %c0_i32_0 : i32, i32
  }
  func.func @transform_6(%arg0: i32) -> (i32, i32) {
    %c0_i32 = arith.constant 0 : i32
    %c0_i32_0 = arith.constant 0 : i32
    %c0_i32_1 = arith.constant 0 : i32
    return %c0_i32, %c0_i32_0 : i32, i32
  }
  func.func @transform_7(%arg0: i32) -> (i32, i32) {
    %c0_i32 = arith.constant 0 : i32
    %c0_i32_0 = arith.constant 0 : i32
    %c0_i32_1 = arith.constant 0 : i32
    return %c0_i32, %c0_i32_0 : i32, i32
  }
  func.func @transform_8(%arg0: i32) -> (i32, i32) {
    %c0_i32 = arith.constant 0 : i32
    %c0_i32_0 = arith.constant 0 : i32
    %c0_i32_1 = arith.constant 0 : i32
    return %c0_i32, %c0_i32_0 : i32, i32
  }
}

module attributes {stable_mosaic.version = 11 : i64} {
  func.func @kernel(%arg0: i32, %arg1: memref<8x2x96xf32, #tpu.memory_space<vmem>>, %arg2: memref<8x2x96xf32, #tpu.memory_space<vmem>>, %arg3: memref<32x96xf32, #tpu.memory_space<vmem>>, %arg4: memref<32x96xf32, #tpu.memory_space<vmem>>, %arg5: memref<1x96xf32, #tpu.memory_space<vmem>>, %arg6: memref<1x96xf32, #tpu.memory_space<vmem>>, %arg7: memref<8x2x32xf32, #tpu.memory_space<vmem>>, %arg8: memref<8x2x32xf32, #tpu.memory_space<vmem>>, %arg9: memref<2x32xf32, #tpu.memory_space<vmem>>, %arg10: memref<2x32xf32, #tpu.memory_space<vmem>>) attributes {dimension_semantics = [#tpu.dimension_semantics<arbitrary>], iteration_bounds = array<i64: 1>, scalar_prefetch = 0 : i64, scratch_operands = 2 : i64, tpu.core_type = #tpu.core_type<tc>, window_params = [{transform_indices = @transform_0, window_bounds = array<i64: 8, 2, 96>}, {transform_indices = @transform_1, window_bounds = array<i64: 8, 2, 96>}, {pipeline_mode = #tpu.pipeline_mode<synchronous>, transform_indices = @transform_2, window_bounds = array<i64: 32, 96>}, {pipeline_mode = #tpu.pipeline_mode<synchronous>, transform_indices = @transform_3, window_bounds = array<i64: 32, 96>}, {pipeline_mode = #tpu.pipeline_mode<synchronous>, transform_indices = @transform_4, window_bounds = array<i64: 1, 96>}, {pipeline_mode = #tpu.pipeline_mode<synchronous>, transform_indices = @transform_5, window_bounds = array<i64: 1, 96>}, {transform_indices = @transform_6, window_bounds = array<i64: 8, 2, 32>}, {transform_indices = @transform_7, window_bounds = array<i64: 8, 2, 32>}]} {
    %c0_i32 = arith.constant 0 : i32
    %0 = arith.cmpi eq, %arg0, %c0_i32 : i32
    %1 = arith.extui %0 : i1 to i32
    %c0_i32_0 = arith.constant 0 : i32
    %2 = arith.cmpi ne, %1, %c0_i32_0 : i32
    scf.if %2 {
      %cst_168 = arith.constant 0.000000e+00 : f32
      %555 = vector.broadcast %cst_168 : f32 to vector<2x32xf32>
      %c0_169 = arith.constant 0 : index
      %c0_170 = arith.constant 0 : index
      %556 = vector.load %arg9[%c0_169, %c0_170] : memref<2x32xf32, #tpu.memory_space<vmem>>, vector<2x32xf32>
      tpu.vector_store %arg9[%c0_169, %c0_170], %555 {strides = array<i32>} : memref<2x32xf32, #tpu.memory_space<vmem>>, vector<2x32xf32>,
      %cst_171 = arith.constant 0.000000e+00 : f32
      %557 = vector.broadcast %cst_171 : f32 to vector<2x32xf32>
      %c0_172 = arith.constant 0 : index
      %c0_173 = arith.constant 0 : index
      %558 = vector.load %arg10[%c0_172, %c0_173] : memref<2x32xf32, #tpu.memory_space<vmem>>, vector<2x32xf32>
      tpu.vector_store %arg10[%c0_172, %c0_173], %557 {strides = array<i32>} : memref<2x32xf32, #tpu.memory_space<vmem>>, vector<2x32xf32>,
    } else {
    }
    %c0 = arith.constant 0 : index
    %c0_1 = arith.constant 0 : index
    %3 = vector.load %arg9[%c0, %c0_1] : memref<2x32xf32, #tpu.memory_space<vmem>>, vector<2x32xf32>
    %c0_2 = arith.constant 0 : index
    %c0_3 = arith.constant 0 : index
    %4 = vector.load %arg10[%c0_2, %c0_3] : memref<2x32xf32, #tpu.memory_space<vmem>>, vector<2x32xf32>
    %c0_4 = arith.constant 0 : index
    %c0_5 = arith.constant 0 : index
    %5 = vector.load %arg3[%c0_4, %c0_5] : memref<32x96xf32, #tpu.memory_space<vmem>>, vector<32x96xf32>
    %c0_6 = arith.constant 0 : index
    %c0_7 = arith.constant 0 : index
    %6 = vector.load %arg4[%c0_6, %c0_7] : memref<32x96xf32, #tpu.memory_space<vmem>>, vector<32x96xf32>
    %c0_8 = arith.constant 0 : index
    %c0_9 = arith.constant 0 : index
    %7 = vector.load %arg5[%c0_8, %c0_9] : memref<1x96xf32, #tpu.memory_space<vmem>>, vector<1x96xf32>
    %c0_10 = arith.constant 0 : index
    %c0_11 = arith.constant 0 : index
    %8 = vector.load %arg6[%c0_10, %c0_11] : memref<1x96xf32, #tpu.memory_space<vmem>>, vector<1x96xf32>
    %c0_12 = arith.constant 0 : index
    %c0_13 = arith.constant 0 : index
    %c0_14 = arith.constant 0 : index
    %9 = vector.load %arg1[%c0_12, %c0_13, %c0_14] : memref<8x2x96xf32, #tpu.memory_space<vmem>>, vector<1x2x96xf32>
    %10 = vector.shape_cast %9 : vector<1x2x96xf32> to vector<2x96xf32>
    %cst = arith.constant dense<0.000000e+00> : vector<2x96xf32>
    %11 = tpu.matmul %3, %5, %cst {dimension_numbers = #tpu.dot_dimension_numbers<[1], [0], [0], [1], [0, 0, 1, 1], [], []>} : vector<2x32xf32>, vector<32x96xf32>, vector<2x96xf32> -> vector<2x96xf32>
    %12 = vector.broadcast %7 : vector<1x96xf32> to vector<2x96xf32>
    %13 = arith.addf %11, %12 : vector<2x96xf32>
    %14 = vector.extract_strided_slice %10 {offsets = [0, 0], sizes = [2, 32], strides = [1, 1]} : vector<2x96xf32> to vector<2x32xf32>
    %15 = vector.extract_strided_slice %13 {offsets = [0, 0], sizes = [2, 32], strides = [1, 1]} : vector<2x96xf32> to vector<2x32xf32>
    %16 = arith.addf %14, %15 : vector<2x32xf32>
    %17 = arith.negf %16 : vector<2x32xf32>
    %18 = math.exp %17 : vector<2x32xf32>
    %cst_15 = arith.constant 1.000000e+00 : f32
    %19 = vector.broadcast %cst_15 : f32 to vector<2x32xf32>
    %20 = arith.addf %19, %18 : vector<2x32xf32>
    %21 = arith.divf %19, %20 : vector<2x32xf32>
    %22 = vector.extract_strided_slice %10 {offsets = [0, 32], sizes = [2, 32], strides = [1, 1]} : vector<2x96xf32> to vector<2x32xf32>
    %23 = vector.extract_strided_slice %13 {offsets = [0, 32], sizes = [2, 32], strides = [1, 1]} : vector<2x96xf32> to vector<2x32xf32>
    %24 = arith.addf %22, %23 : vector<2x32xf32>
    %25 = arith.negf %24 : vector<2x32xf32>
    %26 = math.exp %25 : vector<2x32xf32>
    %cst_16 = arith.constant 1.000000e+00 : f32
    %27 = vector.broadcast %cst_16 : f32 to vector<2x32xf32>
    %28 = arith.addf %27, %26 : vector<2x32xf32>
    %29 = arith.divf %27, %28 : vector<2x32xf32>
    %30 = vector.extract_strided_slice %10 {offsets = [0, 64], sizes = [2, 32], strides = [1, 1]} : vector<2x96xf32> to vector<2x32xf32>
    %31 = vector.extract_strided_slice %13 {offsets = [0, 64], sizes = [2, 32], strides = [1, 1]} : vector<2x96xf32> to vector<2x32xf32>
    %32 = arith.mulf %21, %31 : vector<2x32xf32>
    %33 = arith.addf %30, %32 : vector<2x32xf32>
    %34 = math.tanh %33 : vector<2x32xf32>
    %cst_17 = arith.constant 1.000000e+00 : f32
    %35 = vector.broadcast %cst_17 : f32 to vector<2x32xf32>
    %36 = arith.subf %35, %29 : vector<2x32xf32>
    %37 = arith.mulf %36, %34 : vector<2x32xf32>
    %38 = arith.mulf %29, %3 : vector<2x32xf32>
    %39 = arith.addf %37, %38 : vector<2x32xf32>
    %c7 = arith.constant 7 : index
    %c0_18 = arith.constant 0 : index
    %c0_19 = arith.constant 0 : index
    %40 = vector.load %arg2[%c7, %c0_18, %c0_19] : memref<8x2x96xf32, #tpu.memory_space<vmem>>, vector<1x2x96xf32>
    %41 = vector.shape_cast %40 : vector<1x2x96xf32> to vector<2x96xf32>
    %cst_20 = arith.constant dense<0.000000e+00> : vector<2x96xf32>
    %42 = tpu.matmul %4, %6, %cst_20 {dimension_numbers = #tpu.dot_dimension_numbers<[1], [0], [0], [1], [0, 0, 1, 1], [], []>} : vector<2x32xf32>, vector<32x96xf32>, vector<2x96xf32> -> vector<2x96xf32>
    %43 = vector.broadcast %8 : vector<1x96xf32> to vector<2x96xf32>
    %44 = arith.addf %42, %43 : vector<2x96xf32>
    %45 = vector.extract_strided_slice %41 {offsets = [0, 0], sizes = [2, 32], strides = [1, 1]} : vector<2x96xf32> to vector<2x32xf32>
    %46 = vector.extract_strided_slice %44 {offsets = [0, 0], sizes = [2, 32], strides = [1, 1]} : vector<2x96xf32> to vector<2x32xf32>
    %47 = arith.addf %45, %46 : vector<2x32xf32>
    %48 = arith.negf %47 : vector<2x32xf32>
    %49 = math.exp %48 : vector<2x32xf32>
    %cst_21 = arith.constant 1.000000e+00 : f32
    %50 = vector.broadcast %cst_21 : f32 to vector<2x32xf32>
    %51 = arith.addf %50, %49 : vector<2x32xf32>
    %52 = arith.divf %50, %51 : vector<2x32xf32>
    %53 = vector.extract_strided_slice %41 {offsets = [0, 32], sizes = [2, 32], strides = [1, 1]} : vector<2x96xf32> to vector<2x32xf32>
    %54 = vector.extract_strided_slice %44 {offsets = [0, 32], sizes = [2, 32], strides = [1, 1]} : vector<2x96xf32> to vector<2x32xf32>
    %55 = arith.addf %53, %54 : vector<2x32xf32>
    %56 = arith.negf %55 : vector<2x32xf32>
    %57 = math.exp %56 : vector<2x32xf32>
    %cst_22 = arith.constant 1.000000e+00 : f32
    %58 = vector.broadcast %cst_22 : f32 to vector<2x32xf32>
    %59 = arith.addf %58, %57 : vector<2x32xf32>
    %60 = arith.divf %58, %59 : vector<2x32xf32>
    %61 = vector.extract_strided_slice %41 {offsets = [0, 64], sizes = [2, 32], strides = [1, 1]} : vector<2x96xf32> to vector<2x32xf32>
    %62 = vector.extract_strided_slice %44 {offsets = [0, 64], sizes = [2, 32], strides = [1, 1]} : vector<2x96xf32> to vector<2x32xf32>
    %63 = arith.mulf %52, %62 : vector<2x32xf32>
    %64 = arith.addf %61, %63 : vector<2x32xf32>
    %65 = math.tanh %64 : vector<2x32xf32>
    %cst_23 = arith.constant 1.000000e+00 : f32
    %66 = vector.broadcast %cst_23 : f32 to vector<2x32xf32>
    %67 = arith.subf %66, %60 : vector<2x32xf32>
    %68 = arith.mulf %67, %65 : vector<2x32xf32>
    %69 = arith.mulf %60, %4 : vector<2x32xf32>
    %70 = arith.addf %68, %69 : vector<2x32xf32>
    %c0_24 = arith.constant 0 : index
    %c0_25 = arith.constant 0 : index
    %c0_26 = arith.constant 0 : index
    %71 = vector.load %arg7[%c0_24, %c0_25, %c0_26] : memref<8x2x32xf32, #tpu.memory_space<vmem>>, vector<1x2x32xf32>
    %72 = vector.shape_cast %71 : vector<1x2x32xf32> to vector<2x32xf32>
    %73 = vector.shape_cast %39 : vector<2x32xf32> to vector<1x2x32xf32>
    tpu.vector_store %arg7[%c0_24, %c0_25, %c0_26], %73 {strides = array<i32>} : memref<8x2x32xf32, #tpu.memory_space<vmem>>, vector<1x2x32xf32>,
    %c7_27 = arith.constant 7 : index
    %c0_28 = arith.constant 0 : index
    %c0_29 = arith.constant 0 : index
    %74 = vector.load %arg8[%c7_27, %c0_28, %c0_29] : memref<8x2x32xf32, #tpu.memory_space<vmem>>, vector<1x2x32xf32>
    %75 = vector.shape_cast %74 : vector<1x2x32xf32> to vector<2x32xf32>
    %76 = vector.shape_cast %70 : vector<2x32xf32> to vector<1x2x32xf32>
    tpu.vector_store %arg8[%c7_27, %c0_28, %c0_29], %76 {strides = array<i32>} : memref<8x2x32xf32, #tpu.memory_space<vmem>>, vector<1x2x32xf32>,
    %c1 = arith.constant 1 : index
    %c0_30 = arith.constant 0 : index
    %c0_31 = arith.constant 0 : index
    %77 = vector.load %arg1[%c1, %c0_30, %c0_31] : memref<8x2x96xf32, #tpu.memory_space<vmem>>, vector<1x2x96xf32>
    %78 = vector.shape_cast %77 : vector<1x2x96xf32> to vector<2x96xf32>
    %cst_32 = arith.constant dense<0.000000e+00> : vector<2x96xf32>
    %79 = tpu.matmul %39, %5, %cst_32 {dimension_numbers = #tpu.dot_dimension_numbers<[1], [0], [0], [1], [0, 0, 1, 1], [], []>} : vector<2x32xf32>, vector<32x96xf32>, vector<2x96xf32> -> vector<2x96xf32>
    %80 = vector.broadcast %7 : vector<1x96xf32> to vector<2x96xf32>
    %81 = arith.addf %79, %80 : vector<2x96xf32>
    %82 = vector.extract_strided_slice %78 {offsets = [0, 0], sizes = [2, 32], strides = [1, 1]} : vector<2x96xf32> to vector<2x32xf32>
    %83 = vector.extract_strided_slice %81 {offsets = [0, 0], sizes = [2, 32], strides = [1, 1]} : vector<2x96xf32> to vector<2x32xf32>
    %84 = arith.addf %82, %83 : vector<2x32xf32>
    %85 = arith.negf %84 : vector<2x32xf32>
    %86 = math.exp %85 : vector<2x32xf32>
    %cst_33 = arith.constant 1.000000e+00 : f32
    %87 = vector.broadcast %cst_33 : f32 to vector<2x32xf32>
    %88 = arith.addf %87, %86 : vector<2x32xf32>
    %89 = arith.divf %87, %88 : vector<2x32xf32>
    %90 = vector.extract_strided_slice %78 {offsets = [0, 32], sizes = [2, 32], strides = [1, 1]} : vector<2x96xf32> to vector<2x32xf32>
    %91 = vector.extract_strided_slice %81 {offsets = [0, 32], sizes = [2, 32], strides = [1, 1]} : vector<2x96xf32> to vector<2x32xf32>
    %92 = arith.addf %90, %91 : vector<2x32xf32>
    %93 = arith.negf %92 : vector<2x32xf32>
    %94 = math.exp %93 : vector<2x32xf32>
    %cst_34 = arith.constant 1.000000e+00 : f32
    %95 = vector.broadcast %cst_34 : f32 to vector<2x32xf32>
    %96 = arith.addf %95, %94 : vector<2x32xf32>
    %97 = arith.divf %95, %96 : vector<2x32xf32>
    %98 = vector.extract_strided_slice %78 {offsets = [0, 64], sizes = [2, 32], strides = [1, 1]} : vector<2x96xf32> to vector<2x32xf32>
    %99 = vector.extract_strided_slice %81 {offsets = [0, 64], sizes = [2, 32], strides = [1, 1]} : vector<2x96xf32> to vector<2x32xf32>
    %100 = arith.mulf %89, %99 : vector<2x32xf32>
    %101 = arith.addf %98, %100 : vector<2x32xf32>
    %102 = math.tanh %101 : vector<2x32xf32>
    %cst_35 = arith.constant 1.000000e+00 : f32
    %103 = vector.broadcast %cst_35 : f32 to vector<2x32xf32>
    %104 = arith.subf %103, %97 : vector<2x32xf32>
    %105 = arith.mulf %104, %102 : vector<2x32xf32>
    %106 = arith.mulf %97, %39 : vector<2x32xf32>
    %107 = arith.addf %105, %106 : vector<2x32xf32>
    %c6 = arith.constant 6 : index
    %c0_36 = arith.constant 0 : index
    %c0_37 = arith.constant 0 : index
    %108 = vector.load %arg2[%c6, %c0_36, %c0_37] : memref<8x2x96xf32, #tpu.memory_space<vmem>>, vector<1x2x96xf32>
    %109 = vector.shape_cast %108 : vector<1x2x96xf32> to vector<2x96xf32>
    %cst_38 = arith.constant dense<0.000000e+00> : vector<2x96xf32>
    %110 = tpu.matmul %70, %6, %cst_38 {dimension_numbers = #tpu.dot_dimension_numbers<[1], [0], [0], [1], [0, 0, 1, 1], [], []>} : vector<2x32xf32>, vector<32x96xf32>, vector<2x96xf32> -> vector<2x96xf32>
    %111 = vector.broadcast %8 : vector<1x96xf32> to vector<2x96xf32>
    %112 = arith.addf %110, %111 : vector<2x96xf32>
    %113 = vector.extract_strided_slice %109 {offsets = [0, 0], sizes = [2, 32], strides = [1, 1]} : vector<2x96xf32> to vector<2x32xf32>
    %114 = vector.extract_strided_slice %112 {offsets = [0, 0], sizes = [2, 32], strides = [1, 1]} : vector<2x96xf32> to vector<2x32xf32>
    %115 = arith.addf %113, %114 : vector<2x32xf32>
    %116 = arith.negf %115 : vector<2x32xf32>
    %117 = math.exp %116 : vector<2x32xf32>
    %cst_39 = arith.constant 1.000000e+00 : f32
    %118 = vector.broadcast %cst_39 : f32 to vector<2x32xf32>
    %119 = arith.addf %118, %117 : vector<2x32xf32>
    %120 = arith.divf %118, %119 : vector<2x32xf32>
    %121 = vector.extract_strided_slice %109 {offsets = [0, 32], sizes = [2, 32], strides = [1, 1]} : vector<2x96xf32> to vector<2x32xf32>
    %122 = vector.extract_strided_slice %112 {offsets = [0, 32], sizes = [2, 32], strides = [1, 1]} : vector<2x96xf32> to vector<2x32xf32>
    %123 = arith.addf %121, %122 : vector<2x32xf32>
    %124 = arith.negf %123 : vector<2x32xf32>
    %125 = math.exp %124 : vector<2x32xf32>
    %cst_40 = arith.constant 1.000000e+00 : f32
    %126 = vector.broadcast %cst_40 : f32 to vector<2x32xf32>
    %127 = arith.addf %126, %125 : vector<2x32xf32>
    %128 = arith.divf %126, %127 : vector<2x32xf32>
    %129 = vector.extract_strided_slice %109 {offsets = [0, 64], sizes = [2, 32], strides = [1, 1]} : vector<2x96xf32> to vector<2x32xf32>
    %130 = vector.extract_strided_slice %112 {offsets = [0, 64], sizes = [2, 32], strides = [1, 1]} : vector<2x96xf32> to vector<2x32xf32>
    %131 = arith.mulf %120, %130 : vector<2x32xf32>
    %132 = arith.addf %129, %131 : vector<2x32xf32>
    %133 = math.tanh %132 : vector<2x32xf32>
    %cst_41 = arith.constant 1.000000e+00 : f32
    %134 = vector.broadcast %cst_41 : f32 to vector<2x32xf32>
    %135 = arith.subf %134, %128 : vector<2x32xf32>
    %136 = arith.mulf %135, %133 : vector<2x32xf32>
    %137 = arith.mulf %128, %70 : vector<2x32xf32>
    %138 = arith.addf %136, %137 : vector<2x32xf32>
    %c1_42 = arith.constant 1 : index
    %c0_43 = arith.constant 0 : index
    %c0_44 = arith.constant 0 : index
    %139 = vector.load %arg7[%c1_42, %c0_43, %c0_44] : memref<8x2x32xf32, #tpu.memory_space<vmem>>, vector<1x2x32xf32>
    %140 = vector.shape_cast %139 : vector<1x2x32xf32> to vector<2x32xf32>
    %141 = vector.shape_cast %107 : vector<2x32xf32> to vector<1x2x32xf32>
    tpu.vector_store %arg7[%c1_42, %c0_43, %c0_44], %141 {strides = array<i32>} : memref<8x2x32xf32, #tpu.memory_space<vmem>>, vector<1x2x32xf32>,
    %c6_45 = arith.constant 6 : index
    %c0_46 = arith.constant 0 : index
    %c0_47 = arith.constant 0 : index
    %142 = vector.load %arg8[%c6_45, %c0_46, %c0_47] : memref<8x2x32xf32, #tpu.memory_space<vmem>>, vector<1x2x32xf32>
    %143 = vector.shape_cast %142 : vector<1x2x32xf32> to vector<2x32xf32>
    %144 = vector.shape_cast %138 : vector<2x32xf32> to vector<1x2x32xf32>
    tpu.vector_store %arg8[%c6_45, %c0_46, %c0_47], %144 {strides = array<i32>} : memref<8x2x32xf32, #tpu.memory_space<vmem>>, vector<1x2x32xf32>,
    %c2 = arith.constant 2 : index
    %c0_48 = arith.constant 0 : index
    %c0_49 = arith.constant 0 : index
    %145 = vector.load %arg1[%c2, %c0_48, %c0_49] : memref<8x2x96xf32, #tpu.memory_space<vmem>>, vector<1x2x96xf32>
    %146 = vector.shape_cast %145 : vector<1x2x96xf32> to vector<2x96xf32>
    %cst_50 = arith.constant dense<0.000000e+00> : vector<2x96xf32>
    %147 = tpu.matmul %107, %5, %cst_50 {dimension_numbers = #tpu.dot_dimension_numbers<[1], [0], [0], [1], [0, 0, 1, 1], [], []>} : vector<2x32xf32>, vector<32x96xf32>, vector<2x96xf32> -> vector<2x96xf32>
    %148 = vector.broadcast %7 : vector<1x96xf32> to vector<2x96xf32>
    %149 = arith.addf %147, %148 : vector<2x96xf32>
    %150 = vector.extract_strided_slice %146 {offsets = [0, 0], sizes = [2, 32], strides = [1, 1]} : vector<2x96xf32> to vector<2x32xf32>
    %151 = vector.extract_strided_slice %149 {offsets = [0, 0], sizes = [2, 32], strides = [1, 1]} : vector<2x96xf32> to vector<2x32xf32>
    %152 = arith.addf %150, %151 : vector<2x32xf32>
    %153 = arith.negf %152 : vector<2x32xf32>
    %154 = math.exp %153 : vector<2x32xf32>
    %cst_51 = arith.constant 1.000000e+00 : f32
    %155 = vector.broadcast %cst_51 : f32 to vector<2x32xf32>
    %156 = arith.addf %155, %154 : vector<2x32xf32>
    %157 = arith.divf %155, %156 : vector<2x32xf32>
    %158 = vector.extract_strided_slice %146 {offsets = [0, 32], sizes = [2, 32], strides = [1, 1]} : vector<2x96xf32> to vector<2x32xf32>
    %159 = vector.extract_strided_slice %149 {offsets = [0, 32], sizes = [2, 32], strides = [1, 1]} : vector<2x96xf32> to vector<2x32xf32>
    %160 = arith.addf %158, %159 : vector<2x32xf32>
    %161 = arith.negf %160 : vector<2x32xf32>
    %162 = math.exp %161 : vector<2x32xf32>
    %cst_52 = arith.constant 1.000000e+00 : f32
    %163 = vector.broadcast %cst_52 : f32 to vector<2x32xf32>
    %164 = arith.addf %163, %162 : vector<2x32xf32>
    %165 = arith.divf %163, %164 : vector<2x32xf32>
    %166 = vector.extract_strided_slice %146 {offsets = [0, 64], sizes = [2, 32], strides = [1, 1]} : vector<2x96xf32> to vector<2x32xf32>
    %167 = vector.extract_strided_slice %149 {offsets = [0, 64], sizes = [2, 32], strides = [1, 1]} : vector<2x96xf32> to vector<2x32xf32>
    %168 = arith.mulf %157, %167 : vector<2x32xf32>
    %169 = arith.addf %166, %168 : vector<2x32xf32>
    %170 = math.tanh %169 : vector<2x32xf32>
    %cst_53 = arith.constant 1.000000e+00 : f32
    %171 = vector.broadcast %cst_53 : f32 to vector<2x32xf32>
    %172 = arith.subf %171, %165 : vector<2x32xf32>
    %173 = arith.mulf %172, %170 : vector<2x32xf32>
    %174 = arith.mulf %165, %107 : vector<2x32xf32>
    %175 = arith.addf %173, %174 : vector<2x32xf32>
    %c5 = arith.constant 5 : index
    %c0_54 = arith.constant 0 : index
    %c0_55 = arith.constant 0 : index
    %176 = vector.load %arg2[%c5, %c0_54, %c0_55] : memref<8x2x96xf32, #tpu.memory_space<vmem>>, vector<1x2x96xf32>
    %177 = vector.shape_cast %176 : vector<1x2x96xf32> to vector<2x96xf32>
    %cst_56 = arith.constant dense<0.000000e+00> : vector<2x96xf32>
    %178 = tpu.matmul %138, %6, %cst_56 {dimension_numbers = #tpu.dot_dimension_numbers<[1], [0], [0], [1], [0, 0, 1, 1], [], []>} : vector<2x32xf32>, vector<32x96xf32>, vector<2x96xf32> -> vector<2x96xf32>
    %179 = vector.broadcast %8 : vector<1x96xf32> to vector<2x96xf32>
    %180 = arith.addf %178, %179 : vector<2x96xf32>
    %181 = vector.extract_strided_slice %177 {offsets = [0, 0], sizes = [2, 32], strides = [1, 1]} : vector<2x96xf32> to vector<2x32xf32>
    %182 = vector.extract_strided_slice %180 {offsets = [0, 0], sizes = [2, 32], strides = [1, 1]} : vector<2x96xf32> to vector<2x32xf32>
    %183 = arith.addf %181, %182 : vector<2x32xf32>
    %184 = arith.negf %183 : vector<2x32xf32>
    %185 = math.exp %184 : vector<2x32xf32>
    %cst_57 = arith.constant 1.000000e+00 : f32
    %186 = vector.broadcast %cst_57 : f32 to vector<2x32xf32>
    %187 = arith.addf %186, %185 : vector<2x32xf32>
    %188 = arith.divf %186, %187 : vector<2x32xf32>
    %189 = vector.extract_strided_slice %177 {offsets = [0, 32], sizes = [2, 32], strides = [1, 1]} : vector<2x96xf32> to vector<2x32xf32>
    %190 = vector.extract_strided_slice %180 {offsets = [0, 32], sizes = [2, 32], strides = [1, 1]} : vector<2x96xf32> to vector<2x32xf32>
    %191 = arith.addf %189, %190 : vector<2x32xf32>
    %192 = arith.negf %191 : vector<2x32xf32>
    %193 = math.exp %192 : vector<2x32xf32>
    %cst_58 = arith.constant 1.000000e+00 : f32
    %194 = vector.broadcast %cst_58 : f32 to vector<2x32xf32>
    %195 = arith.addf %194, %193 : vector<2x32xf32>
    %196 = arith.divf %194, %195 : vector<2x32xf32>
    %197 = vector.extract_strided_slice %177 {offsets = [0, 64], sizes = [2, 32], strides = [1, 1]} : vector<2x96xf32> to vector<2x32xf32>
    %198 = vector.extract_strided_slice %180 {offsets = [0, 64], sizes = [2, 32], strides = [1, 1]} : vector<2x96xf32> to vector<2x32xf32>
    %199 = arith.mulf %188, %198 : vector<2x32xf32>
    %200 = arith.addf %197, %199 : vector<2x32xf32>
    %201 = math.tanh %200 : vector<2x32xf32>
    %cst_59 = arith.constant 1.000000e+00 : f32
    %202 = vector.broadcast %cst_59 : f32 to vector<2x32xf32>
    %203 = arith.subf %202, %196 : vector<2x32xf32>
    %204 = arith.mulf %203, %201 : vector<2x32xf32>
    %205 = arith.mulf %196, %138 : vector<2x32xf32>
    %206 = arith.addf %204, %205 : vector<2x32xf32>
    %c2_60 = arith.constant 2 : index
    %c0_61 = arith.constant 0 : index
    %c0_62 = arith.constant 0 : index
    %207 = vector.load %arg7[%c2_60, %c0_61, %c0_62] : memref<8x2x32xf32, #tpu.memory_space<vmem>>, vector<1x2x32xf32>
    %208 = vector.shape_cast %207 : vector<1x2x32xf32> to vector<2x32xf32>
    %209 = vector.shape_cast %175 : vector<2x32xf32> to vector<1x2x32xf32>
    tpu.vector_store %arg7[%c2_60, %c0_61, %c0_62], %209 {strides = array<i32>} : memref<8x2x32xf32, #tpu.memory_space<vmem>>, vector<1x2x32xf32>,
    %c5_63 = arith.constant 5 : index
    %c0_64 = arith.constant 0 : index
    %c0_65 = arith.constant 0 : index
    %210 = vector.load %arg8[%c5_63, %c0_64, %c0_65] : memref<8x2x32xf32, #tpu.memory_space<vmem>>, vector<1x2x32xf32>
    %211 = vector.shape_cast %210 : vector<1x2x32xf32> to vector<2x32xf32>
    %212 = vector.shape_cast %206 : vector<2x32xf32> to vector<1x2x32xf32>
    tpu.vector_store %arg8[%c5_63, %c0_64, %c0_65], %212 {strides = array<i32>} : memref<8x2x32xf32, #tpu.memory_space<vmem>>, vector<1x2x32xf32>,
    %c3 = arith.constant 3 : index
    %c0_66 = arith.constant 0 : index
    %c0_67 = arith.constant 0 : index
    %213 = vector.load %arg1[%c3, %c0_66, %c0_67] : memref<8x2x96xf32, #tpu.memory_space<vmem>>, vector<1x2x96xf32>
    %214 = vector.shape_cast %213 : vector<1x2x96xf32> to vector<2x96xf32>
    %cst_68 = arith.constant dense<0.000000e+00> : vector<2x96xf32>
    %215 = tpu.matmul %175, %5, %cst_68 {dimension_numbers = #tpu.dot_dimension_numbers<[1], [0], [0], [1], [0, 0, 1, 1], [], []>} : vector<2x32xf32>, vector<32x96xf32>, vector<2x96xf32> -> vector<2x96xf32>
    %216 = vector.broadcast %7 : vector<1x96xf32> to vector<2x96xf32>
    %217 = arith.addf %215, %216 : vector<2x96xf32>
    %218 = vector.extract_strided_slice %214 {offsets = [0, 0], sizes = [2, 32], strides = [1, 1]} : vector<2x96xf32> to vector<2x32xf32>
    %219 = vector.extract_strided_slice %217 {offsets = [0, 0], sizes = [2, 32], strides = [1, 1]} : vector<2x96xf32> to vector<2x32xf32>
    %220 = arith.addf %218, %219 : vector<2x32xf32>
    %221 = arith.negf %220 : vector<2x32xf32>
    %222 = math.exp %221 : vector<2x32xf32>
    %cst_69 = arith.constant 1.000000e+00 : f32
    %223 = vector.broadcast %cst_69 : f32 to vector<2x32xf32>
    %224 = arith.addf %223, %222 : vector<2x32xf32>
    %225 = arith.divf %223, %224 : vector<2x32xf32>
    %226 = vector.extract_strided_slice %214 {offsets = [0, 32], sizes = [2, 32], strides = [1, 1]} : vector<2x96xf32> to vector<2x32xf32>
    %227 = vector.extract_strided_slice %217 {offsets = [0, 32], sizes = [2, 32], strides = [1, 1]} : vector<2x96xf32> to vector<2x32xf32>
    %228 = arith.addf %226, %227 : vector<2x32xf32>
    %229 = arith.negf %228 : vector<2x32xf32>
    %230 = math.exp %229 : vector<2x32xf32>
    %cst_70 = arith.constant 1.000000e+00 : f32
    %231 = vector.broadcast %cst_70 : f32 to vector<2x32xf32>
    %232 = arith.addf %231, %230 : vector<2x32xf32>
    %233 = arith.divf %231, %232 : vector<2x32xf32>
    %234 = vector.extract_strided_slice %214 {offsets = [0, 64], sizes = [2, 32], strides = [1, 1]} : vector<2x96xf32> to vector<2x32xf32>
    %235 = vector.extract_strided_slice %217 {offsets = [0, 64], sizes = [2, 32], strides = [1, 1]} : vector<2x96xf32> to vector<2x32xf32>
    %236 = arith.mulf %225, %235 : vector<2x32xf32>
    %237 = arith.addf %234, %236 : vector<2x32xf32>
    %238 = math.tanh %237 : vector<2x32xf32>
    %cst_71 = arith.constant 1.000000e+00 : f32
    %239 = vector.broadcast %cst_71 : f32 to vector<2x32xf32>
    %240 = arith.subf %239, %233 : vector<2x32xf32>
    %241 = arith.mulf %240, %238 : vector<2x32xf32>
    %242 = arith.mulf %233, %175 : vector<2x32xf32>
    %243 = arith.addf %241, %242 : vector<2x32xf32>
    %c4 = arith.constant 4 : index
    %c0_72 = arith.constant 0 : index
    %c0_73 = arith.constant 0 : index
    %244 = vector.load %arg2[%c4, %c0_72, %c0_73] : memref<8x2x96xf32, #tpu.memory_space<vmem>>, vector<1x2x96xf32>
    %245 = vector.shape_cast %244 : vector<1x2x96xf32> to vector<2x96xf32>
    %cst_74 = arith.constant dense<0.000000e+00> : vector<2x96xf32>
    %246 = tpu.matmul %206, %6, %cst_74 {dimension_numbers = #tpu.dot_dimension_numbers<[1], [0], [0], [1], [0, 0, 1, 1], [], []>} : vector<2x32xf32>, vector<32x96xf32>, vector<2x96xf32> -> vector<2x96xf32>
    %247 = vector.broadcast %8 : vector<1x96xf32> to vector<2x96xf32>
    %248 = arith.addf %246, %247 : vector<2x96xf32>
    %249 = vector.extract_strided_slice %245 {offsets = [0, 0], sizes = [2, 32], strides = [1, 1]} : vector<2x96xf32> to vector<2x32xf32>
    %250 = vector.extract_strided_slice %248 {offsets = [0, 0], sizes = [2, 32], strides = [1, 1]} : vector<2x96xf32> to vector<2x32xf32>
    %251 = arith.addf %249, %250 : vector<2x32xf32>
    %252 = arith.negf %251 : vector<2x32xf32>
    %253 = math.exp %252 : vector<2x32xf32>
    %cst_75 = arith.constant 1.000000e+00 : f32
    %254 = vector.broadcast %cst_75 : f32 to vector<2x32xf32>
    %255 = arith.addf %254, %253 : vector<2x32xf32>
    %256 = arith.divf %254, %255 : vector<2x32xf32>
    %257 = vector.extract_strided_slice %245 {offsets = [0, 32], sizes = [2, 32], strides = [1, 1]} : vector<2x96xf32> to vector<2x32xf32>
    %258 = vector.extract_strided_slice %248 {offsets = [0, 32], sizes = [2, 32], strides = [1, 1]} : vector<2x96xf32> to vector<2x32xf32>
    %259 = arith.addf %257, %258 : vector<2x32xf32>
    %260 = arith.negf %259 : vector<2x32xf32>
    %261 = math.exp %260 : vector<2x32xf32>
    %cst_76 = arith.constant 1.000000e+00 : f32
    %262 = vector.broadcast %cst_76 : f32 to vector<2x32xf32>
    %263 = arith.addf %262, %261 : vector<2x32xf32>
    %264 = arith.divf %262, %263 : vector<2x32xf32>
    %265 = vector.extract_strided_slice %245 {offsets = [0, 64], sizes = [2, 32], strides = [1, 1]} : vector<2x96xf32> to vector<2x32xf32>
    %266 = vector.extract_strided_slice %248 {offsets = [0, 64], sizes = [2, 32], strides = [1, 1]} : vector<2x96xf32> to vector<2x32xf32>
    %267 = arith.mulf %256, %266 : vector<2x32xf32>
    %268 = arith.addf %265, %267 : vector<2x32xf32>
    %269 = math.tanh %268 : vector<2x32xf32>
    %cst_77 = arith.constant 1.000000e+00 : f32
    %270 = vector.broadcast %cst_77 : f32 to vector<2x32xf32>
    %271 = arith.subf %270, %264 : vector<2x32xf32>
    %272 = arith.mulf %271, %269 : vector<2x32xf32>
    %273 = arith.mulf %264, %206 : vector<2x32xf32>
    %274 = arith.addf %272, %273 : vector<2x32xf32>
    %c3_78 = arith.constant 3 : index
    %c0_79 = arith.constant 0 : index
    %c0_80 = arith.constant 0 : index
    %275 = vector.load %arg7[%c3_78, %c0_79, %c0_80] : memref<8x2x32xf32, #tpu.memory_space<vmem>>, vector<1x2x32xf32>
    %276 = vector.shape_cast %275 : vector<1x2x32xf32> to vector<2x32xf32>
    %277 = vector.shape_cast %243 : vector<2x32xf32> to vector<1x2x32xf32>
    tpu.vector_store %arg7[%c3_78, %c0_79, %c0_80], %277 {strides = array<i32>} : memref<8x2x32xf32, #tpu.memory_space<vmem>>, vector<1x2x32xf32>,
    %c4_81 = arith.constant 4 : index
    %c0_82 = arith.constant 0 : index
    %c0_83 = arith.constant 0 : index
    %278 = vector.load %arg8[%c4_81, %c0_82, %c0_83] : memref<8x2x32xf32, #tpu.memory_space<vmem>>, vector<1x2x32xf32>
    %279 = vector.shape_cast %278 : vector<1x2x32xf32> to vector<2x32xf32>
    %280 = vector.shape_cast %274 : vector<2x32xf32> to vector<1x2x32xf32>
    tpu.vector_store %arg8[%c4_81, %c0_82, %c0_83], %280 {strides = array<i32>} : memref<8x2x32xf32, #tpu.memory_space<vmem>>, vector<1x2x32xf32>,
    %c4_84 = arith.constant 4 : index
    %c0_85 = arith.constant 0 : index
    %c0_86 = arith.constant 0 : index
    %281 = vector.load %arg1[%c4_84, %c0_85, %c0_86] : memref<8x2x96xf32, #tpu.memory_space<vmem>>, vector<1x2x96xf32>
    %282 = vector.shape_cast %281 : vector<1x2x96xf32> to vector<2x96xf32>
    %cst_87 = arith.constant dense<0.000000e+00> : vector<2x96xf32>
    %283 = tpu.matmul %243, %5, %cst_87 {dimension_numbers = #tpu.dot_dimension_numbers<[1], [0], [0], [1], [0, 0, 1, 1], [], []>} : vector<2x32xf32>, vector<32x96xf32>, vector<2x96xf32> -> vector<2x96xf32>
    %284 = vector.broadcast %7 : vector<1x96xf32> to vector<2x96xf32>
    %285 = arith.addf %283, %284 : vector<2x96xf32>
    %286 = vector.extract_strided_slice %282 {offsets = [0, 0], sizes = [2, 32], strides = [1, 1]} : vector<2x96xf32> to vector<2x32xf32>
    %287 = vector.extract_strided_slice %285 {offsets = [0, 0], sizes = [2, 32], strides = [1, 1]} : vector<2x96xf32> to vector<2x32xf32>
    %288 = arith.addf %286, %287 : vector<2x32xf32>
    %289 = arith.negf %288 : vector<2x32xf32>
    %290 = math.exp %289 : vector<2x32xf32>
    %cst_88 = arith.constant 1.000000e+00 : f32
    %291 = vector.broadcast %cst_88 : f32 to vector<2x32xf32>
    %292 = arith.addf %291, %290 : vector<2x32xf32>
    %293 = arith.divf %291, %292 : vector<2x32xf32>
    %294 = vector.extract_strided_slice %282 {offsets = [0, 32], sizes = [2, 32], strides = [1, 1]} : vector<2x96xf32> to vector<2x32xf32>
    %295 = vector.extract_strided_slice %285 {offsets = [0, 32], sizes = [2, 32], strides = [1, 1]} : vector<2x96xf32> to vector<2x32xf32>
    %296 = arith.addf %294, %295 : vector<2x32xf32>
    %297 = arith.negf %296 : vector<2x32xf32>
    %298 = math.exp %297 : vector<2x32xf32>
    %cst_89 = arith.constant 1.000000e+00 : f32
    %299 = vector.broadcast %cst_89 : f32 to vector<2x32xf32>
    %300 = arith.addf %299, %298 : vector<2x32xf32>
    %301 = arith.divf %299, %300 : vector<2x32xf32>
    %302 = vector.extract_strided_slice %282 {offsets = [0, 64], sizes = [2, 32], strides = [1, 1]} : vector<2x96xf32> to vector<2x32xf32>
    %303 = vector.extract_strided_slice %285 {offsets = [0, 64], sizes = [2, 32], strides = [1, 1]} : vector<2x96xf32> to vector<2x32xf32>
    %304 = arith.mulf %293, %303 : vector<2x32xf32>
    %305 = arith.addf %302, %304 : vector<2x32xf32>
    %306 = math.tanh %305 : vector<2x32xf32>
    %cst_90 = arith.constant 1.000000e+00 : f32
    %307 = vector.broadcast %cst_90 : f32 to vector<2x32xf32>
    %308 = arith.subf %307, %301 : vector<2x32xf32>
    %309 = arith.mulf %308, %306 : vector<2x32xf32>
    %310 = arith.mulf %301, %243 : vector<2x32xf32>
    %311 = arith.addf %309, %310 : vector<2x32xf32>
    %c3_91 = arith.constant 3 : index
    %c0_92 = arith.constant 0 : index
    %c0_93 = arith.constant 0 : index
    %312 = vector.load %arg2[%c3_91, %c0_92, %c0_93] : memref<8x2x96xf32, #tpu.memory_space<vmem>>, vector<1x2x96xf32>
    %313 = vector.shape_cast %312 : vector<1x2x96xf32> to vector<2x96xf32>
    %cst_94 = arith.constant dense<0.000000e+00> : vector<2x96xf32>
    %314 = tpu.matmul %274, %6, %cst_94 {dimension_numbers = #tpu.dot_dimension_numbers<[1], [0], [0], [1], [0, 0, 1, 1], [], []>} : vector<2x32xf32>, vector<32x96xf32>, vector<2x96xf32> -> vector<2x96xf32>
    %315 = vector.broadcast %8 : vector<1x96xf32> to vector<2x96xf32>
    %316 = arith.addf %314, %315 : vector<2x96xf32>
    %317 = vector.extract_strided_slice %313 {offsets = [0, 0], sizes = [2, 32], strides = [1, 1]} : vector<2x96xf32> to vector<2x32xf32>
    %318 = vector.extract_strided_slice %316 {offsets = [0, 0], sizes = [2, 32], strides = [1, 1]} : vector<2x96xf32> to vector<2x32xf32>
    %319 = arith.addf %317, %318 : vector<2x32xf32>
    %320 = arith.negf %319 : vector<2x32xf32>
    %321 = math.exp %320 : vector<2x32xf32>
    %cst_95 = arith.constant 1.000000e+00 : f32
    %322 = vector.broadcast %cst_95 : f32 to vector<2x32xf32>
    %323 = arith.addf %322, %321 : vector<2x32xf32>
    %324 = arith.divf %322, %323 : vector<2x32xf32>
    %325 = vector.extract_strided_slice %313 {offsets = [0, 32], sizes = [2, 32], strides = [1, 1]} : vector<2x96xf32> to vector<2x32xf32>
    %326 = vector.extract_strided_slice %316 {offsets = [0, 32], sizes = [2, 32], strides = [1, 1]} : vector<2x96xf32> to vector<2x32xf32>
    %327 = arith.addf %325, %326 : vector<2x32xf32>
    %328 = arith.negf %327 : vector<2x32xf32>
    %329 = math.exp %328 : vector<2x32xf32>
    %cst_96 = arith.constant 1.000000e+00 : f32
    %330 = vector.broadcast %cst_96 : f32 to vector<2x32xf32>
    %331 = arith.addf %330, %329 : vector<2x32xf32>
    %332 = arith.divf %330, %331 : vector<2x32xf32>
    %333 = vector.extract_strided_slice %313 {offsets = [0, 64], sizes = [2, 32], strides = [1, 1]} : vector<2x96xf32> to vector<2x32xf32>
    %334 = vector.extract_strided_slice %316 {offsets = [0, 64], sizes = [2, 32], strides = [1, 1]} : vector<2x96xf32> to vector<2x32xf32>
    %335 = arith.mulf %324, %334 : vector<2x32xf32>
    %336 = arith.addf %333, %335 : vector<2x32xf32>
    %337 = math.tanh %336 : vector<2x32xf32>
    %cst_97 = arith.constant 1.000000e+00 : f32
    %338 = vector.broadcast %cst_97 : f32 to vector<2x32xf32>
    %339 = arith.subf %338, %332 : vector<2x32xf32>
    %340 = arith.mulf %339, %337 : vector<2x32xf32>
    %341 = arith.mulf %332, %274 : vector<2x32xf32>
    %342 = arith.addf %340, %341 : vector<2x32xf32>
    %c4_98 = arith.constant 4 : index
    %c0_99 = arith.constant 0 : index
    %c0_100 = arith.constant 0 : index
    %343 = vector.load %arg7[%c4_98, %c0_99, %c0_100] : memref<8x2x32xf32, #tpu.memory_space<vmem>>, vector<1x2x32xf32>
    %344 = vector.shape_cast %343 : vector<1x2x32xf32> to vector<2x32xf32>
    %345 = vector.shape_cast %311 : vector<2x32xf32> to vector<1x2x32xf32>
    tpu.vector_store %arg7[%c4_98, %c0_99, %c0_100], %345 {strides = array<i32>} : memref<8x2x32xf32, #tpu.memory_space<vmem>>, vector<1x2x32xf32>,
    %c3_101 = arith.constant 3 : index
    %c0_102 = arith.constant 0 : index
    %c0_103 = arith.constant 0 : index
    %346 = vector.load %arg8[%c3_101, %c0_102, %c0_103] : memref<8x2x32xf32, #tpu.memory_space<vmem>>, vector<1x2x32xf32>
    %347 = vector.shape_cast %346 : vector<1x2x32xf32> to vector<2x32xf32>
    %348 = vector.shape_cast %342 : vector<2x32xf32> to vector<1x2x32xf32>
    tpu.vector_store %arg8[%c3_101, %c0_102, %c0_103], %348 {strides = array<i32>} : memref<8x2x32xf32, #tpu.memory_space<vmem>>, vector<1x2x32xf32>,
    %c5_104 = arith.constant 5 : index
    %c0_105 = arith.constant 0 : index
    %c0_106 = arith.constant 0 : index
    %349 = vector.load %arg1[%c5_104, %c0_105, %c0_106] : memref<8x2x96xf32, #tpu.memory_space<vmem>>, vector<1x2x96xf32>
    %350 = vector.shape_cast %349 : vector<1x2x96xf32> to vector<2x96xf32>
    %cst_107 = arith.constant dense<0.000000e+00> : vector<2x96xf32>
    %351 = tpu.matmul %311, %5, %cst_107 {dimension_numbers = #tpu.dot_dimension_numbers<[1], [0], [0], [1], [0, 0, 1, 1], [], []>} : vector<2x32xf32>, vector<32x96xf32>, vector<2x96xf32> -> vector<2x96xf32>
    %352 = vector.broadcast %7 : vector<1x96xf32> to vector<2x96xf32>
    %353 = arith.addf %351, %352 : vector<2x96xf32>
    %354 = vector.extract_strided_slice %350 {offsets = [0, 0], sizes = [2, 32], strides = [1, 1]} : vector<2x96xf32> to vector<2x32xf32>
    %355 = vector.extract_strided_slice %353 {offsets = [0, 0], sizes = [2, 32], strides = [1, 1]} : vector<2x96xf32> to vector<2x32xf32>
    %356 = arith.addf %354, %355 : vector<2x32xf32>
    %357 = arith.negf %356 : vector<2x32xf32>
    %358 = math.exp %357 : vector<2x32xf32>
    %cst_108 = arith.constant 1.000000e+00 : f32
    %359 = vector.broadcast %cst_108 : f32 to vector<2x32xf32>
    %360 = arith.addf %359, %358 : vector<2x32xf32>
    %361 = arith.divf %359, %360 : vector<2x32xf32>
    %362 = vector.extract_strided_slice %350 {offsets = [0, 32], sizes = [2, 32], strides = [1, 1]} : vector<2x96xf32> to vector<2x32xf32>
    %363 = vector.extract_strided_slice %353 {offsets = [0, 32], sizes = [2, 32], strides = [1, 1]} : vector<2x96xf32> to vector<2x32xf32>
    %364 = arith.addf %362, %363 : vector<2x32xf32>
    %365 = arith.negf %364 : vector<2x32xf32>
    %366 = math.exp %365 : vector<2x32xf32>
    %cst_109 = arith.constant 1.000000e+00 : f32
    %367 = vector.broadcast %cst_109 : f32 to vector<2x32xf32>
    %368 = arith.addf %367, %366 : vector<2x32xf32>
    %369 = arith.divf %367, %368 : vector<2x32xf32>
    %370 = vector.extract_strided_slice %350 {offsets = [0, 64], sizes = [2, 32], strides = [1, 1]} : vector<2x96xf32> to vector<2x32xf32>
    %371 = vector.extract_strided_slice %353 {offsets = [0, 64], sizes = [2, 32], strides = [1, 1]} : vector<2x96xf32> to vector<2x32xf32>
    %372 = arith.mulf %361, %371 : vector<2x32xf32>
    %373 = arith.addf %370, %372 : vector<2x32xf32>
    %374 = math.tanh %373 : vector<2x32xf32>
    %cst_110 = arith.constant 1.000000e+00 : f32
    %375 = vector.broadcast %cst_110 : f32 to vector<2x32xf32>
    %376 = arith.subf %375, %369 : vector<2x32xf32>
    %377 = arith.mulf %376, %374 : vector<2x32xf32>
    %378 = arith.mulf %369, %311 : vector<2x32xf32>
    %379 = arith.addf %377, %378 : vector<2x32xf32>
    %c2_111 = arith.constant 2 : index
    %c0_112 = arith.constant 0 : index
    %c0_113 = arith.constant 0 : index
    %380 = vector.load %arg2[%c2_111, %c0_112, %c0_113] : memref<8x2x96xf32, #tpu.memory_space<vmem>>, vector<1x2x96xf32>
    %381 = vector.shape_cast %380 : vector<1x2x96xf32> to vector<2x96xf32>
    %cst_114 = arith.constant dense<0.000000e+00> : vector<2x96xf32>
    %382 = tpu.matmul %342, %6, %cst_114 {dimension_numbers = #tpu.dot_dimension_numbers<[1], [0], [0], [1], [0, 0, 1, 1], [], []>} : vector<2x32xf32>, vector<32x96xf32>, vector<2x96xf32> -> vector<2x96xf32>
    %383 = vector.broadcast %8 : vector<1x96xf32> to vector<2x96xf32>
    %384 = arith.addf %382, %383 : vector<2x96xf32>
    %385 = vector.extract_strided_slice %381 {offsets = [0, 0], sizes = [2, 32], strides = [1, 1]} : vector<2x96xf32> to vector<2x32xf32>
    %386 = vector.extract_strided_slice %384 {offsets = [0, 0], sizes = [2, 32], strides = [1, 1]} : vector<2x96xf32> to vector<2x32xf32>
    %387 = arith.addf %385, %386 : vector<2x32xf32>
    %388 = arith.negf %387 : vector<2x32xf32>
    %389 = math.exp %388 : vector<2x32xf32>
    %cst_115 = arith.constant 1.000000e+00 : f32
    %390 = vector.broadcast %cst_115 : f32 to vector<2x32xf32>
    %391 = arith.addf %390, %389 : vector<2x32xf32>
    %392 = arith.divf %390, %391 : vector<2x32xf32>
    %393 = vector.extract_strided_slice %381 {offsets = [0, 32], sizes = [2, 32], strides = [1, 1]} : vector<2x96xf32> to vector<2x32xf32>
    %394 = vector.extract_strided_slice %384 {offsets = [0, 32], sizes = [2, 32], strides = [1, 1]} : vector<2x96xf32> to vector<2x32xf32>
    %395 = arith.addf %393, %394 : vector<2x32xf32>
    %396 = arith.negf %395 : vector<2x32xf32>
    %397 = math.exp %396 : vector<2x32xf32>
    %cst_116 = arith.constant 1.000000e+00 : f32
    %398 = vector.broadcast %cst_116 : f32 to vector<2x32xf32>
    %399 = arith.addf %398, %397 : vector<2x32xf32>
    %400 = arith.divf %398, %399 : vector<2x32xf32>
    %401 = vector.extract_strided_slice %381 {offsets = [0, 64], sizes = [2, 32], strides = [1, 1]} : vector<2x96xf32> to vector<2x32xf32>
    %402 = vector.extract_strided_slice %384 {offsets = [0, 64], sizes = [2, 32], strides = [1, 1]} : vector<2x96xf32> to vector<2x32xf32>
    %403 = arith.mulf %392, %402 : vector<2x32xf32>
    %404 = arith.addf %401, %403 : vector<2x32xf32>
    %405 = math.tanh %404 : vector<2x32xf32>
    %cst_117 = arith.constant 1.000000e+00 : f32
    %406 = vector.broadcast %cst_117 : f32 to vector<2x32xf32>
    %407 = arith.subf %406, %400 : vector<2x32xf32>
    %408 = arith.mulf %407, %405 : vector<2x32xf32>
    %409 = arith.mulf %400, %342 : vector<2x32xf32>
    %410 = arith.addf %408, %409 : vector<2x32xf32>
    %c5_118 = arith.constant 5 : index
    %c0_119 = arith.constant 0 : index
    %c0_120 = arith.constant 0 : index
    %411 = vector.load %arg7[%c5_118, %c0_119, %c0_120] : memref<8x2x32xf32, #tpu.memory_space<vmem>>, vector<1x2x32xf32>
    %412 = vector.shape_cast %411 : vector<1x2x32xf32> to vector<2x32xf32>
    %413 = vector.shape_cast %379 : vector<2x32xf32> to vector<1x2x32xf32>
    tpu.vector_store %arg7[%c5_118, %c0_119, %c0_120], %413 {strides = array<i32>} : memref<8x2x32xf32, #tpu.memory_space<vmem>>, vector<1x2x32xf32>,
    %c2_121 = arith.constant 2 : index
    %c0_122 = arith.constant 0 : index
    %c0_123 = arith.constant 0 : index
    %414 = vector.load %arg8[%c2_121, %c0_122, %c0_123] : memref<8x2x32xf32, #tpu.memory_space<vmem>>, vector<1x2x32xf32>
    %415 = vector.shape_cast %414 : vector<1x2x32xf32> to vector<2x32xf32>
    %416 = vector.shape_cast %410 : vector<2x32xf32> to vector<1x2x32xf32>
    tpu.vector_store %arg8[%c2_121, %c0_122, %c0_123], %416 {strides = array<i32>} : memref<8x2x32xf32, #tpu.memory_space<vmem>>, vector<1x2x32xf32>,
    %c6_124 = arith.constant 6 : index
    %c0_125 = arith.constant 0 : index
    %c0_126 = arith.constant 0 : index
    %417 = vector.load %arg1[%c6_124, %c0_125, %c0_126] : memref<8x2x96xf32, #tpu.memory_space<vmem>>, vector<1x2x96xf32>
    %418 = vector.shape_cast %417 : vector<1x2x96xf32> to vector<2x96xf32>
    %cst_127 = arith.constant dense<0.000000e+00> : vector<2x96xf32>
    %419 = tpu.matmul %379, %5, %cst_127 {dimension_numbers = #tpu.dot_dimension_numbers<[1], [0], [0], [1], [0, 0, 1, 1], [], []>} : vector<2x32xf32>, vector<32x96xf32>, vector<2x96xf32> -> vector<2x96xf32>
    %420 = vector.broadcast %7 : vector<1x96xf32> to vector<2x96xf32>
    %421 = arith.addf %419, %420 : vector<2x96xf32>
    %422 = vector.extract_strided_slice %418 {offsets = [0, 0], sizes = [2, 32], strides = [1, 1]} : vector<2x96xf32> to vector<2x32xf32>
    %423 = vector.extract_strided_slice %421 {offsets = [0, 0], sizes = [2, 32], strides = [1, 1]} : vector<2x96xf32> to vector<2x32xf32>
    %424 = arith.addf %422, %423 : vector<2x32xf32>
    %425 = arith.negf %424 : vector<2x32xf32>
    %426 = math.exp %425 : vector<2x32xf32>
    %cst_128 = arith.constant 1.000000e+00 : f32
    %427 = vector.broadcast %cst_128 : f32 to vector<2x32xf32>
    %428 = arith.addf %427, %426 : vector<2x32xf32>
    %429 = arith.divf %427, %428 : vector<2x32xf32>
    %430 = vector.extract_strided_slice %418 {offsets = [0, 32], sizes = [2, 32], strides = [1, 1]} : vector<2x96xf32> to vector<2x32xf32>
    %431 = vector.extract_strided_slice %421 {offsets = [0, 32], sizes = [2, 32], strides = [1, 1]} : vector<2x96xf32> to vector<2x32xf32>
    %432 = arith.addf %430, %431 : vector<2x32xf32>
    %433 = arith.negf %432 : vector<2x32xf32>
    %434 = math.exp %433 : vector<2x32xf32>
    %cst_129 = arith.constant 1.000000e+00 : f32
    %435 = vector.broadcast %cst_129 : f32 to vector<2x32xf32>
    %436 = arith.addf %435, %434 : vector<2x32xf32>
    %437 = arith.divf %435, %436 : vector<2x32xf32>
    %438 = vector.extract_strided_slice %418 {offsets = [0, 64], sizes = [2, 32], strides = [1, 1]} : vector<2x96xf32> to vector<2x32xf32>
    %439 = vector.extract_strided_slice %421 {offsets = [0, 64], sizes = [2, 32], strides = [1, 1]} : vector<2x96xf32> to vector<2x32xf32>
    %440 = arith.mulf %429, %439 : vector<2x32xf32>
    %441 = arith.addf %438, %440 : vector<2x32xf32>
    %442 = math.tanh %441 : vector<2x32xf32>
    %cst_130 = arith.constant 1.000000e+00 : f32
    %443 = vector.broadcast %cst_130 : f32 to vector<2x32xf32>
    %444 = arith.subf %443, %437 : vector<2x32xf32>
    %445 = arith.mulf %444, %442 : vector<2x32xf32>
    %446 = arith.mulf %437, %379 : vector<2x32xf32>
    %447 = arith.addf %445, %446 : vector<2x32xf32>
    %c1_131 = arith.constant 1 : index
    %c0_132 = arith.constant 0 : index
    %c0_133 = arith.constant 0 : index
    %448 = vector.load %arg2[%c1_131, %c0_132, %c0_133] : memref<8x2x96xf32, #tpu.memory_space<vmem>>, vector<1x2x96xf32>
    %449 = vector.shape_cast %448 : vector<1x2x96xf32> to vector<2x96xf32>
    %cst_134 = arith.constant dense<0.000000e+00> : vector<2x96xf32>
    %450 = tpu.matmul %410, %6, %cst_134 {dimension_numbers = #tpu.dot_dimension_numbers<[1], [0], [0], [1], [0, 0, 1, 1], [], []>} : vector<2x32xf32>, vector<32x96xf32>, vector<2x96xf32> -> vector<2x96xf32>
    %451 = vector.broadcast %8 : vector<1x96xf32> to vector<2x96xf32>
    %452 = arith.addf %450, %451 : vector<2x96xf32>
    %453 = vector.extract_strided_slice %449 {offsets = [0, 0], sizes = [2, 32], strides = [1, 1]} : vector<2x96xf32> to vector<2x32xf32>
    %454 = vector.extract_strided_slice %452 {offsets = [0, 0], sizes = [2, 32], strides = [1, 1]} : vector<2x96xf32> to vector<2x32xf32>
    %455 = arith.addf %453, %454 : vector<2x32xf32>
    %456 = arith.negf %455 : vector<2x32xf32>
    %457 = math.exp %456 : vector<2x32xf32>
    %cst_135 = arith.constant 1.000000e+00 : f32
    %458 = vector.broadcast %cst_135 : f32 to vector<2x32xf32>
    %459 = arith.addf %458, %457 : vector<2x32xf32>
    %460 = arith.divf %458, %459 : vector<2x32xf32>
    %461 = vector.extract_strided_slice %449 {offsets = [0, 32], sizes = [2, 32], strides = [1, 1]} : vector<2x96xf32> to vector<2x32xf32>
    %462 = vector.extract_strided_slice %452 {offsets = [0, 32], sizes = [2, 32], strides = [1, 1]} : vector<2x96xf32> to vector<2x32xf32>
    %463 = arith.addf %461, %462 : vector<2x32xf32>
    %464 = arith.negf %463 : vector<2x32xf32>
    %465 = math.exp %464 : vector<2x32xf32>
    %cst_136 = arith.constant 1.000000e+00 : f32
    %466 = vector.broadcast %cst_136 : f32 to vector<2x32xf32>
    %467 = arith.addf %466, %465 : vector<2x32xf32>
    %468 = arith.divf %466, %467 : vector<2x32xf32>
    %469 = vector.extract_strided_slice %449 {offsets = [0, 64], sizes = [2, 32], strides = [1, 1]} : vector<2x96xf32> to vector<2x32xf32>
    %470 = vector.extract_strided_slice %452 {offsets = [0, 64], sizes = [2, 32], strides = [1, 1]} : vector<2x96xf32> to vector<2x32xf32>
    %471 = arith.mulf %460, %470 : vector<2x32xf32>
    %472 = arith.addf %469, %471 : vector<2x32xf32>
    %473 = math.tanh %472 : vector<2x32xf32>
    %cst_137 = arith.constant 1.000000e+00 : f32
    %474 = vector.broadcast %cst_137 : f32 to vector<2x32xf32>
    %475 = arith.subf %474, %468 : vector<2x32xf32>
    %476 = arith.mulf %475, %473 : vector<2x32xf32>
    %477 = arith.mulf %468, %410 : vector<2x32xf32>
    %478 = arith.addf %476, %477 : vector<2x32xf32>
    %c6_138 = arith.constant 6 : index
    %c0_139 = arith.constant 0 : index
    %c0_140 = arith.constant 0 : index
    %479 = vector.load %arg7[%c6_138, %c0_139, %c0_140] : memref<8x2x32xf32, #tpu.memory_space<vmem>>, vector<1x2x32xf32>
    %480 = vector.shape_cast %479 : vector<1x2x32xf32> to vector<2x32xf32>
    %481 = vector.shape_cast %447 : vector<2x32xf32> to vector<1x2x32xf32>
    tpu.vector_store %arg7[%c6_138, %c0_139, %c0_140], %481 {strides = array<i32>} : memref<8x2x32xf32, #tpu.memory_space<vmem>>, vector<1x2x32xf32>,
    %c1_141 = arith.constant 1 : index
    %c0_142 = arith.constant 0 : index
    %c0_143 = arith.constant 0 : index
    %482 = vector.load %arg8[%c1_141, %c0_142, %c0_143] : memref<8x2x32xf32, #tpu.memory_space<vmem>>, vector<1x2x32xf32>
    %483 = vector.shape_cast %482 : vector<1x2x32xf32> to vector<2x32xf32>
    %484 = vector.shape_cast %478 : vector<2x32xf32> to vector<1x2x32xf32>
    tpu.vector_store %arg8[%c1_141, %c0_142, %c0_143], %484 {strides = array<i32>} : memref<8x2x32xf32, #tpu.memory_space<vmem>>, vector<1x2x32xf32>,
    %c7_144 = arith.constant 7 : index
    %c0_145 = arith.constant 0 : index
    %c0_146 = arith.constant 0 : index
    %485 = vector.load %arg1[%c7_144, %c0_145, %c0_146] : memref<8x2x96xf32, #tpu.memory_space<vmem>>, vector<1x2x96xf32>
    %486 = vector.shape_cast %485 : vector<1x2x96xf32> to vector<2x96xf32>
    %cst_147 = arith.constant dense<0.000000e+00> : vector<2x96xf32>
    %487 = tpu.matmul %447, %5, %cst_147 {dimension_numbers = #tpu.dot_dimension_numbers<[1], [0], [0], [1], [0, 0, 1, 1], [], []>} : vector<2x32xf32>, vector<32x96xf32>, vector<2x96xf32> -> vector<2x96xf32>
    %488 = vector.broadcast %7 : vector<1x96xf32> to vector<2x96xf32>
    %489 = arith.addf %487, %488 : vector<2x96xf32>
    %490 = vector.extract_strided_slice %486 {offsets = [0, 0], sizes = [2, 32], strides = [1, 1]} : vector<2x96xf32> to vector<2x32xf32>
    %491 = vector.extract_strided_slice %489 {offsets = [0, 0], sizes = [2, 32], strides = [1, 1]} : vector<2x96xf32> to vector<2x32xf32>
    %492 = arith.addf %490, %491 : vector<2x32xf32>
    %493 = arith.negf %492 : vector<2x32xf32>
    %494 = math.exp %493 : vector<2x32xf32>
    %cst_148 = arith.constant 1.000000e+00 : f32
    %495 = vector.broadcast %cst_148 : f32 to vector<2x32xf32>
    %496 = arith.addf %495, %494 : vector<2x32xf32>
    %497 = arith.divf %495, %496 : vector<2x32xf32>
    %498 = vector.extract_strided_slice %486 {offsets = [0, 32], sizes = [2, 32], strides = [1, 1]} : vector<2x96xf32> to vector<2x32xf32>
    %499 = vector.extract_strided_slice %489 {offsets = [0, 32], sizes = [2, 32], strides = [1, 1]} : vector<2x96xf32> to vector<2x32xf32>
    %500 = arith.addf %498, %499 : vector<2x32xf32>
    %501 = arith.negf %500 : vector<2x32xf32>
    %502 = math.exp %501 : vector<2x32xf32>
    %cst_149 = arith.constant 1.000000e+00 : f32
    %503 = vector.broadcast %cst_149 : f32 to vector<2x32xf32>
    %504 = arith.addf %503, %502 : vector<2x32xf32>
    %505 = arith.divf %503, %504 : vector<2x32xf32>
    %506 = vector.extract_strided_slice %486 {offsets = [0, 64], sizes = [2, 32], strides = [1, 1]} : vector<2x96xf32> to vector<2x32xf32>
    %507 = vector.extract_strided_slice %489 {offsets = [0, 64], sizes = [2, 32], strides = [1, 1]} : vector<2x96xf32> to vector<2x32xf32>
    %508 = arith.mulf %497, %507 : vector<2x32xf32>
    %509 = arith.addf %506, %508 : vector<2x32xf32>
    %510 = math.tanh %509 : vector<2x32xf32>
    %cst_150 = arith.constant 1.000000e+00 : f32
    %511 = vector.broadcast %cst_150 : f32 to vector<2x32xf32>
    %512 = arith.subf %511, %505 : vector<2x32xf32>
    %513 = arith.mulf %512, %510 : vector<2x32xf32>
    %514 = arith.mulf %505, %447 : vector<2x32xf32>
    %515 = arith.addf %513, %514 : vector<2x32xf32>
    %c0_151 = arith.constant 0 : index
    %c0_152 = arith.constant 0 : index
    %c0_153 = arith.constant 0 : index
    %516 = vector.load %arg2[%c0_151, %c0_152, %c0_153] : memref<8x2x96xf32, #tpu.memory_space<vmem>>, vector<1x2x96xf32>
    %517 = vector.shape_cast %516 : vector<1x2x96xf32> to vector<2x96xf32>
    %cst_154 = arith.constant dense<0.000000e+00> : vector<2x96xf32>
    %518 = tpu.matmul %478, %6, %cst_154 {dimension_numbers = #tpu.dot_dimension_numbers<[1], [0], [0], [1], [0, 0, 1, 1], [], []>} : vector<2x32xf32>, vector<32x96xf32>, vector<2x96xf32> -> vector<2x96xf32>
    %519 = vector.broadcast %8 : vector<1x96xf32> to vector<2x96xf32>
    %520 = arith.addf %518, %519 : vector<2x96xf32>
    %521 = vector.extract_strided_slice %517 {offsets = [0, 0], sizes = [2, 32], strides = [1, 1]} : vector<2x96xf32> to vector<2x32xf32>
    %522 = vector.extract_strided_slice %520 {offsets = [0, 0], sizes = [2, 32], strides = [1, 1]} : vector<2x96xf32> to vector<2x32xf32>
    %523 = arith.addf %521, %522 : vector<2x32xf32>
    %524 = arith.negf %523 : vector<2x32xf32>
    %525 = math.exp %524 : vector<2x32xf32>
    %cst_155 = arith.constant 1.000000e+00 : f32
    %526 = vector.broadcast %cst_155 : f32 to vector<2x32xf32>
    %527 = arith.addf %526, %525 : vector<2x32xf32>
    %528 = arith.divf %526, %527 : vector<2x32xf32>
    %529 = vector.extract_strided_slice %517 {offsets = [0, 32], sizes = [2, 32], strides = [1, 1]} : vector<2x96xf32> to vector<2x32xf32>
    %530 = vector.extract_strided_slice %520 {offsets = [0, 32], sizes = [2, 32], strides = [1, 1]} : vector<2x96xf32> to vector<2x32xf32>
    %531 = arith.addf %529, %530 : vector<2x32xf32>
    %532 = arith.negf %531 : vector<2x32xf32>
    %533 = math.exp %532 : vector<2x32xf32>
    %cst_156 = arith.constant 1.000000e+00 : f32
    %534 = vector.broadcast %cst_156 : f32 to vector<2x32xf32>
    %535 = arith.addf %534, %533 : vector<2x32xf32>
    %536 = arith.divf %534, %535 : vector<2x32xf32>
    %537 = vector.extract_strided_slice %517 {offsets = [0, 64], sizes = [2, 32], strides = [1, 1]} : vector<2x96xf32> to vector<2x32xf32>
    %538 = vector.extract_strided_slice %520 {offsets = [0, 64], sizes = [2, 32], strides = [1, 1]} : vector<2x96xf32> to vector<2x32xf32>
    %539 = arith.mulf %528, %538 : vector<2x32xf32>
    %540 = arith.addf %537, %539 : vector<2x32xf32>
    %541 = math.tanh %540 : vector<2x32xf32>
    %cst_157 = arith.constant 1.000000e+00 : f32
    %542 = vector.broadcast %cst_157 : f32 to vector<2x32xf32>
    %543 = arith.subf %542, %536 : vector<2x32xf32>
    %544 = arith.mulf %543, %541 : vector<2x32xf32>
    %545 = arith.mulf %536, %478 : vector<2x32xf32>
    %546 = arith.addf %544, %545 : vector<2x32xf32>
    %c7_158 = arith.constant 7 : index
    %c0_159 = arith.constant 0 : index
    %c0_160 = arith.constant 0 : index
    %547 = vector.load %arg7[%c7_158, %c0_159, %c0_160] : memref<8x2x32xf32, #tpu.memory_space<vmem>>, vector<1x2x32xf32>
    %548 = vector.shape_cast %547 : vector<1x2x32xf32> to vector<2x32xf32>
    %549 = vector.shape_cast %515 : vector<2x32xf32> to vector<1x2x32xf32>
    tpu.vector_store %arg7[%c7_158, %c0_159, %c0_160], %549 {strides = array<i32>} : memref<8x2x32xf32, #tpu.memory_space<vmem>>, vector<1x2x32xf32>,
    %c0_161 = arith.constant 0 : index
    %c0_162 = arith.constant 0 : index
    %c0_163 = arith.constant 0 : index
    %550 = vector.load %arg8[%c0_161, %c0_162, %c0_163] : memref<8x2x32xf32, #tpu.memory_space<vmem>>, vector<1x2x32xf32>
    %551 = vector.shape_cast %550 : vector<1x2x32xf32> to vector<2x32xf32>
    %552 = vector.shape_cast %546 : vector<2x32xf32> to vector<1x2x32xf32>
    tpu.vector_store %arg8[%c0_161, %c0_162, %c0_163], %552 {strides = array<i32>} : memref<8x2x32xf32, #tpu.memory_space<vmem>>, vector<1x2x32xf32>,
    %c0_164 = arith.constant 0 : index
    %c0_165 = arith.constant 0 : index
    %553 = vector.load %arg9[%c0_164, %c0_165] : memref<2x32xf32, #tpu.memory_space<vmem>>, vector<2x32xf32>
    tpu.vector_store %arg9[%c0_164, %c0_165], %515 {strides = array<i32>} : memref<2x32xf32, #tpu.memory_space<vmem>>, vector<2x32xf32>,
    %c0_166 = arith.constant 0 : index
    %c0_167 = arith.constant 0 : index
    %554 = vector.load %arg10[%c0_166, %c0_167] : memref<2x32xf32, #tpu.memory_space<vmem>>, vector<2x32xf32>
    tpu.vector_store %arg10[%c0_166, %c0_167], %546 {strides = array<i32>} : memref<2x32xf32, #tpu.memory_space<vmem>>, vector<2x32xf32>,
    return
  }
  func.func @transform_0(%arg0: i32) -> (i32, i32, i32) {
    %c0_i32 = arith.constant 0 : i32
    %c0_i32_0 = arith.constant 0 : i32
    %c0_i32_1 = arith.constant 0 : i32
    return %arg0, %c0_i32, %c0_i32_0 : i32, i32, i32
  }
  func.func @transform_1(%arg0: i32) -> (i32, i32, i32) {
    %c0_i32 = arith.constant 0 : i32
    %0 = arith.subi %c0_i32, %arg0 : i32
    %c0_i32_0 = arith.constant 0 : i32
    %c0_i32_1 = arith.constant 0 : i32
    %c0_i32_2 = arith.constant 0 : i32
    return %0, %c0_i32_0, %c0_i32_1 : i32, i32, i32
  }
  func.func @transform_2(%arg0: i32) -> (i32, i32) {
    %c0_i32 = arith.constant 0 : i32
    %c0_i32_0 = arith.constant 0 : i32
    %c0_i32_1 = arith.constant 0 : i32
    return %c0_i32, %c0_i32_0 : i32, i32
  }
  func.func @transform_3(%arg0: i32) -> (i32, i32) {
    %c0_i32 = arith.constant 0 : i32
    %c0_i32_0 = arith.constant 0 : i32
    %c0_i32_1 = arith.constant 0 : i32
    return %c0_i32, %c0_i32_0 : i32, i32
  }
  func.func @transform_4(%arg0: i32) -> (i32, i32) {
    %c0_i32 = arith.constant 0 : i32
    %c0_i32_0 = arith.constant 0 : i32
    %c0_i32_1 = arith.constant 0 : i32
    return %c0_i32, %c0_i32_0 : i32, i32
  }
  func.func @transform_5(%arg0: i32) -> (i32, i32) {
    %c0_i32 = arith.constant 0 : i32
    %c0_i32_0 = arith.constant 0 : i32
    %c0_i32_1 = arith.constant 0 : i32
    return %c0_i32, %c0_i32_0 : i32, i32
  }
  func.func @transform_6(%arg0: i32) -> (i32, i32, i32) {
    %c0_i32 = arith.constant 0 : i32
    %c0_i32_0 = arith.constant 0 : i32
    %c0_i32_1 = arith.constant 0 : i32
    return %arg0, %c0_i32, %c0_i32_0 : i32, i32, i32
  }
  func.func @transform_7(%arg0: i32) -> (i32, i32, i32) {
    %c0_i32 = arith.constant 0 : i32
    %0 = arith.subi %c0_i32, %arg0 : i32
    %c0_i32_0 = arith.constant 0 : i32
    %c0_i32_1 = arith.constant 0 : i32
    %c0_i32_2 = arith.constant 0 : i32
    return %0, %c0_i32_0, %c0_i32_1 : i32, i32, i32
  }
}

</mosaic_0001>

<llo_original>
// kernel: number_enc_forward.6
$region0: #{number_enc_forward.6}
  #allocation0 [shape = 'u32[]', space=smem, size = 0x4, offset = 0x4, fixed_abs, tag = 'smem constant byte address 0x4 - core index']
  #allocation1 [shape = 'u32[72,128]{1,0:T(1,128)}', space=vmem, size = 0x9000, scoped, tag = 'internal scratch']
  %s0 = inlined_call_operand.vmem [shape: f32[16,32], index: 0, kind: input, shape index: {}]
  %s1 = inlined_call_operand.vmem [shape: f32[16,32], index: 1, kind: input, shape index: {}]
  %s2 = inlined_call_operand.hbm [shape: f32[32,96], index: 2, kind: input, shape index: {}]
  %s3 = inlined_call_operand.hbm [shape: f32[32,96], index: 3, kind: input, shape index: {}]
  %s4 = inlined_call_operand.hbm [shape: f32[32,96], index: 4, kind: input, shape index: {}]
  %s5 = inlined_call_operand.hbm [shape: f32[32,96], index: 5, kind: input, shape index: {}]
  %s6 = inlined_call_operand.vmem [shape: f32[1,96], index: 6, kind: input, shape index: {}]
  %s7 = inlined_call_operand.vmem [shape: f32[1,96], index: 7, kind: input, shape index: {}]
  %s8 = inlined_call_operand.vmem [shape: f32[16,96], index: 8, kind: output, shape index: {0}]
  %s9 = inlined_call_operand.vmem [shape: f32[16,96], index: 9, kind: output, shape index: {1}]
  %10 = xla_tuple %s8, %s9
  %s11 = sld [smem:[#allocation0]]
  $region66: #{number_enc_forward.6} parent=0
    _
  %s13 = ssub.s32 1, %s11
  %s14 = scalar_select 0, %s13, %s11
  $region1: #{number_enc_forward.6} parent=0
    #allocation2 [shape = 'u8[16384]{0}', space=vmem, size = 0x4000, scoped, tag = 'input window, operand 2, single buffered']
    #allocation3 [shape = 's32[1]{0}', space=sflag, size = 0x4, scoped, tag = 'scoped memory for number_enc_forward.6']
    #allocation4 [shape = 'u8[16384]{0}', space=vmem, size = 0x4000, scoped, tag = 'input window, operand 3, single buffered']
    #allocation5 [shape = 's32[1]{0}', space=sflag, size = 0x4, scoped, tag = 'scoped memory for number_enc_forward.6']
    #allocation6 [shape = 'u8[16384]{0}', space=vmem, size = 0x4000, scoped, tag = 'input window, operand 4, single buffered']
    #allocation7 [shape = 'u8[16384]{0}', space=vmem, size = 0x4000, scoped, tag = 'input window, operand 5, single buffered']
    #allocation8 [shape = 's32[1]{0}', space=sflag, size = 0x4, scoped, tag = 'scoped memory for number_enc_forward.6']
    %15 = vsyncpa [#allocation3], 0
    %16 = vsyncpa [#allocation5], 0
    %17 = vsyncpa [#allocation8], 0
    // Predicated region
    $region2: #{number_enc_forward.6} parent=1 // pred_check
      _
    $region3: #{number_enc_forward.6} parent=1 // pred_check_branch
      %19 = sbr.rel (0) target = $region5
    $region4: #{number_enc_forward.6} parent=1 // pred_region
      _
    $region5: #{number_enc_forward.6} parent=1 // pred_fallthru
      _
    // Predicated region
    $region6: #{number_enc_forward.6} parent=1 // pred_check
      _
    $region7: #{number_enc_forward.6} parent=1 // pred_check_branch
      %21 = sbr.rel (0) target = $region9
    $region8: #{number_enc_forward.6} parent=1 // pred_region
      _
    $region9: #{number_enc_forward.6} parent=1 // pred_fallthru
      _
    // Predicated region
    $region10: #{number_enc_forward.6} parent=1 // pred_check
      _
    $region11: #{number_enc_forward.6} parent=1 // pred_check_branch
      %23 = sbr.rel (0) target = $region13
    $region12: #{number_enc_forward.6} parent=1 // pred_region
      %25 = vsyncadd [#allocation3], 0
      %s26 = sshll.u32 %s2, 4
      %s27 = int_to_ptr.hbm [resolvable:$true] %s26
      %s28 = sshll.u32 [#allocation2], 4
      %s29 = int_to_ptr.vmem [resolvable:$true] %s28
      %34 = dma.hbm_to_vmem [thread:$0]  %s27, 512, %s29, [#allocation3], 128, 128, 8
    $region13: #{number_enc_forward.6} parent=1 // pred_fallthru
      _
    // Predicated region
    $region14: #{number_enc_forward.6} parent=1 // pred_check
      _
    $region15: #{number_enc_forward.6} parent=1 // pred_check_branch
      %36 = sbr.rel (0) target = $region17
    $region16: #{number_enc_forward.6} parent=1 // pred_region
      %38 = vsyncadd [#allocation5], 0
      %s39 = sshll.u32 %s3, 4
      %s40 = int_to_ptr.hbm [resolvable:$true] %s39
      %s41 = sshll.u32 [#allocation4], 4
      %s42 = int_to_ptr.vmem [resolvable:$true] %s41
      %47 = dma.hbm_to_vmem [thread:$0]  %s40, 512, %s42, [#allocation5], 128, 128, 8
    $region17: #{number_enc_forward.6} parent=1 // pred_fallthru
      _
    // Predicated region
    $region18: #{number_enc_forward.6} parent=1 // pred_check
      _
    $region19: #{number_enc_forward.6} parent=1 // pred_check_branch
      %49 = sbr.rel (0) target = $region21
    $region20: #{number_enc_forward.6} parent=1 // pred_region
      %51 = vsyncadd [#allocation5], 0
      %s52 = sshll.u32 %s4, 4
      %s53 = int_to_ptr.hbm [resolvable:$true] %s52
      %s54 = sshll.u32 [#allocation6], 4
      %s55 = int_to_ptr.vmem [resolvable:$true] %s54
      %60 = dma.hbm_to_vmem [thread:$0]  %s53, 512, %s55, [#allocation5], 128, 128, 8
    $region21: #{number_enc_forward.6} parent=1 // pred_fallthru
      _
    // Predicated region
    $region22: #{number_enc_forward.6} parent=1 // pred_check
      _
    $region23: #{number_enc_forward.6} parent=1 // pred_check_branch
      %62 = sbr.rel (0) target = $region25
    $region24: #{number_enc_forward.6} parent=1 // pred_region
      %64 = vsyncadd [#allocation8], 0
      %s65 = sshll.u32 %s5, 4
      %s66 = int_to_ptr.hbm [resolvable:$true] %s65
      %s67 = sshll.u32 [#allocation7], 4
      %s68 = int_to_ptr.vmem [resolvable:$true] %s67
      %73 = dma.hbm_to_vmem [thread:$0]  %s66, 512, %s68, [#allocation8], 128, 128, 8
    $region25: #{number_enc_forward.6} parent=1 // pred_fallthru
      _
    // Predicated region
    $region26: #{number_enc_forward.6} parent=1 // pred_check
      _
    $region27: #{number_enc_forward.6} parent=1 // pred_check_branch
      %75 = sbr.rel (0) target = $region29
    $region28: #{number_enc_forward.6} parent=1 // pred_region
      _
    $region29: #{number_enc_forward.6} parent=1 // pred_fallthru
      _
    // Predicated region
    $region30: #{number_enc_forward.6} parent=1 // pred_check
      _
    $region31: #{number_enc_forward.6} parent=1 // pred_check_branch
      %77 = sbr.rel (0) target = $region33
    $region32: #{number_enc_forward.6} parent=1 // pred_region
      _
    $region33: #{number_enc_forward.6} parent=1 // pred_fallthru
      _
    // Predicated region
    $region34: #{number_enc_forward.6} parent=1 // pred_check
      _
    $region35: #{number_enc_forward.6} parent=1 // pred_check_branch
      %79 = sbr.rel (0) target = $region37
    $region36: #{number_enc_forward.6} parent=1 // pred_region
      %81 = dma.done [#allocation3], 512
    $region37: #{number_enc_forward.6} parent=1 // pred_fallthru
      _
    // Predicated region
    $region38: #{number_enc_forward.6} parent=1 // pred_check
      _
    $region39: #{number_enc_forward.6} parent=1 // pred_check_branch
      %83 = sbr.rel (0) target = $region41
    $region40: #{number_enc_forward.6} parent=1 // pred_region
      %85 = dma.done [#allocation5], 512
    $region41: #{number_enc_forward.6} parent=1 // pred_fallthru
      _
    // Predicated region
    $region42: #{number_enc_forward.6} parent=1 // pred_check
      _
    $region43: #{number_enc_forward.6} parent=1 // pred_check_branch
      %87 = sbr.rel (0) target = $region45
    $region44: #{number_enc_forward.6} parent=1 // pred_region
      %89 = dma.done [#allocation5], 512
    $region45: #{number_enc_forward.6} parent=1 // pred_fallthru
      _
    // Predicated region
    $region46: #{number_enc_forward.6} parent=1 // pred_check
      _
    $region47: #{number_enc_forward.6} parent=1 // pred_check_branch
      %91 = sbr.rel (0) target = $region49
    $region48: #{number_enc_forward.6} parent=1 // pred_region
      %93 = dma.done [#allocation8], 512
    $region49: #{number_enc_forward.6} parent=1 // pred_fallthru
      _
    %v94 = vld [vmem:[%s0] sm:$0xff]
    %v95 = vld [vmem:[%s0 + $0x8] sm:$0xff]
    %v96 = vld [vmem:[#allocation2] sm:$0xff]
    %v97 = vld [vmem:[#allocation2 + $0x8] sm:$0xff]
    %v98 = vld [vmem:[#allocation2 + $0x10] sm:$0xff]
    %v99 = vld [vmem:[#allocation2 + $0x18] sm:$0xff]
    %v100 = vld [vmem:[#allocation6] sm:$0xff]
    %v101 = vld [vmem:[#allocation6 + $0x8] sm:$0xff]
    %v102 = vld [vmem:[#allocation6 + $0x10] sm:$0xff]
    %v103 = vld [vmem:[#allocation6 + $0x18] sm:$0xff]
    %v104 = vld [vmem:[%s1] sm:$0xff]
    %v105 = vld [vmem:[%s1 + $0x8] sm:$0xff]
    %v106 = vld [vmem:[#allocation4] sm:$0xff]
    %v107 = vld [vmem:[#allocation4 + $0x8] sm:$0xff]
    %v108 = vld [vmem:[#allocation4 + $0x10] sm:$0xff]
    %v109 = vld [vmem:[#allocation4 + $0x18] sm:$0xff]
    %vm110 = vcmask 261120
    %v112 = vsel %vm110, %v104, 0
    %v115 = vsel %vm110, %v105, 0
    %117 = vmatpush.msra.mxu0 0.0
    %118 = vmatpush.msra.mxu0 0.0
    %119 = vmatpush.msra.mxu0 0.0
    %120 = vmatpush.msra.mxu0 0.0
    %121 = vmatpush.msra.mxu0 0.0
    %122 = vmatpush.msra.mxu0 0.0
    %123 = vmatpush.msra.mxu0 0.0
    %124 = vmatpush.msra.mxu0 0.0
    %125 = vmatpush.msra.mxu0 0.0
    %126 = vmatpush.msra.mxu0 0.0
    %127 = vmatpush.msra.mxu0 0.0
    %128 = vmatpush.msra.mxu0 0.0
    %129 = vmatpush.msra.mxu0 %v109
    %130 = vmatpush.msra.mxu0 %v108
    %131 = vmatpush.msra.mxu0 %v107
    %132 = vmatpush.msra.mxu0 %v106
    %133 = vmatmul.f32.gmra.mxu0 %v112
    %v134 = vpop.f32.mrf.mxu0
    %v135 = vadd.f32 0.0, %v134
    %136 = vmatmul.f32.gmra.mxu0 %v115
    %v137 = vpop.f32.mrf.mxu0
    %v138 = vadd.f32 0.0, %v137
    %139 = vdwg.mxu0
    %v141 = vsel %vm110, %v94, 0
    %v144 = vsel %vm110, %v95, 0
    %146 = vmatpush.msra.mxu0 0.0
    %147 = vmatpush.msra.mxu0 0.0
    %148 = vmatpush.msra.mxu0 0.0
    %149 = vmatpush.msra.mxu0 0.0
    %150 = vmatpush.msra.mxu0 0.0
    %151 = vmatpush.msra.mxu0 0.0
    %152 = vmatpush.msra.mxu0 0.0
    %153 = vmatpush.msra.mxu0 0.0
    %154 = vmatpush.msra.mxu0 0.0
    %155 = vmatpush.msra.mxu0 0.0
    %156 = vmatpush.msra.mxu0 0.0
    %157 = vmatpush.msra.mxu0 0.0
    %158 = vmatpush.msra.mxu0 %v99
    %159 = vmatpush.msra.mxu0 %v98
    %160 = vmatpush.msra.mxu0 %v97
    %161 = vmatpush.msra.mxu0 %v96
    %162 = vmatmul.f32.gmra.mxu0 %v141
    %v163 = vpop.f32.mrf.mxu0
    %v164 = vadd.f32 %v135, %v163
    %165 = vmatmul.f32.gmra.mxu0 %v144
    %v166 = vpop.f32.mrf.mxu0
    %v167 = vadd.f32 %v138, %v166
    %168 = vdwg.mxu0
    %v169 = vld [vmem:[#allocation7] sm:$0xff]
    %v170 = vld [vmem:[#allocation7 + $0x8] sm:$0xff]
    %v171 = vld [vmem:[#allocation7 + $0x10] sm:$0xff]
    %v172 = vld [vmem:[#allocation7 + $0x18] sm:$0xff]
    %173 = vmatpush.msra.mxu0 0.0
    %174 = vmatpush.msra.mxu0 0.0
    %175 = vmatpush.msra.mxu0 0.0
    %176 = vmatpush.msra.mxu0 0.0
    %177 = vmatpush.msra.mxu0 0.0
    %178 = vmatpush.msra.mxu0 0.0
    %179 = vmatpush.msra.mxu0 0.0
    %180 = vmatpush.msra.mxu0 0.0
    %181 = vmatpush.msra.mxu0 0.0
    %182 = vmatpush.msra.mxu0 0.0
    %183 = vmatpush.msra.mxu0 0.0
    %184 = vmatpush.msra.mxu0 0.0
    %185 = vmatpush.msra.mxu0 %v172
    %186 = vmatpush.msra.mxu0 %v171
    %187 = vmatpush.msra.mxu0 %v170
    %188 = vmatpush.msra.mxu0 %v169
    %189 = vmatmul.f32.gmra.mxu0 %v112
    %v190 = vpop.f32.mrf.mxu0
    %v191 = vadd.f32 0.0, %v190
    %192 = vmatmul.f32.gmra.mxu0 %v115
    %v193 = vpop.f32.mrf.mxu0
    %v194 = vadd.f32 0.0, %v193
    %195 = vdwg.mxu0
    %196 = vmatpush.msra.mxu0 0.0
    %197 = vmatpush.msra.mxu0 0.0
    %198 = vmatpush.msra.mxu0 0.0
    %199 = vmatpush.msra.mxu0 0.0
    %200 = vmatpush.msra.mxu0 0.0
    %201 = vmatpush.msra.mxu0 0.0
    %202 = vmatpush.msra.mxu0 0.0
    %203 = vmatpush.msra.mxu0 0.0
    %204 = vmatpush.msra.mxu0 0.0
    %205 = vmatpush.msra.mxu0 0.0
    %206 = vmatpush.msra.mxu0 0.0
    %207 = vmatpush.msra.mxu0 0.0
    %208 = vmatpush.msra.mxu0 %v103
    %209 = vmatpush.msra.mxu0 %v102
    %210 = vmatpush.msra.mxu0 %v101
    %211 = vmatpush.msra.mxu0 %v100
    %212 = vmatmul.f32.gmra.mxu0 %v141
    %v213 = vpop.f32.mrf.mxu0
    %v214 = vadd.f32 %v191, %v213
    %215 = vmatmul.f32.gmra.mxu0 %v144
    %v216 = vpop.f32.mrf.mxu0
    %v217 = vadd.f32 %v194, %v216
    %218 = vdwg.mxu0
    %v219 = vld [vmem:[%s6] sm:$0x1]
    %v221 = vperm.slane %v219, 0
    %v223 = vadd.f32 %v164, %v221
    %v224 = vadd.f32 %v167, %v221
    %vm225 = vcmask 785408
    %226 = vst.msk [vmem:[%s8] sm:$0xff] %vm225, %v223
    %227 = vst.msk [vmem:[%s8 + $0x8] sm:$0xff] %vm225, %v224
    %v228 = vld [vmem:[%s7] sm:$0x1]
    %v230 = vperm.slane %v228, 0
    %v232 = vadd.f32 %v214, %v230
    %v233 = vadd.f32 %v217, %v230
    %234 = vst.msk [vmem:[%s9] sm:$0xff] %vm225, %v232
    %235 = vst.msk [vmem:[%s9 + $0x8] sm:$0xff] %vm225, %v233
    // Predicated region
    $region50: #{number_enc_forward.6} parent=1 // pred_check
      _
    $region51: #{number_enc_forward.6} parent=1 // pred_check_branch
      %237 = sbr.rel (0) target = $region53
    $region52: #{number_enc_forward.6} parent=1 // pred_region
      _
    $region53: #{number_enc_forward.6} parent=1 // pred_fallthru
      _
    // Predicated region
    $region54: #{number_enc_forward.6} parent=1 // pred_check
      _
    $region55: #{number_enc_forward.6} parent=1 // pred_check_branch
      %239 = sbr.rel (0) target = $region57
    $region56: #{number_enc_forward.6} parent=1 // pred_region
      _
    $region57: #{number_enc_forward.6} parent=1 // pred_fallthru
      _
    // Predicated region
    $region58: #{number_enc_forward.6} parent=1 // pred_check
      _
    $region59: #{number_enc_forward.6} parent=1 // pred_check_branch
      %241 = sbr.rel (0) target = $region61
    $region60: #{number_enc_forward.6} parent=1 // pred_region
      _
    $region61: #{number_enc_forward.6} parent=1 // pred_fallthru
      _
    // Predicated region
    $region62: #{number_enc_forward.6} parent=1 // pred_check
      _
    $region63: #{number_enc_forward.6} parent=1 // pred_check_branch
      %243 = sbr.rel (0) target = $region65
    $region64: #{number_enc_forward.6} parent=1 // pred_region
      _
    $region65: #{number_enc_forward.6} parent=1 // pred_fallthru
      _
    %244 = vsyncpa [#allocation3], 1
    %245 = vsyncpa [#allocation5], 1
    %246 = vsyncpa [#allocation8], 1

// kernel: number_enc_forward.4
$region0: #{number_enc_forward.4}
  #allocation0 [shape = 'u32[]', space=smem, size = 0x4, offset = 0x4, fixed_abs, tag = 'smem constant byte address 0x4 - core index']
  #allocation1 [shape = 'u32[72,128]{1,0:T(1,128)}', space=vmem, size = 0x9000, scoped, tag = 'internal scratch']
  %s0 = inlined_call_operand.hbm [shape: f32[16,32], index: 0, kind: input, shape index: {}]
  %s1 = inlined_call_operand.hbm [shape: f32[32,96], index: 1, kind: input, shape index: {}]
  %s2 = inlined_call_operand.hbm [shape: f32[32,96], index: 2, kind: input, shape index: {}]
  %s3 = inlined_call_operand.vmem [shape: f32[1,96], index: 3, kind: input, shape index: {}]
  %s4 = inlined_call_operand.vmem [shape: f32[1,96], index: 4, kind: input, shape index: {}]
  %s5 = inlined_call_operand.vmem [shape: f32[16,96], index: 5, kind: output, shape index: {0}]
  %s6 = inlined_call_operand.vmem [shape: f32[16,96], index: 6, kind: output, shape index: {1}]
  %7 = xla_tuple %s5, %s6
  %s8 = sld [smem:[#allocation0]]
  $region50: #{number_enc_forward.4} parent=0
    _
  %s10 = ssub.s32 1, %s8
  %s11 = scalar_select 0, %s10, %s8
  $region1: #{number_enc_forward.4} parent=0
    #allocation2 [shape = 'u8[8192]{0}', space=vmem, size = 0x2000, scoped, tag = 'input window, operand 0, single buffered']
    #allocation3 [shape = 's32[1]{0}', space=sflag, size = 0x4, scoped, tag = 'scoped memory for number_enc_forward.4']
    #allocation4 [shape = 'u8[16384]{0}', space=vmem, size = 0x4000, scoped, tag = 'input window, operand 1, single buffered']
    #allocation5 [shape = 's32[1]{0}', space=sflag, size = 0x4, scoped, tag = 'scoped memory for number_enc_forward.4']
    #allocation6 [shape = 'u8[16384]{0}', space=vmem, size = 0x4000, scoped, tag = 'input window, operand 2, single buffered']
    %12 = vsyncpa [#allocation3], 0
    %13 = vsyncpa [#allocation5], 0
    // Predicated region
    $region2: #{number_enc_forward.4} parent=1 // pred_check
      _
    $region3: #{number_enc_forward.4} parent=1 // pred_check_branch
      %15 = sbr.rel (0) target = $region5
    $region4: #{number_enc_forward.4} parent=1 // pred_region
      %17 = vsyncadd [#allocation3], 0
      %s18 = sshll.u32 %s0, 4
      %s19 = int_to_ptr.hbm [resolvable:$true] %s18
      %s20 = sshll.u32 [#allocation2], 4
      %s21 = int_to_ptr.vmem [resolvable:$true] %s20
      %26 = dma.hbm_to_vmem [thread:$0]  %s19, 256, %s21, [#allocation3], 128, 128, 8
    $region5: #{number_enc_forward.4} parent=1 // pred_fallthru
      _
    // Predicated region
    $region6: #{number_enc_forward.4} parent=1 // pred_check
      _
    $region7: #{number_enc_forward.4} parent=1 // pred_check_branch
      %28 = sbr.rel (0) target = $region9
    $region8: #{number_enc_forward.4} parent=1 // pred_region
      %30 = vsyncadd [#allocation5], 0
      %s31 = sshll.u32 %s1, 4
      %s32 = int_to_ptr.hbm [resolvable:$true] %s31
      %s33 = sshll.u32 [#allocation4], 4
      %s34 = int_to_ptr.vmem [resolvable:$true] %s33
      %39 = dma.hbm_to_vmem [thread:$0]  %s32, 512, %s34, [#allocation5], 128, 128, 8
    $region9: #{number_enc_forward.4} parent=1 // pred_fallthru
      _
    // Predicated region
    $region10: #{number_enc_forward.4} parent=1 // pred_check
      _
    $region11: #{number_enc_forward.4} parent=1 // pred_check_branch
      %41 = sbr.rel (0) target = $region13
    $region12: #{number_enc_forward.4} parent=1 // pred_region
      %43 = vsyncadd [#allocation5], 0
      %s44 = sshll.u32 %s2, 4
      %s45 = int_to_ptr.hbm [resolvable:$true] %s44
      %s46 = sshll.u32 [#allocation6], 4
      %s47 = int_to_ptr.vmem [resolvable:$true] %s46
      %52 = dma.hbm_to_vmem [thread:$0]  %s45, 512, %s47, [#allocation5], 128, 128, 8
    $region13: #{number_enc_forward.4} parent=1 // pred_fallthru
      _
    // Predicated region
    $region14: #{number_enc_forward.4} parent=1 // pred_check
      _
    $region15: #{number_enc_forward.4} parent=1 // pred_check_branch
      %54 = sbr.rel (0) target = $region17
    $region16: #{number_enc_forward.4} parent=1 // pred_region
      _
    $region17: #{number_enc_forward.4} parent=1 // pred_fallthru
      _
    // Predicated region
    $region18: #{number_enc_forward.4} parent=1 // pred_check
      _
    $region19: #{number_enc_forward.4} parent=1 // pred_check_branch
      %56 = sbr.rel (0) target = $region21
    $region20: #{number_enc_forward.4} parent=1 // pred_region
      _
    $region21: #{number_enc_forward.4} parent=1 // pred_fallthru
      _
    // Predicated region
    $region22: #{number_enc_forward.4} parent=1 // pred_check
      _
    $region23: #{number_enc_forward.4} parent=1 // pred_check_branch
      %58 = sbr.rel (0) target = $region25
    $region24: #{number_enc_forward.4} parent=1 // pred_region
      %60 = dma.done [#allocation3], 256
    $region25: #{number_enc_forward.4} parent=1 // pred_fallthru
      _
    // Predicated region
    $region26: #{number_enc_forward.4} parent=1 // pred_check
      _
    $region27: #{number_enc_forward.4} parent=1 // pred_check_branch
      %62 = sbr.rel (0) target = $region29
    $region28: #{number_enc_forward.4} parent=1 // pred_region
      %64 = dma.done [#allocation5], 512
    $region29: #{number_enc_forward.4} parent=1 // pred_fallthru
      _
    // Predicated region
    $region30: #{number_enc_forward.4} parent=1 // pred_check
      _
    $region31: #{number_enc_forward.4} parent=1 // pred_check_branch
      %66 = sbr.rel (0) target = $region33
    $region32: #{number_enc_forward.4} parent=1 // pred_region
      %68 = dma.done [#allocation5], 512
    $region33: #{number_enc_forward.4} parent=1 // pred_fallthru
      _
    %v69 = vld [vmem:[#allocation2] sm:$0xff]
    %v70 = vld [vmem:[#allocation2 + $0x8] sm:$0xff]
    %v71 = vld [vmem:[#allocation4] sm:$0xff]
    %v72 = vld [vmem:[#allocation4 + $0x8] sm:$0xff]
    %v73 = vld [vmem:[#allocation4 + $0x10] sm:$0xff]
    %v74 = vld [vmem:[#allocation4 + $0x18] sm:$0xff]
    %v75 = vld [vmem:[#allocation6] sm:$0xff]
    %v76 = vld [vmem:[#allocation6 + $0x8] sm:$0xff]
    %v77 = vld [vmem:[#allocation6 + $0x10] sm:$0xff]
    %v78 = vld [vmem:[#allocation6 + $0x18] sm:$0xff]
    %v79 = vld [vmem:[%s3] sm:$0x1]
    %v81 = vperm.slane %v79, 0
    %vm83 = vcmask 261120
    %v85 = vsel %vm83, %v69, 0
    %v88 = vsel %vm83, %v70, 0
    %90 = vmatpush.msra.mxu0 0.0
    %91 = vmatpush.msra.mxu0 0.0
    %92 = vmatpush.msra.mxu0 0.0
    %93 = vmatpush.msra.mxu0 0.0
    %94 = vmatpush.msra.mxu0 0.0
    %95 = vmatpush.msra.mxu0 0.0
    %96 = vmatpush.msra.mxu0 0.0
    %97 = vmatpush.msra.mxu0 0.0
    %98 = vmatpush.msra.mxu0 0.0
    %99 = vmatpush.msra.mxu0 0.0
    %100 = vmatpush.msra.mxu0 0.0
    %101 = vmatpush.msra.mxu0 0.0
    %102 = vmatpush.msra.mxu0 %v74
    %103 = vmatpush.msra.mxu0 %v73
    %104 = vmatpush.msra.mxu0 %v72
    %105 = vmatpush.msra.mxu0 %v71
    %106 = vmatmul.f32.gmra.mxu0 %v85
    %v107 = vpop.f32.mrf.mxu0
    %v108 = vadd.f32 %v81, %v107
    %109 = vmatmul.f32.gmra.mxu0 %v88
    %v110 = vpop.f32.mrf.mxu0
    %v111 = vadd.f32 %v81, %v110
    %112 = vdwg.mxu0
    %vm113 = vcmask 785408
    %114 = vst.msk [vmem:[%s5] sm:$0xff] %vm113, %v108
    %115 = vst.msk [vmem:[%s5 + $0x8] sm:$0xff] %vm113, %v111
    %v116 = vld [vmem:[%s4] sm:$0x1]
    %v118 = vperm.slane %v116, 0
    %120 = vmatpush.msra.mxu0 0.0
    %121 = vmatpush.msra.mxu0 0.0
    %122 = vmatpush.msra.mxu0 0.0
    %123 = vmatpush.msra.mxu0 0.0
    %124 = vmatpush.msra.mxu0 0.0
    %125 = vmatpush.msra.mxu0 0.0
    %126 = vmatpush.msra.mxu0 0.0
    %127 = vmatpush.msra.mxu0 0.0
    %128 = vmatpush.msra.mxu0 0.0
    %129 = vmatpush.msra.mxu0 0.0
    %130 = vmatpush.msra.mxu0 0.0
    %131 = vmatpush.msra.mxu0 0.0
    %132 = vmatpush.msra.mxu0 %v78
    %133 = vmatpush.msra.mxu0 %v77
    %134 = vmatpush.msra.mxu0 %v76
    %135 = vmatpush.msra.mxu0 %v75
    %136 = vmatmul.f32.gmra.mxu0 %v85
    %v137 = vpop.f32.mrf.mxu0
    %v138 = vadd.f32 %v118, %v137
    %139 = vmatmul.f32.gmra.mxu0 %v88
    %v140 = vpop.f32.mrf.mxu0
    %v141 = vadd.f32 %v118, %v140
    %142 = vdwg.mxu0
    %143 = vst.msk [vmem:[%s6] sm:$0xff] %vm113, %v138
    %144 = vst.msk [vmem:[%s6 + $0x8] sm:$0xff] %vm113, %v141
    // Predicated region
    $region34: #{number_enc_forward.4} parent=1 // pred_check
      _
    $region35: #{number_enc_forward.4} parent=1 // pred_check_branch
      %146 = sbr.rel (0) target = $region37
    $region36: #{number_enc_forward.4} parent=1 // pred_region
      _
    $region37: #{number_enc_forward.4} parent=1 // pred_fallthru
      _
    // Predicated region
    $region38: #{number_enc_forward.4} parent=1 // pred_check
      _
    $region39: #{number_enc_forward.4} parent=1 // pred_check_branch
      %148 = sbr.rel (0) target = $region41
    $region40: #{number_enc_forward.4} parent=1 // pred_region
      _
    $region41: #{number_enc_forward.4} parent=1 // pred_fallthru
      _
    // Predicated region
    $region42: #{number_enc_forward.4} parent=1 // pred_check
      _
    $region43: #{number_enc_forward.4} parent=1 // pred_check_branch
      %150 = sbr.rel (0) target = $region45
    $region44: #{number_enc_forward.4} parent=1 // pred_region
      _
    $region45: #{number_enc_forward.4} parent=1 // pred_fallthru
      _
    // Predicated region
    $region46: #{number_enc_forward.4} parent=1 // pred_check
      _
    $region47: #{number_enc_forward.4} parent=1 // pred_check_branch
      %152 = sbr.rel (0) target = $region49
    $region48: #{number_enc_forward.4} parent=1 // pred_region
      _
    $region49: #{number_enc_forward.4} parent=1 // pred_fallthru
      _
    %153 = vsyncpa [#allocation3], 1
    %154 = vsyncpa [#allocation5], 1

// kernel: number_enc_forward.7
$region0: #{number_enc_forward.7}
  #allocation0 [shape = 'u32[]', space=smem, size = 0x4, offset = 0x4, fixed_abs, tag = 'smem constant byte address 0x4 - core index']
  #allocation1 [shape = 'u32[72,128]{1,0:T(1,128)}', space=vmem, size = 0x9000, scoped, tag = 'internal scratch']
  #allocation2 [shape = 'f32[2,32]{1,0:T(2,128)}', space=vmem, size = 0x400, scoped, tag = 'scratch operand']
  #allocation3 [shape = 'f32[2,32]{1,0:T(2,128)}', space=vmem, size = 0x400, scoped, tag = 'scratch operand']
  %s0 = inlined_call_operand.vmem [shape: f32[8,2,96], index: 0, kind: input, shape index: {}]
  %s1 = inlined_call_operand.vmem [shape: f32[8,2,96], index: 1, kind: input, shape index: {}]
  %s2 = inlined_call_operand.hbm [shape: f32[32,96], index: 2, kind: input, shape index: {}]
  %s3 = inlined_call_operand.hbm [shape: f32[32,96], index: 3, kind: input, shape index: {}]
  %s4 = inlined_call_operand.vmem [shape: f32[1,96], index: 4, kind: input, shape index: {}]
  %s5 = inlined_call_operand.vmem [shape: f32[1,96], index: 5, kind: input, shape index: {}]
  %s6 = inlined_call_operand.hbm [shape: f32[32,32], index: 6, kind: input, shape index: {}]
  %s7 = inlined_call_operand.vmem [shape: f32[1,32], index: 7, kind: input, shape index: {}]
  %s8 = inlined_call_operand.hbm [shape: f32[2,32], index: 8, kind: output, shape index: {}]
  %s9 = sld [smem:[#allocation0]]
  $region62: #{number_enc_forward.7} parent=0
    _
  %s11 = ssub.s32 1, %s9
  %s12 = scalar_select 0, %s11, %s9
  $region1: #{number_enc_forward.7} parent=0
    #allocation4 [shape = 'u8[16384]{0}', space=vmem, size = 0x4000, scoped, tag = 'input window, operand 2, single buffered']
    #allocation5 [shape = 's32[1]{0}', space=sflag, size = 0x4, scoped, tag = 'scoped memory for number_enc_forward.7']
    #allocation6 [shape = 's32[1]{0}', space=sflag, size = 0x4, scoped, tag = 'scoped memory for number_enc_forward.7']
    #allocation7 [shape = 'u8[16384]{0}', space=vmem, size = 0x4000, scoped, tag = 'input window, operand 3, single buffered']
    #allocation8 [shape = 's32[1]{0}', space=sflag, size = 0x4, scoped, tag = 'scoped memory for number_enc_forward.7']
    #allocation9 [shape = 'u8[16384]{0}', space=vmem, size = 0x4000, scoped, tag = 'input window, operand 6, single buffered']
    #allocation10 [shape = 'u8[1024]{0}', space=vmem, size = 0x400, scoped, tag = 'output window, operand 0, single buffered']
    %13 = vsyncpa [#allocation5], 0
    %14 = vsyncpa [#allocation8], 0
    %15 = vsyncpa [#allocation6], 0
    // Predicated region
    $region2: #{number_enc_forward.7} parent=1 // pred_check
      _
    $region3: #{number_enc_forward.7} parent=1 // pred_check_branch
      %17 = sbr.rel (0) target = $region5
    $region4: #{number_enc_forward.7} parent=1 // pred_region
      _
    $region5: #{number_enc_forward.7} parent=1 // pred_fallthru
      _
    // Predicated region
    $region6: #{number_enc_forward.7} parent=1 // pred_check
      _
    $region7: #{number_enc_forward.7} parent=1 // pred_check_branch
      %19 = sbr.rel (0) target = $region9
    $region8: #{number_enc_forward.7} parent=1 // pred_region
      %s20 = ssub.s32 0, 0
      %s21 = smul.u32 8, %s20
      %p22 = scmp.lt.s32.totalorder %s21, 7
      %s23 = scalar_select %p22, %s21, 7
      %s24 = smul.addr %s23, 2
      %s25 = scalar_lea.vmem %s1, %s24
      %s26 = ssub.s32 0, 0
      %s27 = smul.u32 8, %s26
    $region9: #{number_enc_forward.7} parent=1 // pred_fallthru
      _
    // Predicated region
    $region10: #{number_enc_forward.7} parent=1 // pred_check
      _
    $region11: #{number_enc_forward.7} parent=1 // pred_check_branch
      %29 = sbr.rel (0) target = $region13
    $region12: #{number_enc_forward.7} parent=1 // pred_region
      %31 = vsyncadd [#allocation5], 0
      %s32 = sshll.u32 %s2, 4
      %s33 = int_to_ptr.hbm [resolvable:$true] %s32
      %s34 = sshll.u32 [#allocation4], 4
      %s35 = int_to_ptr.vmem [resolvable:$true] %s34
      %40 = dma.hbm_to_vmem [thread:$0]  %s33, 512, %s35, [#allocation5], 128, 128, 8
    $region13: #{number_enc_forward.7} parent=1 // pred_fallthru
      _
    // Predicated region
    $region14: #{number_enc_forward.7} parent=1 // pred_check
      _
    $region15: #{number_enc_forward.7} parent=1 // pred_check_branch
      %42 = sbr.rel (0) target = $region17
    $region16: #{number_enc_forward.7} parent=1 // pred_region
      %44 = vsyncadd [#allocation8], 0
      %s45 = sshll.u32 %s3, 4
      %s46 = int_to_ptr.hbm [resolvable:$true] %s45
      %s47 = sshll.u32 [#allocation7], 4
      %s48 = int_to_ptr.vmem [resolvable:$true] %s47
      %53 = dma.hbm_to_vmem [thread:$0]  %s46, 512, %s48, [#allocation8], 128, 128, 8
    $region17: #{number_enc_forward.7} parent=1 // pred_fallthru
      _
    // Predicated region
    $region18: #{number_enc_forward.7} parent=1 // pred_check
      _
    $region19: #{number_enc_forward.7} parent=1 // pred_check_branch
      %55 = sbr.rel (0) target = $region21
    $region20: #{number_enc_forward.7} parent=1 // pred_region
      _
    $region21: #{number_enc_forward.7} parent=1 // pred_fallthru
      _
    // Predicated region
    $region22: #{number_enc_forward.7} parent=1 // pred_check
      _
    $region23: #{number_enc_forward.7} parent=1 // pred_check_branch
      %57 = sbr.rel (0) target = $region25
    $region24: #{number_enc_forward.7} parent=1 // pred_region
      _
    $region25: #{number_enc_forward.7} parent=1 // pred_fallthru
      _
    // Predicated region
    $region26: #{number_enc_forward.7} parent=1 // pred_check
      _
    $region27: #{number_enc_forward.7} parent=1 // pred_check_branch
      %59 = sbr.rel (0) target = $region29
    $region28: #{number_enc_forward.7} parent=1 // pred_region
      %61 = vsyncadd [#allocation8], 0
      %s62 = sshll.u32 %s6, 4
      %s63 = int_to_ptr.hbm [resolvable:$true] %s62
      %s64 = sshll.u32 [#allocation9], 4
      %s65 = int_to_ptr.vmem [resolvable:$true] %s64
      %70 = dma.hbm_to_vmem [thread:$0]  %s63, 512, %s65, [#allocation8], 128, 128, 8
    $region29: #{number_enc_forward.7} parent=1 // pred_fallthru
      _
    // Predicated region
    $region30: #{number_enc_forward.7} parent=1 // pred_check
      _
    $region31: #{number_enc_forward.7} parent=1 // pred_check_branch
      %72 = sbr.rel (0) target = $region33
    $region32: #{number_enc_forward.7} parent=1 // pred_region
      _
    $region33: #{number_enc_forward.7} parent=1 // pred_fallthru
      _
    // Predicated region
    $region34: #{number_enc_forward.7} parent=1 // pred_check
      _
    $region35: #{number_enc_forward.7} parent=1 // pred_check_branch
      %74 = sbr.rel (0) target = $region37
    $region36: #{number_enc_forward.7} parent=1 // pred_region
      %76 = dma.done [#allocation5], 512
    $region37: #{number_enc_forward.7} parent=1 // pred_fallthru
      _
    // Predicated region
    $region38: #{number_enc_forward.7} parent=1 // pred_check
      _
    $region39: #{number_enc_forward.7} parent=1 // pred_check_branch
      %78 = sbr.rel (0) target = $region41
    $region40: #{number_enc_forward.7} parent=1 // pred_region
      %80 = dma.done [#allocation8], 512
    $region41: #{number_enc_forward.7} parent=1 // pred_fallthru
      _
    // Predicated region
    $region42: #{number_enc_forward.7} parent=1 // pred_check
      _
    $region43: #{number_enc_forward.7} parent=1 // pred_check_branch
      %82 = sbr.rel (0) target = $region45
    $region44: #{number_enc_forward.7} parent=1 // pred_region
      %84 = dma.done [#allocation8], 512
    $region45: #{number_enc_forward.7} parent=1 // pred_fallthru
      _
    %s85 = ssub.s32 0, 0
    %s86 = smul.u32 8, %s85
    %p87 = scmp.lt.s32.totalorder %s86, 7
    %s88 = scalar_select %p87, %s86, 7
    %s89 = smul.addr %s88, 2
    %s90 = scalar_lea.vmem %s1, %s89
    %s91 = ssub.s32 0, 0
    %s92 = smul.u32 8, %s91
    %p93 = scmp.lt.s32.totalorder %s92, 7
    %s94 = scalar_select %p93, %s92, 7
    %s95 = smul.addr %s94, 2
    %s96 = scalar_lea.vmem %s1, %s95
    %s97 = ssub.s32 0, 0
    %s98 = smul.u32 8, %s97
    %p99 = scmp.eq.s32.totalorder 0, 0
    // Predicated region
    $region46: #{number_enc_forward.7} parent=1 // pred_check
      %p100 = pneg %p99
    $region47: #{number_enc_forward.7} parent=1 // pred_check_branch
      %102 = sbr.rel (%p100) target = $region49
    $region48: #{number_enc_forward.7} parent=1 // pred_region
      %vm103 = vcmask 254976
      %104 = vst.msk [vmem:[#allocation2] sm:$0x3] %vm103, 0.0
      %105 = vst.msk [vmem:[#allocation3] sm:$0x3] %vm103, 0.0
    $region49: #{number_enc_forward.7} parent=1 // pred_fallthru
      _
    %v106 = vld [vmem:[#allocation2] sm:$0x3]
    %v107 = vld [vmem:[#allocation3] sm:$0x3]
    %v108 = vld [vmem:[#allocation4] sm:$0xff]
    %v109 = vld [vmem:[#allocation4 + $0x8] sm:$0xff]
    %v110 = vld [vmem:[#allocation4 + $0x10] sm:$0xff]
    %v111 = vld [vmem:[#allocation4 + $0x18] sm:$0xff]
    %v112 = vld [vmem:[#allocation7] sm:$0xff]
    %v113 = vld [vmem:[#allocation7 + $0x8] sm:$0xff]
    %v114 = vld [vmem:[#allocation7 + $0x10] sm:$0xff]
    %v115 = vld [vmem:[#allocation7 + $0x18] sm:$0xff]
    %v116 = vld [vmem:[%s4] sm:$0x1]
    %v117 = vld [vmem:[%s5] sm:$0x1]
    %v118 = vld [vmem:[%s0] sm:$0x3]
    %v120 = vperm.slane %v116, 0
    %vm122 = vcmask 261120
    %v124 = vsel %vm122, %v106, 0
    %126 = vmatpush.msra.mxu0 0.0
    %127 = vmatpush.msra.mxu0 0.0
    %128 = vmatpush.msra.mxu0 0.0
    %129 = vmatpush.msra.mxu0 0.0
    %130 = vmatpush.msra.mxu0 0.0
    %131 = vmatpush.msra.mxu0 0.0
    %132 = vmatpush.msra.mxu0 0.0
    %133 = vmatpush.msra.mxu0 0.0
    %134 = vmatpush.msra.mxu0 0.0
    %135 = vmatpush.msra.mxu0 0.0
    %136 = vmatpush.msra.mxu0 0.0
    %137 = vmatpush.msra.mxu0 0.0
    %138 = vmatpush.msra.mxu0 %v111
    %139 = vmatpush.msra.mxu0 %v110
    %140 = vmatpush.msra.mxu0 %v109
    %141 = vmatpush.msra.mxu0 %v108
    %142 = vmatmul.f32.gmra.mxu0 %v124
    %v143 = vpop.f32.mrf.mxu0
    %v144 = vadd.f32 %v120, %v143
    %145 = vdwg.mxu0
    %v146 = vadd.f32 %v118, %v144
    %v147 = vxor.u32 %v146, 2147483648
    %v148 = vmul.f32 %v147, 1.442695
    %v149 = vpow.pop %v148
    %v150 = vadd.f32 %v149, 1.0
    %v151 = vrcp.pop %v150
    %v152 = vmul.f32 %v150, %v151
    %v153 = vsub.f32 1.0, %v152
    %v154 = vmul.f32 %v151, %v153
    %v155 = vadd.f32 %v151, %v154
    %vm156 = vweird.f32 %v150
    %vm157 = vweird.f32 %v151
    %vm158 = vmor %vm156, %vm157
    %v159 = vsel %vm158, %v151, %v155
    %v160 = vand.u32 2147483647, %v150
    %vm161 = vcmp.eq.f32.partialorder %v160, 8.507059e+37
    %v162 = vand.u32 %v150, 2147483648
    %v163 = vor.u32 1.1754944e-38, %v162
    %v164 = vsel %vm161, %v163, %v159
    %v165 = vmul.f32 1.0, %v164
    %167 = vrot.lane.b32.xlu0 %v144, 64
    %v168 = vpop.permute.xlu0 %167
    %v170 = vmul.f32 %v165, %v168
    %172 = vrot.lane.b32.xlu0 %v170, 64
    %v173 = vpop.permute.xlu0 %172
    %v175 = vadd.f32 %v118, %v173
    %v176 = vtanh.pop %v175
    %v177 = vsub.f32 1.0, %v165
    %179 = vrot.lane.b32.xlu0 %v176, 96
    %v180 = vpop.permute.xlu0 %179
    %v182 = vmul.f32 %v177, %v180
    %183 = vrot.lane.b32.xlu0 %v106, 32
    %v184 = vpop.permute.xlu0 %183
    %v186 = vmul.f32 %v165, %v184
    %v187 = vadd.f32 %v182, %v186
    %s188 = scalar_lea.vmem %s96, 14
    %v189 = vld [vmem:[%s188] sm:$0x3]
    %v191 = vperm.slane %v117, 0
    %v194 = vsel %vm122, %v107, 0
    %196 = vmatpush.msra.mxu0 0.0
    %197 = vmatpush.msra.mxu0 0.0
    %198 = vmatpush.msra.mxu0 0.0
    %199 = vmatpush.msra.mxu0 0.0
    %200 = vmatpush.msra.mxu0 0.0
    %201 = vmatpush.msra.mxu0 0.0
    %202 = vmatpush.msra.mxu0 0.0
    %203 = vmatpush.msra.mxu0 0.0
    %204 = vmatpush.msra.mxu0 0.0
    %205 = vmatpush.msra.mxu0 0.0
    %206 = vmatpush.msra.mxu0 0.0
    %207 = vmatpush.msra.mxu0 0.0
    %208 = vmatpush.msra.mxu0 %v115
    %209 = vmatpush.msra.mxu0 %v114
    %210 = vmatpush.msra.mxu0 %v113
    %211 = vmatpush.msra.mxu0 %v112
    %212 = vmatmul.f32.gmra.mxu0 %v194
    %v213 = vpop.f32.mrf.mxu0
    %v214 = vadd.f32 %v191, %v213
    %215 = vdwg.mxu0
    %v216 = vadd.f32 %v189, %v214
    %v217 = vxor.u32 %v216, 2147483648
    %v218 = vmul.f32 %v217, 1.442695
    %v219 = vpow.pop %v218
    %v220 = vadd.f32 %v219, 1.0
    %v221 = vrcp.pop %v220
    %v222 = vmul.f32 %v220, %v221
    %v223 = vsub.f32 1.0, %v222
    %v224 = vmul.f32 %v221, %v223
    %v225 = vadd.f32 %v221, %v224
    %vm226 = vweird.f32 %v220
    %vm227 = vweird.f32 %v221
    %vm228 = vmor %vm226, %vm227
    %v229 = vsel %vm228, %v221, %v225
    %v230 = vand.u32 2147483647, %v220
    %vm231 = vcmp.eq.f32.partialorder %v230, 8.507059e+37
    %v232 = vand.u32 %v220, 2147483648
    %v233 = vor.u32 1.1754944e-38, %v232
    %v234 = vsel %vm231, %v233, %v229
    %v235 = vmul.f32 1.0, %v234
    %237 = vrot.lane.b32.xlu0 %v214, 64
    %v238 = vpop.permute.xlu0 %237
    %v240 = vmul.f32 %v235, %v238
    %242 = vrot.lane.b32.xlu0 %v240, 64
    %v243 = vpop.permute.xlu0 %242
    %v245 = vadd.f32 %v189, %v243
    %v246 = vtanh.pop %v245
    %v247 = vsub.f32 1.0, %v235
    %249 = vrot.lane.b32.xlu0 %v246, 96
    %v250 = vpop.permute.xlu0 %249
    %v252 = vmul.f32 %v247, %v250
    %253 = vrot.lane.b32.xlu0 %v107, 32
    %v254 = vpop.permute.xlu0 %253
    %v256 = vmul.f32 %v235, %v254
    %v257 = vadd.f32 %v252, %v256
    %s258 = scalar_lea.vmem %s0, 2
    %v259 = vld [vmem:[%s258] sm:$0x3]
    %261 = vrot.lane.b32.xlu0 %v187, 96
    %v262 = vpop.permute.xlu0 %261
    %v263 = vsel %vm122, %v262, 0
    %265 = vmatpush.msra.mxu0 0.0
    %266 = vmatpush.msra.mxu0 0.0
    %267 = vmatpush.msra.mxu0 0.0
    %268 = vmatpush.msra.mxu0 0.0
    %269 = vmatpush.msra.mxu0 0.0
    %270 = vmatpush.msra.mxu0 0.0
    %271 = vmatpush.msra.mxu0 0.0
    %272 = vmatpush.msra.mxu0 0.0
    %273 = vmatpush.msra.mxu0 0.0
    %274 = vmatpush.msra.mxu0 0.0
    %275 = vmatpush.msra.mxu0 0.0
    %276 = vmatpush.msra.mxu0 0.0
    %277 = vmatpush.msra.mxu0 %v111
    %278 = vmatpush.msra.mxu0 %v110
    %279 = vmatpush.msra.mxu0 %v109
    %280 = vmatpush.msra.mxu0 %v108
    %281 = vmatmul.f32.gmra.mxu0 %v263
    %v282 = vpop.f32.mrf.mxu0
    %v283 = vadd.f32 %v120, %v282
    %284 = vdwg.mxu0
    %v285 = vadd.f32 %v259, %v283
    %v286 = vxor.u32 %v285, 2147483648
    %v287 = vmul.f32 %v286, 1.442695
    %v288 = vpow.pop %v287
    %v289 = vadd.f32 %v288, 1.0
    %v290 = vrcp.pop %v289
    %v291 = vmul.f32 %v289, %v290
    %v292 = vsub.f32 1.0, %v291
    %v293 = vmul.f32 %v290, %v292
    %v294 = vadd.f32 %v290, %v293
    %vm295 = vweird.f32 %v289
    %vm296 = vweird.f32 %v290
    %vm297 = vmor %vm295, %vm296
    %v298 = vsel %vm297, %v290, %v294
    %v299 = vand.u32 2147483647, %v289
    %vm300 = vcmp.eq.f32.partialorder %v299, 8.507059e+37
    %v301 = vand.u32 %v289, 2147483648
    %v302 = vor.u32 1.1754944e-38, %v301
    %v303 = vsel %vm300, %v302, %v298
    %v304 = vmul.f32 1.0, %v303
    %306 = vrot.lane.b32.xlu0 %v283, 64
    %v307 = vpop.permute.xlu0 %306
    %v309 = vmul.f32 %v304, %v307
    %311 = vrot.lane.b32.xlu0 %v309, 64
    %v312 = vpop.permute.xlu0 %311
    %v314 = vadd.f32 %v259, %v312
    %v315 = vtanh.pop %v314
    %v316 = vsub.f32 1.0, %v304
    %318 = vrot.lane.b32.xlu0 %v315, 96
    %v319 = vpop.permute.xlu0 %318
    %v321 = vmul.f32 %v316, %v319
    %v322 = vmul.f32 %v304, %v187
    %v323 = vadd.f32 %v321, %v322
    %s324 = scalar_lea.vmem %s96, 12
    %v325 = vld [vmem:[%s324] sm:$0x3]
    %327 = vrot.lane.b32.xlu0 %v257, 96
    %v328 = vpop.permute.xlu0 %327
    %v329 = vsel %vm122, %v328, 0
    %331 = vmatpush.msra.mxu0 0.0
    %332 = vmatpush.msra.mxu0 0.0
    %333 = vmatpush.msra.mxu0 0.0
    %334 = vmatpush.msra.mxu0 0.0
    %335 = vmatpush.msra.mxu0 0.0
    %336 = vmatpush.msra.mxu0 0.0
    %337 = vmatpush.msra.mxu0 0.0
    %338 = vmatpush.msra.mxu0 0.0
    %339 = vmatpush.msra.mxu0 0.0
    %340 = vmatpush.msra.mxu0 0.0
    %341 = vmatpush.msra.mxu0 0.0
    %342 = vmatpush.msra.mxu0 0.0
    %343 = vmatpush.msra.mxu0 %v115
    %344 = vmatpush.msra.mxu0 %v114
    %345 = vmatpush.msra.mxu0 %v113
    %346 = vmatpush.msra.mxu0 %v112
    %347 = vmatmul.f32.gmra.mxu0 %v329
    %v348 = vpop.f32.mrf.mxu0
    %v349 = vadd.f32 %v191, %v348
    %350 = vdwg.mxu0
    %v351 = vadd.f32 %v325, %v349
    %v352 = vxor.u32 %v351, 2147483648
    %v353 = vmul.f32 %v352, 1.442695
    %v354 = vpow.pop %v353
    %v355 = vadd.f32 %v354, 1.0
    %v356 = vrcp.pop %v355
    %v357 = vmul.f32 %v355, %v356
    %v358 = vsub.f32 1.0, %v357
    %v359 = vmul.f32 %v356, %v358
    %v360 = vadd.f32 %v356, %v359
    %vm361 = vweird.f32 %v355
    %vm362 = vweird.f32 %v356
    %vm363 = vmor %vm361, %vm362
    %v364 = vsel %vm363, %v356, %v360
    %v365 = vand.u32 2147483647, %v355
    %vm366 = vcmp.eq.f32.partialorder %v365, 8.507059e+37
    %v367 = vand.u32 %v355, 2147483648
    %v368 = vor.u32 1.1754944e-38, %v367
    %v369 = vsel %vm366, %v368, %v364
    %v370 = vmul.f32 1.0, %v369
    %372 = vrot.lane.b32.xlu0 %v349, 64
    %v373 = vpop.permute.xlu0 %372
    %v375 = vmul.f32 %v370, %v373
    %377 = vrot.lane.b32.xlu0 %v375, 64
    %v378 = vpop.permute.xlu0 %377
    %v380 = vadd.f32 %v325, %v378
    %v381 = vtanh.pop %v380
    %v382 = vsub.f32 1.0, %v370
    %384 = vrot.lane.b32.xlu0 %v381, 96
    %v385 = vpop.permute.xlu0 %384
    %v387 = vmul.f32 %v382, %v385
    %v388 = vmul.f32 %v370, %v257
    %v389 = vadd.f32 %v387, %v388
    %s390 = scalar_lea.vmem %s0, 4
    %v391 = vld [vmem:[%s390] sm:$0x3]
    %393 = vrot.lane.b32.xlu0 %v323, 96
    %v394 = vpop.permute.xlu0 %393
    %v395 = vsel %vm122, %v394, 0
    %397 = vmatpush.msra.mxu0 0.0
    %398 = vmatpush.msra.mxu0 0.0
    %399 = vmatpush.msra.mxu0 0.0
    %400 = vmatpush.msra.mxu0 0.0
    %401 = vmatpush.msra.mxu0 0.0
    %402 = vmatpush.msra.mxu0 0.0
    %403 = vmatpush.msra.mxu0 0.0
    %404 = vmatpush.msra.mxu0 0.0
    %405 = vmatpush.msra.mxu0 0.0
    %406 = vmatpush.msra.mxu0 0.0
    %407 = vmatpush.msra.mxu0 0.0
    %408 = vmatpush.msra.mxu0 0.0
    %409 = vmatpush.msra.mxu0 %v111
    %410 = vmatpush.msra.mxu0 %v110
    %411 = vmatpush.msra.mxu0 %v109
    %412 = vmatpush.msra.mxu0 %v108
    %413 = vmatmul.f32.gmra.mxu0 %v395
    %v414 = vpop.f32.mrf.mxu0
    %v415 = vadd.f32 %v120, %v414
    %416 = vdwg.mxu0
    %v417 = vadd.f32 %v391, %v415
    %v418 = vxor.u32 %v417, 2147483648
    %v419 = vmul.f32 %v418, 1.442695
    %v420 = vpow.pop %v419
    %v421 = vadd.f32 %v420, 1.0
    %v422 = vrcp.pop %v421
    %v423 = vmul.f32 %v421, %v422
    %v424 = vsub.f32 1.0, %v423
    %v425 = vmul.f32 %v422, %v424
    %v426 = vadd.f32 %v422, %v425
    %vm427 = vweird.f32 %v421
    %vm428 = vweird.f32 %v422
    %vm429 = vmor %vm427, %vm428
    %v430 = vsel %vm429, %v422, %v426
    %v431 = vand.u32 2147483647, %v421
    %vm432 = vcmp.eq.f32.partialorder %v431, 8.507059e+37
    %v433 = vand.u32 %v421, 2147483648
    %v434 = vor.u32 1.1754944e-38, %v433
    %v435 = vsel %vm432, %v434, %v430
    %v436 = vmul.f32 1.0, %v435
    %438 = vrot.lane.b32.xlu0 %v415, 64
    %v439 = vpop.permute.xlu0 %438
    %v441 = vmul.f32 %v436, %v439
    %443 = vrot.lane.b32.xlu0 %v441, 64
    %v444 = vpop.permute.xlu0 %443
    %v446 = vadd.f32 %v391, %v444
    %v447 = vtanh.pop %v446
    %v448 = vsub.f32 1.0, %v436
    %450 = vrot.lane.b32.xlu0 %v447, 96
    %v451 = vpop.permute.xlu0 %450
    %v453 = vmul.f32 %v448, %v451
    %v454 = vmul.f32 %v436, %v323
    %v455 = vadd.f32 %v453, %v454
    %s456 = scalar_lea.vmem %s96, 10
    %v457 = vld [vmem:[%s456] sm:$0x3]
    %459 = vrot.lane.b32.xlu0 %v389, 96
    %v460 = vpop.permute.xlu0 %459
    %v461 = vsel %vm122, %v460, 0
    %463 = vmatpush.msra.mxu0 0.0
    %464 = vmatpush.msra.mxu0 0.0
    %465 = vmatpush.msra.mxu0 0.0
    %466 = vmatpush.msra.mxu0 0.0
    %467 = vmatpush.msra.mxu0 0.0
    %468 = vmatpush.msra.mxu0 0.0
    %469 = vmatpush.msra.mxu0 0.0
    %470 = vmatpush.msra.mxu0 0.0
    %471 = vmatpush.msra.mxu0 0.0
    %472 = vmatpush.msra.mxu0 0.0
    %473 = vmatpush.msra.mxu0 0.0
    %474 = vmatpush.msra.mxu0 0.0
    %475 = vmatpush.msra.mxu0 %v115
    %476 = vmatpush.msra.mxu0 %v114
    %477 = vmatpush.msra.mxu0 %v113
    %478 = vmatpush.msra.mxu0 %v112
    %479 = vmatmul.f32.gmra.mxu0 %v461
    %v480 = vpop.f32.mrf.mxu0
    %v481 = vadd.f32 %v191, %v480
    %482 = vdwg.mxu0
    %v483 = vadd.f32 %v457, %v481
    %v484 = vxor.u32 %v483, 2147483648
    %v485 = vmul.f32 %v484, 1.442695
    %v486 = vpow.pop %v485
    %v487 = vadd.f32 %v486, 1.0
    %v488 = vrcp.pop %v487
    %v489 = vmul.f32 %v487, %v488
    %v490 = vsub.f32 1.0, %v489
    %v491 = vmul.f32 %v488, %v490
    %v492 = vadd.f32 %v488, %v491
    %vm493 = vweird.f32 %v487
    %vm494 = vweird.f32 %v488
    %vm495 = vmor %vm493, %vm494
    %v496 = vsel %vm495, %v488, %v492
    %v497 = vand.u32 2147483647, %v487
    %vm498 = vcmp.eq.f32.partialorder %v497, 8.507059e+37
    %v499 = vand.u32 %v487, 2147483648
    %v500 = vor.u32 1.1754944e-38, %v499
    %v501 = vsel %vm498, %v500, %v496
    %v502 = vmul.f32 1.0, %v501
    %504 = vrot.lane.b32.xlu0 %v481, 64
    %v505 = vpop.permute.xlu0 %504
    %v507 = vmul.f32 %v502, %v505
    %509 = vrot.lane.b32.xlu0 %v507, 64
    %v510 = vpop.permute.xlu0 %509
    %v512 = vadd.f32 %v457, %v510
    %v513 = vtanh.pop %v512
    %v514 = vsub.f32 1.0, %v502
    %516 = vrot.lane.b32.xlu0 %v513, 96
    %v517 = vpop.permute.xlu0 %516
    %v519 = vmul.f32 %v514, %v517
    %v520 = vmul.f32 %v502, %v389
    %v521 = vadd.f32 %v519, %v520
    %s522 = scalar_lea.vmem %s0, 6
    %v523 = vld [vmem:[%s522] sm:$0x3]
    %525 = vrot.lane.b32.xlu0 %v455, 96
    %v526 = vpop.permute.xlu0 %525
    %v527 = vsel %vm122, %v526, 0
    %529 = vmatpush.msra.mxu0 0.0
    %530 = vmatpush.msra.mxu0 0.0
    %531 = vmatpush.msra.mxu0 0.0
    %532 = vmatpush.msra.mxu0 0.0
    %533 = vmatpush.msra.mxu0 0.0
    %534 = vmatpush.msra.mxu0 0.0
    %535 = vmatpush.msra.mxu0 0.0
    %536 = vmatpush.msra.mxu0 0.0
    %537 = vmatpush.msra.mxu0 0.0
    %538 = vmatpush.msra.mxu0 0.0
    %539 = vmatpush.msra.mxu0 0.0
    %540 = vmatpush.msra.mxu0 0.0
    %541 = vmatpush.msra.mxu0 %v111
    %542 = vmatpush.msra.mxu0 %v110
    %543 = vmatpush.msra.mxu0 %v109
    %544 = vmatpush.msra.mxu0 %v108
    %545 = vmatmul.f32.gmra.mxu0 %v527
    %v546 = vpop.f32.mrf.mxu0
    %v547 = vadd.f32 %v120, %v546
    %548 = vdwg.mxu0
    %v549 = vadd.f32 %v523, %v547
    %v550 = vxor.u32 %v549, 2147483648
    %v551 = vmul.f32 %v550, 1.442695
    %v552 = vpow.pop %v551
    %v553 = vadd.f32 %v552, 1.0
    %v554 = vrcp.pop %v553
    %v555 = vmul.f32 %v553, %v554
    %v556 = vsub.f32 1.0, %v555
    %v557 = vmul.f32 %v554, %v556
    %v558 = vadd.f32 %v554, %v557
    %vm559 = vweird.f32 %v553
    %vm560 = vweird.f32 %v554
    %vm561 = vmor %vm559, %vm560
    %v562 = vsel %vm561, %v554, %v558
    %v563 = vand.u32 2147483647, %v553
    %vm564 = vcmp.eq.f32.partialorder %v563, 8.507059e+37
    %v565 = vand.u32 %v553, 2147483648
    %v566 = vor.u32 1.1754944e-38, %v565
    %v567 = vsel %vm564, %v566, %v562
    %v568 = vmul.f32 1.0, %v567
    %570 = vrot.lane.b32.xlu0 %v547, 64
    %v571 = vpop.permute.xlu0 %570
    %v573 = vmul.f32 %v568, %v571
    %575 = vrot.lane.b32.xlu0 %v573, 64
    %v576 = vpop.permute.xlu0 %575
    %v578 = vadd.f32 %v523, %v576
    %v579 = vtanh.pop %v578
    %v580 = vsub.f32 1.0, %v568
    %582 = vrot.lane.b32.xlu0 %v579, 96
    %v583 = vpop.permute.xlu0 %582
    %v585 = vmul.f32 %v580, %v583
    %v586 = vmul.f32 %v568, %v455
    %v587 = vadd.f32 %v585, %v586
    %s588 = scalar_lea.vmem %s96, 8
    %v589 = vld [vmem:[%s588] sm:$0x3]
    %591 = vrot.lane.b32.xlu0 %v521, 96
    %v592 = vpop.permute.xlu0 %591
    %v593 = vsel %vm122, %v592, 0
    %595 = vmatpush.msra.mxu0 0.0
    %596 = vmatpush.msra.mxu0 0.0
    %597 = vmatpush.msra.mxu0 0.0
    %598 = vmatpush.msra.mxu0 0.0
    %599 = vmatpush.msra.mxu0 0.0
    %600 = vmatpush.msra.mxu0 0.0
    %601 = vmatpush.msra.mxu0 0.0
    %602 = vmatpush.msra.mxu0 0.0
    %603 = vmatpush.msra.mxu0 0.0
    %604 = vmatpush.msra.mxu0 0.0
    %605 = vmatpush.msra.mxu0 0.0
    %606 = vmatpush.msra.mxu0 0.0
    %607 = vmatpush.msra.mxu0 %v115
    %608 = vmatpush.msra.mxu0 %v114
    %609 = vmatpush.msra.mxu0 %v113
    %610 = vmatpush.msra.mxu0 %v112
    %611 = vmatmul.f32.gmra.mxu0 %v593
    %v612 = vpop.f32.mrf.mxu0
    %v613 = vadd.f32 %v191, %v612
    %614 = vdwg.mxu0
    %v615 = vadd.f32 %v589, %v613
    %v616 = vxor.u32 %v615, 2147483648
    %v617 = vmul.f32 %v616, 1.442695
    %v618 = vpow.pop %v617
    %v619 = vadd.f32 %v618, 1.0
    %v620 = vrcp.pop %v619
    %v621 = vmul.f32 %v619, %v620
    %v622 = vsub.f32 1.0, %v621
    %v623 = vmul.f32 %v620, %v622
    %v624 = vadd.f32 %v620, %v623
    %vm625 = vweird.f32 %v619
    %vm626 = vweird.f32 %v620
    %vm627 = vmor %vm625, %vm626
    %v628 = vsel %vm627, %v620, %v624
    %v629 = vand.u32 2147483647, %v619
    %vm630 = vcmp.eq.f32.partialorder %v629, 8.507059e+37
    %v631 = vand.u32 %v619, 2147483648
    %v632 = vor.u32 1.1754944e-38, %v631
    %v633 = vsel %vm630, %v632, %v628
    %v634 = vmul.f32 1.0, %v633
    %636 = vrot.lane.b32.xlu0 %v613, 64
    %v637 = vpop.permute.xlu0 %636
    %v639 = vmul.f32 %v634, %v637
    %641 = vrot.lane.b32.xlu0 %v639, 64
    %v642 = vpop.permute.xlu0 %641
    %v644 = vadd.f32 %v589, %v642
    %v645 = vtanh.pop %v644
    %v646 = vsub.f32 1.0, %v634
    %648 = vrot.lane.b32.xlu0 %v645, 96
    %v649 = vpop.permute.xlu0 %648
    %v651 = vmul.f32 %v646, %v649
    %v652 = vmul.f32 %v634, %v521
    %v653 = vadd.f32 %v651, %v652
    %s654 = scalar_lea.vmem %s0, 8
    %v655 = vld [vmem:[%s654] sm:$0x3]
    %657 = vrot.lane.b32.xlu0 %v587, 96
    %v658 = vpop.permute.xlu0 %657
    %v659 = vsel %vm122, %v658, 0
    %661 = vmatpush.msra.mxu0 0.0
    %662 = vmatpush.msra.mxu0 0.0
    %663 = vmatpush.msra.mxu0 0.0
    %664 = vmatpush.msra.mxu0 0.0
    %665 = vmatpush.msra.mxu0 0.0
    %666 = vmatpush.msra.mxu0 0.0
    %667 = vmatpush.msra.mxu0 0.0
    %668 = vmatpush.msra.mxu0 0.0
    %669 = vmatpush.msra.mxu0 0.0
    %670 = vmatpush.msra.mxu0 0.0
    %671 = vmatpush.msra.mxu0 0.0
    %672 = vmatpush.msra.mxu0 0.0
    %673 = vmatpush.msra.mxu0 %v111
    %674 = vmatpush.msra.mxu0 %v110
    %675 = vmatpush.msra.mxu0 %v109
    %676 = vmatpush.msra.mxu0 %v108
    %677 = vmatmul.f32.gmra.mxu0 %v659
    %v678 = vpop.f32.mrf.mxu0
    %v679 = vadd.f32 %v120, %v678
    %680 = vdwg.mxu0
    %v681 = vadd.f32 %v655, %v679
    %v682 = vxor.u32 %v681, 2147483648
    %v683 = vmul.f32 %v682, 1.442695
    %v684 = vpow.pop %v683
    %v685 = vadd.f32 %v684, 1.0
    %v686 = vrcp.pop %v685
    %v687 = vmul.f32 %v685, %v686
    %v688 = vsub.f32 1.0, %v687
    %v689 = vmul.f32 %v686, %v688
    %v690 = vadd.f32 %v686, %v689
    %vm691 = vweird.f32 %v685
    %vm692 = vweird.f32 %v686
    %vm693 = vmor %vm691, %vm692
    %v694 = vsel %vm693, %v686, %v690
    %v695 = vand.u32 2147483647, %v685
    %vm696 = vcmp.eq.f32.partialorder %v695, 8.507059e+37
    %v697 = vand.u32 %v685, 2147483648
    %v698 = vor.u32 1.1754944e-38, %v697
    %v699 = vsel %vm696, %v698, %v694
    %v700 = vmul.f32 1.0, %v699
    %702 = vrot.lane.b32.xlu0 %v679, 64
    %v703 = vpop.permute.xlu0 %702
    %v705 = vmul.f32 %v700, %v703
    %707 = vrot.lane.b32.xlu0 %v705, 64
    %v708 = vpop.permute.xlu0 %707
    %v710 = vadd.f32 %v655, %v708
    %v711 = vtanh.pop %v710
    %v712 = vsub.f32 1.0, %v700
    %714 = vrot.lane.b32.xlu0 %v711, 96
    %v715 = vpop.permute.xlu0 %714
    %v717 = vmul.f32 %v712, %v715
    %v718 = vmul.f32 %v700, %v587
    %v719 = vadd.f32 %v717, %v718
    %s720 = scalar_lea.vmem %s96, 6
    %v721 = vld [vmem:[%s720] sm:$0x3]
    %723 = vrot.lane.b32.xlu0 %v653, 96
    %v724 = vpop.permute.xlu0 %723
    %v725 = vsel %vm122, %v724, 0
    %727 = vmatpush.msra.mxu0 0.0
    %728 = vmatpush.msra.mxu0 0.0
    %729 = vmatpush.msra.mxu0 0.0
    %730 = vmatpush.msra.mxu0 0.0
    %731 = vmatpush.msra.mxu0 0.0
    %732 = vmatpush.msra.mxu0 0.0
    %733 = vmatpush.msra.mxu0 0.0
    %734 = vmatpush.msra.mxu0 0.0
    %735 = vmatpush.msra.mxu0 0.0
    %736 = vmatpush.msra.mxu0 0.0
    %737 = vmatpush.msra.mxu0 0.0
    %738 = vmatpush.msra.mxu0 0.0
    %739 = vmatpush.msra.mxu0 %v115
    %740 = vmatpush.msra.mxu0 %v114
    %741 = vmatpush.msra.mxu0 %v113
    %742 = vmatpush.msra.mxu0 %v112
    %743 = vmatmul.f32.gmra.mxu0 %v725
    %v744 = vpop.f32.mrf.mxu0
    %v745 = vadd.f32 %v191, %v744
    %746 = vdwg.mxu0
    %v747 = vadd.f32 %v721, %v745
    %v748 = vxor.u32 %v747, 2147483648
    %v749 = vmul.f32 %v748, 1.442695
    %v750 = vpow.pop %v749
    %v751 = vadd.f32 %v750, 1.0
    %v752 = vrcp.pop %v751
    %v753 = vmul.f32 %v751, %v752
    %v754 = vsub.f32 1.0, %v753
    %v755 = vmul.f32 %v752, %v754
    %v756 = vadd.f32 %v752, %v755
    %vm757 = vweird.f32 %v751
    %vm758 = vweird.f32 %v752
    %vm759 = vmor %vm757, %vm758
    %v760 = vsel %vm759, %v752, %v756
    %v761 = vand.u32 2147483647, %v751
    %vm762 = vcmp.eq.f32.partialorder %v761, 8.507059e+37
    %v763 = vand.u32 %v751, 2147483648
    %v764 = vor.u32 1.1754944e-38, %v763
    %v765 = vsel %vm762, %v764, %v760
    %v766 = vmul.f32 1.0, %v765
    %768 = vrot.lane.b32.xlu0 %v745, 64
    %v769 = vpop.permute.xlu0 %768
    %v771 = vmul.f32 %v766, %v769
    %773 = vrot.lane.b32.xlu0 %v771, 64
    %v774 = vpop.permute.xlu0 %773
    %v776 = vadd.f32 %v721, %v774
    %v777 = vtanh.pop %v776
    %v778 = vsub.f32 1.0, %v766
    %780 = vrot.lane.b32.xlu0 %v777, 96
    %v781 = vpop.permute.xlu0 %780
    %v783 = vmul.f32 %v778, %v781
    %v784 = vmul.f32 %v766, %v653
    %v785 = vadd.f32 %v783, %v784
    %s786 = scalar_lea.vmem %s0, 10
    %v787 = vld [vmem:[%s786] sm:$0x3]
    %789 = vrot.lane.b32.xlu0 %v719, 96
    %v790 = vpop.permute.xlu0 %789
    %v791 = vsel %vm122, %v790, 0
    %793 = vmatpush.msra.mxu0 0.0
    %794 = vmatpush.msra.mxu0 0.0
    %795 = vmatpush.msra.mxu0 0.0
    %796 = vmatpush.msra.mxu0 0.0
    %797 = vmatpush.msra.mxu0 0.0
    %798 = vmatpush.msra.mxu0 0.0
    %799 = vmatpush.msra.mxu0 0.0
    %800 = vmatpush.msra.mxu0 0.0
    %801 = vmatpush.msra.mxu0 0.0
    %802 = vmatpush.msra.mxu0 0.0
    %803 = vmatpush.msra.mxu0 0.0
    %804 = vmatpush.msra.mxu0 0.0
    %805 = vmatpush.msra.mxu0 %v111
    %806 = vmatpush.msra.mxu0 %v110
    %807 = vmatpush.msra.mxu0 %v109
    %808 = vmatpush.msra.mxu0 %v108
    %809 = vmatmul.f32.gmra.mxu0 %v791
    %v810 = vpop.f32.mrf.mxu0
    %v811 = vadd.f32 %v120, %v810
    %812 = vdwg.mxu0
    %v813 = vadd.f32 %v787, %v811
    %v814 = vxor.u32 %v813, 2147483648
    %v815 = vmul.f32 %v814, 1.442695
    %v816 = vpow.pop %v815
    %v817 = vadd.f32 %v816, 1.0
    %v818 = vrcp.pop %v817
    %v819 = vmul.f32 %v817, %v818
    %v820 = vsub.f32 1.0, %v819
    %v821 = vmul.f32 %v818, %v820
    %v822 = vadd.f32 %v818, %v821
    %vm823 = vweird.f32 %v817
    %vm824 = vweird.f32 %v818
    %vm825 = vmor %vm823, %vm824
    %v826 = vsel %vm825, %v818, %v822
    %v827 = vand.u32 2147483647, %v817
    %vm828 = vcmp.eq.f32.partialorder %v827, 8.507059e+37
    %v829 = vand.u32 %v817, 2147483648
    %v830 = vor.u32 1.1754944e-38, %v829
    %v831 = vsel %vm828, %v830, %v826
    %v832 = vmul.f32 1.0, %v831
    %834 = vrot.lane.b32.xlu0 %v811, 64
    %v835 = vpop.permute.xlu0 %834
    %v837 = vmul.f32 %v832, %v835
    %839 = vrot.lane.b32.xlu0 %v837, 64
    %v840 = vpop.permute.xlu0 %839
    %v842 = vadd.f32 %v787, %v840
    %v843 = vtanh.pop %v842
    %v844 = vsub.f32 1.0, %v832
    %846 = vrot.lane.b32.xlu0 %v843, 96
    %v847 = vpop.permute.xlu0 %846
    %v849 = vmul.f32 %v844, %v847
    %v850 = vmul.f32 %v832, %v719
    %v851 = vadd.f32 %v849, %v850
    %s852 = scalar_lea.vmem %s96, 4
    %v853 = vld [vmem:[%s852] sm:$0x3]
    %855 = vrot.lane.b32.xlu0 %v785, 96
    %v856 = vpop.permute.xlu0 %855
    %v857 = vsel %vm122, %v856, 0
    %859 = vmatpush.msra.mxu0 0.0
    %860 = vmatpush.msra.mxu0 0.0
    %861 = vmatpush.msra.mxu0 0.0
    %862 = vmatpush.msra.mxu0 0.0
    %863 = vmatpush.msra.mxu0 0.0
    %864 = vmatpush.msra.mxu0 0.0
    %865 = vmatpush.msra.mxu0 0.0
    %866 = vmatpush.msra.mxu0 0.0
    %867 = vmatpush.msra.mxu0 0.0
    %868 = vmatpush.msra.mxu0 0.0
    %869 = vmatpush.msra.mxu0 0.0
    %870 = vmatpush.msra.mxu0 0.0
    %871 = vmatpush.msra.mxu0 %v115
    %872 = vmatpush.msra.mxu0 %v114
    %873 = vmatpush.msra.mxu0 %v113
    %874 = vmatpush.msra.mxu0 %v112
    %875 = vmatmul.f32.gmra.mxu0 %v857
    %v876 = vpop.f32.mrf.mxu0
    %v877 = vadd.f32 %v191, %v876
    %878 = vdwg.mxu0
    %v879 = vadd.f32 %v853, %v877
    %v880 = vxor.u32 %v879, 2147483648
    %v881 = vmul.f32 %v880, 1.442695
    %v882 = vpow.pop %v881
    %v883 = vadd.f32 %v882, 1.0
    %v884 = vrcp.pop %v883
    %v885 = vmul.f32 %v883, %v884
    %v886 = vsub.f32 1.0, %v885
    %v887 = vmul.f32 %v884, %v886
    %v888 = vadd.f32 %v884, %v887
    %vm889 = vweird.f32 %v883
    %vm890 = vweird.f32 %v884
    %vm891 = vmor %vm889, %vm890
    %v892 = vsel %vm891, %v884, %v888
    %v893 = vand.u32 2147483647, %v883
    %vm894 = vcmp.eq.f32.partialorder %v893, 8.507059e+37
    %v895 = vand.u32 %v883, 2147483648
    %v896 = vor.u32 1.1754944e-38, %v895
    %v897 = vsel %vm894, %v896, %v892
    %v898 = vmul.f32 1.0, %v897
    %900 = vrot.lane.b32.xlu0 %v877, 64
    %v901 = vpop.permute.xlu0 %900
    %v903 = vmul.f32 %v898, %v901
    %905 = vrot.lane.b32.xlu0 %v903, 64
    %v906 = vpop.permute.xlu0 %905
    %v908 = vadd.f32 %v853, %v906
    %v909 = vtanh.pop %v908
    %v910 = vsub.f32 1.0, %v898
    %912 = vrot.lane.b32.xlu0 %v909, 96
    %v913 = vpop.permute.xlu0 %912
    %v915 = vmul.f32 %v910, %v913
    %v916 = vmul.f32 %v898, %v785
    %v917 = vadd.f32 %v915, %v916
    %s918 = scalar_lea.vmem %s0, 12
    %v919 = vld [vmem:[%s918] sm:$0x3]
    %921 = vrot.lane.b32.xlu0 %v851, 96
    %v922 = vpop.permute.xlu0 %921
    %v923 = vsel %vm122, %v922, 0
    %925 = vmatpush.msra.mxu0 0.0
    %926 = vmatpush.msra.mxu0 0.0
    %927 = vmatpush.msra.mxu0 0.0
    %928 = vmatpush.msra.mxu0 0.0
    %929 = vmatpush.msra.mxu0 0.0
    %930 = vmatpush.msra.mxu0 0.0
    %931 = vmatpush.msra.mxu0 0.0
    %932 = vmatpush.msra.mxu0 0.0
    %933 = vmatpush.msra.mxu0 0.0
    %934 = vmatpush.msra.mxu0 0.0
    %935 = vmatpush.msra.mxu0 0.0
    %936 = vmatpush.msra.mxu0 0.0
    %937 = vmatpush.msra.mxu0 %v111
    %938 = vmatpush.msra.mxu0 %v110
    %939 = vmatpush.msra.mxu0 %v109
    %940 = vmatpush.msra.mxu0 %v108
    %941 = vmatmul.f32.gmra.mxu0 %v923
    %v942 = vpop.f32.mrf.mxu0
    %v943 = vadd.f32 %v120, %v942
    %944 = vdwg.mxu0
    %v945 = vadd.f32 %v919, %v943
    %v946 = vxor.u32 %v945, 2147483648
    %v947 = vmul.f32 %v946, 1.442695
    %v948 = vpow.pop %v947
    %v949 = vadd.f32 %v948, 1.0
    %v950 = vrcp.pop %v949
    %v951 = vmul.f32 %v949, %v950
    %v952 = vsub.f32 1.0, %v951
    %v953 = vmul.f32 %v950, %v952
    %v954 = vadd.f32 %v950, %v953
    %vm955 = vweird.f32 %v949
    %vm956 = vweird.f32 %v950
    %vm957 = vmor %vm955, %vm956
    %v958 = vsel %vm957, %v950, %v954
    %v959 = vand.u32 2147483647, %v949
    %vm960 = vcmp.eq.f32.partialorder %v959, 8.507059e+37
    %v961 = vand.u32 %v949, 2147483648
    %v962 = vor.u32 1.1754944e-38, %v961
    %v963 = vsel %vm960, %v962, %v958
    %v964 = vmul.f32 1.0, %v963
    %966 = vrot.lane.b32.xlu0 %v943, 64
    %v967 = vpop.permute.xlu0 %966
    %v969 = vmul.f32 %v964, %v967
    %971 = vrot.lane.b32.xlu0 %v969, 64
    %v972 = vpop.permute.xlu0 %971
    %v974 = vadd.f32 %v919, %v972
    %v975 = vtanh.pop %v974
    %v976 = vsub.f32 1.0, %v964
    %978 = vrot.lane.b32.xlu0 %v975, 96
    %v979 = vpop.permute.xlu0 %978
    %v981 = vmul.f32 %v976, %v979
    %v982 = vmul.f32 %v964, %v851
    %v983 = vadd.f32 %v981, %v982
    %s984 = scalar_lea.vmem %s96, 2
    %v985 = vld [vmem:[%s984] sm:$0x3]
    %987 = vrot.lane.b32.xlu0 %v917, 96
    %v988 = vpop.permute.xlu0 %987
    %v989 = vsel %vm122, %v988, 0
    %991 = vmatpush.msra.mxu0 0.0
    %992 = vmatpush.msra.mxu0 0.0
    %993 = vmatpush.msra.mxu0 0.0
    %994 = vmatpush.msra.mxu0 0.0
    %995 = vmatpush.msra.mxu0 0.0
    %996 = vmatpush.msra.mxu0 0.0
    %997 = vmatpush.msra.mxu0 0.0
    %998 = vmatpush.msra.mxu0 0.0
    %999 = vmatpush.msra.mxu0 0.0
    %1000 = vmatpush.msra.mxu0 0.0
    %1001 = vmatpush.msra.mxu0 0.0
    %1002 = vmatpush.msra.mxu0 0.0
    %1003 = vmatpush.msra.mxu0 %v115
    %1004 = vmatpush.msra.mxu0 %v114
    %1005 = vmatpush.msra.mxu0 %v113
    %1006 = vmatpush.msra.mxu0 %v112
    %1007 = vmatmul.f32.gmra.mxu0 %v989
    %v1008 = vpop.f32.mrf.mxu0
    %v1009 = vadd.f32 %v191, %v1008
    %1010 = vdwg.mxu0
    %v1011 = vadd.f32 %v985, %v1009
    %v1012 = vxor.u32 %v1011, 2147483648
    %v1013 = vmul.f32 %v1012, 1.442695
    %v1014 = vpow.pop %v1013
    %v1015 = vadd.f32 %v1014, 1.0
    %v1016 = vrcp.pop %v1015
    %v1017 = vmul.f32 %v1015, %v1016
    %v1018 = vsub.f32 1.0, %v1017
    %v1019 = vmul.f32 %v1016, %v1018
    %v1020 = vadd.f32 %v1016, %v1019
    %vm1021 = vweird.f32 %v1015
    %vm1022 = vweird.f32 %v1016
    %vm1023 = vmor %vm1021, %vm1022
    %v1024 = vsel %vm1023, %v1016, %v1020
    %v1025 = vand.u32 2147483647, %v1015
    %vm1026 = vcmp.eq.f32.partialorder %v1025, 8.507059e+37
    %v1027 = vand.u32 %v1015, 2147483648
    %v1028 = vor.u32 1.1754944e-38, %v1027
    %v1029 = vsel %vm1026, %v1028, %v1024
    %v1030 = vmul.f32 1.0, %v1029
    %1032 = vrot.lane.b32.xlu0 %v1009, 64
    %v1033 = vpop.permute.xlu0 %1032
    %v1035 = vmul.f32 %v1030, %v1033
    %1037 = vrot.lane.b32.xlu0 %v1035, 64
    %v1038 = vpop.permute.xlu0 %1037
    %v1040 = vadd.f32 %v985, %v1038
    %v1041 = vtanh.pop %v1040
    %v1042 = vsub.f32 1.0, %v1030
    %1044 = vrot.lane.b32.xlu0 %v1041, 96
    %v1045 = vpop.permute.xlu0 %1044
    %v1047 = vmul.f32 %v1042, %v1045
    %v1048 = vmul.f32 %v1030, %v917
    %v1049 = vadd.f32 %v1047, %v1048
    %s1050 = scalar_lea.vmem %s0, 14
    %v1051 = vld [vmem:[%s1050] sm:$0x3]
    %1053 = vrot.lane.b32.xlu0 %v983, 96
    %v1054 = vpop.permute.xlu0 %1053
    %v1055 = vsel %vm122, %v1054, 0
    %1057 = vmatpush.msra.mxu0 0.0
    %1058 = vmatpush.msra.mxu0 0.0
    %1059 = vmatpush.msra.mxu0 0.0
    %1060 = vmatpush.msra.mxu0 0.0
    %1061 = vmatpush.msra.mxu0 0.0
    %1062 = vmatpush.msra.mxu0 0.0
    %1063 = vmatpush.msra.mxu0 0.0
    %1064 = vmatpush.msra.mxu0 0.0
    %1065 = vmatpush.msra.mxu0 0.0
    %1066 = vmatpush.msra.mxu0 0.0
    %1067 = vmatpush.msra.mxu0 0.0
    %1068 = vmatpush.msra.mxu0 0.0
    %1069 = vmatpush.msra.mxu0 %v111
    %1070 = vmatpush.msra.mxu0 %v110
    %1071 = vmatpush.msra.mxu0 %v109
    %1072 = vmatpush.msra.mxu0 %v108
    %1073 = vmatmul.f32.gmra.mxu0 %v1055
    %v1074 = vpop.f32.mrf.mxu0
    %v1075 = vadd.f32 %v120, %v1074
    %1076 = vdwg.mxu0
    %v1077 = vadd.f32 %v1051, %v1075
    %v1078 = vxor.u32 %v1077, 2147483648
    %v1079 = vmul.f32 %v1078, 1.442695
    %v1080 = vpow.pop %v1079
    %v1081 = vadd.f32 %v1080, 1.0
    %v1082 = vrcp.pop %v1081
    %v1083 = vmul.f32 %v1081, %v1082
    %v1084 = vsub.f32 1.0, %v1083
    %v1085 = vmul.f32 %v1082, %v1084
    %v1086 = vadd.f32 %v1082, %v1085
    %vm1087 = vweird.f32 %v1081
    %vm1088 = vweird.f32 %v1082
    %vm1089 = vmor %vm1087, %vm1088
    %v1090 = vsel %vm1089, %v1082, %v1086
    %v1091 = vand.u32 2147483647, %v1081
    %vm1092 = vcmp.eq.f32.partialorder %v1091, 8.507059e+37
    %v1093 = vand.u32 %v1081, 2147483648
    %v1094 = vor.u32 1.1754944e-38, %v1093
    %v1095 = vsel %vm1092, %v1094, %v1090
    %v1096 = vmul.f32 1.0, %v1095
    %1098 = vrot.lane.b32.xlu0 %v1075, 64
    %v1099 = vpop.permute.xlu0 %1098
    %v1101 = vmul.f32 %v1096, %v1099
    %1103 = vrot.lane.b32.xlu0 %v1101, 64
    %v1104 = vpop.permute.xlu0 %1103
    %v1106 = vadd.f32 %v1051, %v1104
    %v1107 = vtanh.pop %v1106
    %v1108 = vsub.f32 1.0, %v1096
    %1110 = vrot.lane.b32.xlu0 %v1107, 96
    %v1111 = vpop.permute.xlu0 %1110
    %v1113 = vmul.f32 %v1108, %v1111
    %v1114 = vmul.f32 %v1096, %v983
    %v1115 = vadd.f32 %v1113, %v1114
    %v1116 = vld [vmem:[%s96] sm:$0x3]
    %1118 = vrot.lane.b32.xlu0 %v1049, 96
    %v1119 = vpop.permute.xlu0 %1118
    %v1120 = vsel %vm122, %v1119, 0
    %1122 = vmatpush.msra.mxu0 0.0
    %1123 = vmatpush.msra.mxu0 0.0
    %1124 = vmatpush.msra.mxu0 0.0
    %1125 = vmatpush.msra.mxu0 0.0
    %1126 = vmatpush.msra.mxu0 0.0
    %1127 = vmatpush.msra.mxu0 0.0
    %1128 = vmatpush.msra.mxu0 0.0
    %1129 = vmatpush.msra.mxu0 0.0
    %1130 = vmatpush.msra.mxu0 0.0
    %1131 = vmatpush.msra.mxu0 0.0
    %1132 = vmatpush.msra.mxu0 0.0
    %1133 = vmatpush.msra.mxu0 0.0
    %1134 = vmatpush.msra.mxu0 %v115
    %1135 = vmatpush.msra.mxu0 %v114
    %1136 = vmatpush.msra.mxu0 %v113
    %1137 = vmatpush.msra.mxu0 %v112
    %1138 = vmatmul.f32.gmra.mxu0 %v1120
    %v1139 = vpop.f32.mrf.mxu0
    %v1140 = vadd.f32 %v191, %v1139
    %1141 = vdwg.mxu0
    %v1142 = vadd.f32 %v1116, %v1140
    %v1143 = vxor.u32 %v1142, 2147483648
    %v1144 = vmul.f32 %v1143, 1.442695
    %v1145 = vpow.pop %v1144
    %v1146 = vadd.f32 %v1145, 1.0
    %v1147 = vrcp.pop %v1146
    %v1148 = vmul.f32 %v1146, %v1147
    %v1149 = vsub.f32 1.0, %v1148
    %v1150 = vmul.f32 %v1147, %v1149
    %v1151 = vadd.f32 %v1147, %v1150
    %vm1152 = vweird.f32 %v1146
    %vm1153 = vweird.f32 %v1147
    %vm1154 = vmor %vm1152, %vm1153
    %v1155 = vsel %vm1154, %v1147, %v1151
    %v1156 = vand.u32 2147483647, %v1146
    %vm1157 = vcmp.eq.f32.partialorder %v1156, 8.507059e+37
    %v1158 = vand.u32 %v1146, 2147483648
    %v1159 = vor.u32 1.1754944e-38, %v1158
    %v1160 = vsel %vm1157, %v1159, %v1155
    %v1161 = vmul.f32 1.0, %v1160
    %1163 = vrot.lane.b32.xlu0 %v1140, 64
    %v1164 = vpop.permute.xlu0 %1163
    %v1166 = vmul.f32 %v1161, %v1164
    %1168 = vrot.lane.b32.xlu0 %v1166, 64
    %v1169 = vpop.permute.xlu0 %1168
    %v1171 = vadd.f32 %v1116, %v1169
    %v1172 = vtanh.pop %v1171
    %v1173 = vsub.f32 1.0, %v1161
    %1175 = vrot.lane.b32.xlu0 %v1172, 96
    %v1176 = vpop.permute.xlu0 %1175
    %v1178 = vmul.f32 %v1173, %v1176
    %v1179 = vmul.f32 %v1161, %v1049
    %v1180 = vadd.f32 %v1178, %v1179
    %1182 = vrot.lane.b32.xlu0 %v1115, 96
    %v1183 = vpop.permute.xlu0 %1182
    %vm1185 = vcmask 254976
    %1186 = vst.msk [vmem:[#allocation2] sm:$0x3] %vm1185, %v1183
    %1188 = vrot.lane.b32.xlu0 %v1180, 96
    %v1189 = vpop.permute.xlu0 %1188
    %1191 = vst.msk [vmem:[#allocation3] sm:$0x3] %vm1185, %v1189
    // Predicated region
    $region50: #{number_enc_forward.7} parent=1 // pred_check
      %p1192 = pneg %p99
    $region51: #{number_enc_forward.7} parent=1 // pred_check_branch
      %1194 = sbr.rel (%p1192) target = $region53
    $region52: #{number_enc_forward.7} parent=1 // pred_region
      %v1195 = vadd.f32 %v1115, %v1180
      %v1196 = vld [vmem:[#allocation9] sm:$0xff]
      %v1197 = vld [vmem:[#allocation9 + $0x8] sm:$0xff]
      %v1198 = vld [vmem:[#allocation9 + $0x10] sm:$0xff]
      %v1199 = vld [vmem:[#allocation9 + $0x18] sm:$0xff]
      %v1200 = vld [vmem:[%s7] sm:$0x1]
      %v1202 = vperm.slane %v1200, 0
      %1205 = vrot.lane.b32.xlu0 %v1195, 96
      %v1206 = vpop.permute.xlu0 %1205
      %v1207 = vsel %vm122, %v1206, 0
      %1209 = vmatpush.msra.mxu0 0.0
      %1210 = vmatpush.msra.mxu0 0.0
      %1211 = vmatpush.msra.mxu0 0.0
      %1212 = vmatpush.msra.mxu0 0.0
      %1213 = vmatpush.msra.mxu0 0.0
      %1214 = vmatpush.msra.mxu0 0.0
      %1215 = vmatpush.msra.mxu0 0.0
      %1216 = vmatpush.msra.mxu0 0.0
      %1217 = vmatpush.msra.mxu0 0.0
      %1218 = vmatpush.msra.mxu0 0.0
      %1219 = vmatpush.msra.mxu0 0.0
      %1220 = vmatpush.msra.mxu0 0.0
      %1221 = vmatpush.msra.mxu0 %v1199
      %1222 = vmatpush.msra.mxu0 %v1198
      %1223 = vmatpush.msra.mxu0 %v1197
      %1224 = vmatpush.msra.mxu0 %v1196
      %1225 = vmatmul.f32.gmra.mxu0 %v1207
      %v1226 = vpop.f32.mrf.mxu0
      %v1227 = vadd.f32 %v1202, %v1226
      %1228 = vdwg.mxu0
      %1229 = vst.msk [vmem:[#allocation10] sm:$0x3] %vm1185, %v1227
    $region53: #{number_enc_forward.7} parent=1 // pred_fallthru
      _
    // Predicated region
    $region54: #{number_enc_forward.7} parent=1 // pred_check
      _
    $region55: #{number_enc_forward.7} parent=1 // pred_check_branch
      %1231 = sbr.rel (0) target = $region57
    $region56: #{number_enc_forward.7} parent=1 // pred_region
      %1233 = vsyncadd [#allocation6], 0
      %s1235 = sshll.u32 [#allocation10], 4
      %s1236 = int_to_ptr.vmem [resolvable:$true] %s1235
      %s1237 = sshll.u32 %s8, 4
      %s1238 = int_to_ptr.hbm [resolvable:$true] %s1237
      %1240 = dma.vmem_to_hbm [thread:$0]  %s1236, 32, %s1238, [#allocation6]
    $region57: #{number_enc_forward.7} parent=1 // pred_fallthru
      _
    // Predicated region
    $region58: #{number_enc_forward.7} parent=1 // pred_check
      _
    $region59: #{number_enc_forward.7} parent=1 // pred_check_branch
      %1242 = sbr.rel (0) target = $region61
    $region60: #{number_enc_forward.7} parent=1 // pred_region
      %1244 = dma.done [#allocation6], 32
    $region61: #{number_enc_forward.7} parent=1 // pred_fallthru
      _
    %1245 = vsyncpa [#allocation5], 1
    %1246 = vsyncpa [#allocation8], 1
    %1247 = vsyncpa [#allocation6], 1

// kernel: number_enc_forward.5
$region0: #{number_enc_forward.5}
  #allocation0 [shape = 'u32[]', space=smem, size = 0x4, offset = 0x4, fixed_abs, tag = 'smem constant byte address 0x4 - core index']
  #allocation1 [shape = 'u32[72,128]{1,0:T(1,128)}', space=vmem, size = 0x9000, scoped, tag = 'internal scratch']
  #allocation2 [shape = 'f32[2,32]{1,0:T(2,128)}', space=vmem, size = 0x400, scoped, tag = 'scratch operand']
  #allocation3 [shape = 'f32[2,32]{1,0:T(2,128)}', space=vmem, size = 0x400, scoped, tag = 'scratch operand']
  %s0 = inlined_call_operand.vmem [shape: f32[8,2,96], index: 0, kind: input, shape index: {}]
  %s1 = inlined_call_operand.vmem [shape: f32[8,2,96], index: 1, kind: input, shape index: {}]
  %s2 = inlined_call_operand.hbm [shape: f32[32,96], index: 2, kind: input, shape index: {}]
  %s3 = inlined_call_operand.hbm [shape: f32[32,96], index: 3, kind: input, shape index: {}]
  %s4 = inlined_call_operand.vmem [shape: f32[1,96], index: 4, kind: input, shape index: {}]
  %s5 = inlined_call_operand.vmem [shape: f32[1,96], index: 5, kind: input, shape index: {}]
  %s6 = inlined_call_operand.vmem [shape: f32[8,2,32], index: 6, kind: output, shape index: {0}]
  %s7 = inlined_call_operand.vmem [shape: f32[8,2,32], index: 7, kind: output, shape index: {1}]
  %8 = xla_tuple %s6, %s7
  %s9 = sld [smem:[#allocation0]]
  $region54: #{number_enc_forward.5} parent=0
    _
  %s11 = ssub.s32 1, %s9
  %s12 = scalar_select 0, %s11, %s9
  $region1: #{number_enc_forward.5} parent=0
    #allocation4 [shape = 'u8[16384]{0}', space=vmem, size = 0x4000, scoped, tag = 'input window, operand 2, single buffered']
    #allocation5 [shape = 's32[1]{0}', space=sflag, size = 0x4, scoped, tag = 'scoped memory for number_enc_forward.5']
    #allocation6 [shape = 'u8[16384]{0}', space=vmem, size = 0x4000, scoped, tag = 'input window, operand 3, single buffered']
    #allocation7 [shape = 's32[1]{0}', space=sflag, size = 0x4, scoped, tag = 'scoped memory for number_enc_forward.5']
    %13 = vsyncpa [#allocation5], 0
    %14 = vsyncpa [#allocation7], 0
    // Predicated region
    $region2: #{number_enc_forward.5} parent=1 // pred_check
      _
    $region3: #{number_enc_forward.5} parent=1 // pred_check_branch
      %16 = sbr.rel (0) target = $region5
    $region4: #{number_enc_forward.5} parent=1 // pred_region
      _
    $region5: #{number_enc_forward.5} parent=1 // pred_fallthru
      _
    // Predicated region
    $region6: #{number_enc_forward.5} parent=1 // pred_check
      _
    $region7: #{number_enc_forward.5} parent=1 // pred_check_branch
      %18 = sbr.rel (0) target = $region9
    $region8: #{number_enc_forward.5} parent=1 // pred_region
      %s19 = ssub.s32 0, 0
      %s20 = smul.u32 8, %s19
      %p21 = scmp.lt.s32.totalorder %s20, 7
      %s22 = scalar_select %p21, %s20, 7
      %s23 = smul.addr %s22, 2
      %s24 = scalar_lea.vmem %s1, %s23
      %s25 = ssub.s32 0, 0
      %s26 = smul.u32 8, %s25
    $region9: #{number_enc_forward.5} parent=1 // pred_fallthru
      _
    // Predicated region
    $region10: #{number_enc_forward.5} parent=1 // pred_check
      _
    $region11: #{number_enc_forward.5} parent=1 // pred_check_branch
      %28 = sbr.rel (0) target = $region13
    $region12: #{number_enc_forward.5} parent=1 // pred_region
      %30 = vsyncadd [#allocation5], 0
      %s31 = sshll.u32 %s2, 4
      %s32 = int_to_ptr.hbm [resolvable:$true] %s31
      %s33 = sshll.u32 [#allocation4], 4
      %s34 = int_to_ptr.vmem [resolvable:$true] %s33
      %39 = dma.hbm_to_vmem [thread:$0]  %s32, 512, %s34, [#allocation5], 128, 128, 8
    $region13: #{number_enc_forward.5} parent=1 // pred_fallthru
      _
    // Predicated region
    $region14: #{number_enc_forward.5} parent=1 // pred_check
      _
    $region15: #{number_enc_forward.5} parent=1 // pred_check_branch
      %41 = sbr.rel (0) target = $region17
    $region16: #{number_enc_forward.5} parent=1 // pred_region
      %43 = vsyncadd [#allocation7], 0
      %s44 = sshll.u32 %s3, 4
      %s45 = int_to_ptr.hbm [resolvable:$true] %s44
      %s46 = sshll.u32 [#allocation6], 4
      %s47 = int_to_ptr.vmem [resolvable:$true] %s46
      %52 = dma.hbm_to_vmem [thread:$0]  %s45, 512, %s47, [#allocation7], 128, 128, 8
    $region17: #{number_enc_forward.5} parent=1 // pred_fallthru
      _
    // Predicated region
    $region18: #{number_enc_forward.5} parent=1 // pred_check
      _
    $region19: #{number_enc_forward.5} parent=1 // pred_check_branch
      %54 = sbr.rel (0) target = $region21
    $region20: #{number_enc_forward.5} parent=1 // pred_region
      _
    $region21: #{number_enc_forward.5} parent=1 // pred_fallthru
      _
    // Predicated region
    $region22: #{number_enc_forward.5} parent=1 // pred_check
      _
    $region23: #{number_enc_forward.5} parent=1 // pred_check_branch
      %56 = sbr.rel (0) target = $region25
    $region24: #{number_enc_forward.5} parent=1 // pred_region
      _
    $region25: #{number_enc_forward.5} parent=1 // pred_fallthru
      _
    // Predicated region
    $region26: #{number_enc_forward.5} parent=1 // pred_check
      _
    $region27: #{number_enc_forward.5} parent=1 // pred_check_branch
      %58 = sbr.rel (0) target = $region29
    $region28: #{number_enc_forward.5} parent=1 // pred_region
      %60 = dma.done [#allocation5], 512
    $region29: #{number_enc_forward.5} parent=1 // pred_fallthru
      _
    // Predicated region
    $region30: #{number_enc_forward.5} parent=1 // pred_check
      _
    $region31: #{number_enc_forward.5} parent=1 // pred_check_branch
      %62 = sbr.rel (0) target = $region33
    $region32: #{number_enc_forward.5} parent=1 // pred_region
      %64 = dma.done [#allocation7], 512
    $region33: #{number_enc_forward.5} parent=1 // pred_fallthru
      _
    %s65 = ssub.s32 0, 0
    %s66 = smul.u32 8, %s65
    %p67 = scmp.lt.s32.totalorder %s66, 7
    %s68 = scalar_select %p67, %s66, 7
    %s69 = smul.addr %s68, 2
    %s70 = scalar_lea.vmem %s1, %s69
    %s71 = ssub.s32 0, 0
    %s72 = smul.u32 8, %s71
    %p73 = scmp.lt.s32.totalorder %s72, 7
    %s74 = scalar_select %p73, %s72, 7
    %s75 = smul.addr %s74, 2
    %s76 = scalar_lea.vmem %s7, %s75
    %s77 = ssub.s32 0, 0
    %s78 = smul.u32 8, %s77
    %p79 = scmp.lt.s32.totalorder %s78, 7
    %s80 = scalar_select %p79, %s78, 7
    %s81 = smul.addr %s80, 2
    %s82 = scalar_lea.vmem %s1, %s81
    %s83 = ssub.s32 0, 0
    %s84 = smul.u32 8, %s83
    %s85 = ssub.s32 0, 0
    %s86 = smul.u32 8, %s85
    %p87 = scmp.lt.s32.totalorder %s86, 7
    %s88 = scalar_select %p87, %s86, 7
    %s89 = smul.addr %s88, 2
    %s90 = scalar_lea.vmem %s7, %s89
    %s91 = ssub.s32 0, 0
    %s92 = smul.u32 8, %s91
    %p93 = scmp.eq.s32.totalorder 0, 0
    // Predicated region
    $region34: #{number_enc_forward.5} parent=1 // pred_check
      %p94 = pneg %p93
    $region35: #{number_enc_forward.5} parent=1 // pred_check_branch
      %96 = sbr.rel (%p94) target = $region37
    $region36: #{number_enc_forward.5} parent=1 // pred_region
      %vm97 = vcmask 254976
      %98 = vst.msk [vmem:[#allocation2] sm:$0x3] %vm97, 0.0
      %99 = vst.msk [vmem:[#allocation3] sm:$0x3] %vm97, 0.0
    $region37: #{number_enc_forward.5} parent=1 // pred_fallthru
      _
    %v100 = vld [vmem:[#allocation2] sm:$0x3]
    %v101 = vld [vmem:[#allocation3] sm:$0x3]
    %v102 = vld [vmem:[#allocation4] sm:$0xff]
    %v103 = vld [vmem:[#allocation4 + $0x8] sm:$0xff]
    %v104 = vld [vmem:[#allocation4 + $0x10] sm:$0xff]
    %v105 = vld [vmem:[#allocation4 + $0x18] sm:$0xff]
    %v106 = vld [vmem:[#allocation6] sm:$0xff]
    %v107 = vld [vmem:[#allocation6 + $0x8] sm:$0xff]
    %v108 = vld [vmem:[#allocation6 + $0x10] sm:$0xff]
    %v109 = vld [vmem:[#allocation6 + $0x18] sm:$0xff]
    %v110 = vld [vmem:[%s4] sm:$0x1]
    %v111 = vld [vmem:[%s5] sm:$0x1]
    %v112 = vld [vmem:[%s0] sm:$0x3]
    %v114 = vperm.slane %v110, 0
    %vm116 = vcmask 261120
    %v118 = vsel %vm116, %v100, 0
    %120 = vmatpush.msra.mxu0 0.0
    %121 = vmatpush.msra.mxu0 0.0
    %122 = vmatpush.msra.mxu0 0.0
    %123 = vmatpush.msra.mxu0 0.0
    %124 = vmatpush.msra.mxu0 0.0
    %125 = vmatpush.msra.mxu0 0.0
    %126 = vmatpush.msra.mxu0 0.0
    %127 = vmatpush.msra.mxu0 0.0
    %128 = vmatpush.msra.mxu0 0.0
    %129 = vmatpush.msra.mxu0 0.0
    %130 = vmatpush.msra.mxu0 0.0
    %131 = vmatpush.msra.mxu0 0.0
    %132 = vmatpush.msra.mxu0 %v105
    %133 = vmatpush.msra.mxu0 %v104
    %134 = vmatpush.msra.mxu0 %v103
    %135 = vmatpush.msra.mxu0 %v102
    %136 = vmatmul.f32.gmra.mxu0 %v118
    %v137 = vpop.f32.mrf.mxu0
    %v138 = vadd.f32 %v114, %v137
    %139 = vdwg.mxu0
    %v140 = vadd.f32 %v112, %v138
    %v141 = vxor.u32 %v140, 2147483648
    %v142 = vmul.f32 %v141, 1.442695
    %v143 = vpow.pop %v142
    %v144 = vadd.f32 %v143, 1.0
    %v145 = vrcp.pop %v144
    %v146 = vmul.f32 %v144, %v145
    %v147 = vsub.f32 1.0, %v146
    %v148 = vmul.f32 %v145, %v147
    %v149 = vadd.f32 %v145, %v148
    %vm150 = vweird.f32 %v144
    %vm151 = vweird.f32 %v145
    %vm152 = vmor %vm150, %vm151
    %v153 = vsel %vm152, %v145, %v149
    %v154 = vand.u32 2147483647, %v144
    %vm155 = vcmp.eq.f32.partialorder %v154, 8.507059e+37
    %v156 = vand.u32 %v144, 2147483648
    %v157 = vor.u32 1.1754944e-38, %v156
    %v158 = vsel %vm155, %v157, %v153
    %v159 = vmul.f32 1.0, %v158
    %161 = vrot.lane.b32.xlu0 %v138, 64
    %v162 = vpop.permute.xlu0 %161
    %v164 = vmul.f32 %v159, %v162
    %166 = vrot.lane.b32.xlu0 %v164, 64
    %v167 = vpop.permute.xlu0 %166
    %v169 = vadd.f32 %v112, %v167
    %v170 = vtanh.pop %v169
    %v171 = vsub.f32 1.0, %v159
    %173 = vrot.lane.b32.xlu0 %v170, 96
    %v174 = vpop.permute.xlu0 %173
    %v176 = vmul.f32 %v171, %v174
    %177 = vrot.lane.b32.xlu0 %v100, 32
    %v178 = vpop.permute.xlu0 %177
    %v180 = vmul.f32 %v159, %v178
    %v181 = vadd.f32 %v176, %v180
    %s182 = scalar_lea.vmem %s82, 14
    %v183 = vld [vmem:[%s182] sm:$0x3]
    %v185 = vperm.slane %v111, 0
    %v188 = vsel %vm116, %v101, 0
    %190 = vmatpush.msra.mxu0 0.0
    %191 = vmatpush.msra.mxu0 0.0
    %192 = vmatpush.msra.mxu0 0.0
    %193 = vmatpush.msra.mxu0 0.0
    %194 = vmatpush.msra.mxu0 0.0
    %195 = vmatpush.msra.mxu0 0.0
    %196 = vmatpush.msra.mxu0 0.0
    %197 = vmatpush.msra.mxu0 0.0
    %198 = vmatpush.msra.mxu0 0.0
    %199 = vmatpush.msra.mxu0 0.0
    %200 = vmatpush.msra.mxu0 0.0
    %201 = vmatpush.msra.mxu0 0.0
    %202 = vmatpush.msra.mxu0 %v109
    %203 = vmatpush.msra.mxu0 %v108
    %204 = vmatpush.msra.mxu0 %v107
    %205 = vmatpush.msra.mxu0 %v106
    %206 = vmatmul.f32.gmra.mxu0 %v188
    %v207 = vpop.f32.mrf.mxu0
    %v208 = vadd.f32 %v185, %v207
    %209 = vdwg.mxu0
    %v210 = vadd.f32 %v183, %v208
    %v211 = vxor.u32 %v210, 2147483648
    %v212 = vmul.f32 %v211, 1.442695
    %v213 = vpow.pop %v212
    %v214 = vadd.f32 %v213, 1.0
    %v215 = vrcp.pop %v214
    %v216 = vmul.f32 %v214, %v215
    %v217 = vsub.f32 1.0, %v216
    %v218 = vmul.f32 %v215, %v217
    %v219 = vadd.f32 %v215, %v218
    %vm220 = vweird.f32 %v214
    %vm221 = vweird.f32 %v215
    %vm222 = vmor %vm220, %vm221
    %v223 = vsel %vm222, %v215, %v219
    %v224 = vand.u32 2147483647, %v214
    %vm225 = vcmp.eq.f32.partialorder %v224, 8.507059e+37
    %v226 = vand.u32 %v214, 2147483648
    %v227 = vor.u32 1.1754944e-38, %v226
    %v228 = vsel %vm225, %v227, %v223
    %v229 = vmul.f32 1.0, %v228
    %231 = vrot.lane.b32.xlu0 %v208, 64
    %v232 = vpop.permute.xlu0 %231
    %v234 = vmul.f32 %v229, %v232
    %236 = vrot.lane.b32.xlu0 %v234, 64
    %v237 = vpop.permute.xlu0 %236
    %v239 = vadd.f32 %v183, %v237
    %v240 = vtanh.pop %v239
    %v241 = vsub.f32 1.0, %v229
    %243 = vrot.lane.b32.xlu0 %v240, 96
    %v244 = vpop.permute.xlu0 %243
    %v246 = vmul.f32 %v241, %v244
    %247 = vrot.lane.b32.xlu0 %v101, 32
    %v248 = vpop.permute.xlu0 %247
    %v250 = vmul.f32 %v229, %v248
    %v251 = vadd.f32 %v246, %v250
    %253 = vrot.lane.b32.xlu0 %v181, 96
    %v254 = vpop.permute.xlu0 %253
    %vm256 = vcmask 254976
    %257 = vst.msk [vmem:[%s6] sm:$0x3] %vm256, %v254
    %259 = vrot.lane.b32.xlu0 %v251, 96
    %v260 = vpop.permute.xlu0 %259
    %s262 = scalar_lea.vmem %s90, 14
    %263 = vst.msk [vmem:[%s262] sm:$0x3] %vm256, %v260
    %s264 = scalar_lea.vmem %s0, 2
    %v265 = vld [vmem:[%s264] sm:$0x3]
    %v266 = vsel %vm116, %v254, 0
    %268 = vmatpush.msra.mxu0 0.0
    %269 = vmatpush.msra.mxu0 0.0
    %270 = vmatpush.msra.mxu0 0.0
    %271 = vmatpush.msra.mxu0 0.0
    %272 = vmatpush.msra.mxu0 0.0
    %273 = vmatpush.msra.mxu0 0.0
    %274 = vmatpush.msra.mxu0 0.0
    %275 = vmatpush.msra.mxu0 0.0
    %276 = vmatpush.msra.mxu0 0.0
    %277 = vmatpush.msra.mxu0 0.0
    %278 = vmatpush.msra.mxu0 0.0
    %279 = vmatpush.msra.mxu0 0.0
    %280 = vmatpush.msra.mxu0 %v105
    %281 = vmatpush.msra.mxu0 %v104
    %282 = vmatpush.msra.mxu0 %v103
    %283 = vmatpush.msra.mxu0 %v102
    %284 = vmatmul.f32.gmra.mxu0 %v266
    %v285 = vpop.f32.mrf.mxu0
    %v286 = vadd.f32 %v114, %v285
    %287 = vdwg.mxu0
    %v288 = vadd.f32 %v265, %v286
    %v289 = vxor.u32 %v288, 2147483648
    %v290 = vmul.f32 %v289, 1.442695
    %v291 = vpow.pop %v290
    %v292 = vadd.f32 %v291, 1.0
    %v293 = vrcp.pop %v292
    %v294 = vmul.f32 %v292, %v293
    %v295 = vsub.f32 1.0, %v294
    %v296 = vmul.f32 %v293, %v295
    %v297 = vadd.f32 %v293, %v296
    %vm298 = vweird.f32 %v292
    %vm299 = vweird.f32 %v293
    %vm300 = vmor %vm298, %vm299
    %v301 = vsel %vm300, %v293, %v297
    %v302 = vand.u32 2147483647, %v292
    %vm303 = vcmp.eq.f32.partialorder %v302, 8.507059e+37
    %v304 = vand.u32 %v292, 2147483648
    %v305 = vor.u32 1.1754944e-38, %v304
    %v306 = vsel %vm303, %v305, %v301
    %v307 = vmul.f32 1.0, %v306
    %309 = vrot.lane.b32.xlu0 %v286, 64
    %v310 = vpop.permute.xlu0 %309
    %v312 = vmul.f32 %v307, %v310
    %314 = vrot.lane.b32.xlu0 %v312, 64
    %v315 = vpop.permute.xlu0 %314
    %v317 = vadd.f32 %v265, %v315
    %v318 = vtanh.pop %v317
    %v319 = vsub.f32 1.0, %v307
    %321 = vrot.lane.b32.xlu0 %v318, 96
    %v322 = vpop.permute.xlu0 %321
    %v324 = vmul.f32 %v319, %v322
    %v325 = vmul.f32 %v307, %v181
    %v326 = vadd.f32 %v324, %v325
    %s327 = scalar_lea.vmem %s82, 12
    %v328 = vld [vmem:[%s327] sm:$0x3]
    %v329 = vsel %vm116, %v260, 0
    %331 = vmatpush.msra.mxu0 0.0
    %332 = vmatpush.msra.mxu0 0.0
    %333 = vmatpush.msra.mxu0 0.0
    %334 = vmatpush.msra.mxu0 0.0
    %335 = vmatpush.msra.mxu0 0.0
    %336 = vmatpush.msra.mxu0 0.0
    %337 = vmatpush.msra.mxu0 0.0
    %338 = vmatpush.msra.mxu0 0.0
    %339 = vmatpush.msra.mxu0 0.0
    %340 = vmatpush.msra.mxu0 0.0
    %341 = vmatpush.msra.mxu0 0.0
    %342 = vmatpush.msra.mxu0 0.0
    %343 = vmatpush.msra.mxu0 %v109
    %344 = vmatpush.msra.mxu0 %v108
    %345 = vmatpush.msra.mxu0 %v107
    %346 = vmatpush.msra.mxu0 %v106
    %347 = vmatmul.f32.gmra.mxu0 %v329
    %v348 = vpop.f32.mrf.mxu0
    %v349 = vadd.f32 %v185, %v348
    %350 = vdwg.mxu0
    %v351 = vadd.f32 %v328, %v349
    %v352 = vxor.u32 %v351, 2147483648
    %v353 = vmul.f32 %v352, 1.442695
    %v354 = vpow.pop %v353
    %v355 = vadd.f32 %v354, 1.0
    %v356 = vrcp.pop %v355
    %v357 = vmul.f32 %v355, %v356
    %v358 = vsub.f32 1.0, %v357
    %v359 = vmul.f32 %v356, %v358
    %v360 = vadd.f32 %v356, %v359
    %vm361 = vweird.f32 %v355
    %vm362 = vweird.f32 %v356
    %vm363 = vmor %vm361, %vm362
    %v364 = vsel %vm363, %v356, %v360
    %v365 = vand.u32 2147483647, %v355
    %vm366 = vcmp.eq.f32.partialorder %v365, 8.507059e+37
    %v367 = vand.u32 %v355, 2147483648
    %v368 = vor.u32 1.1754944e-38, %v367
    %v369 = vsel %vm366, %v368, %v364
    %v370 = vmul.f32 1.0, %v369
    %372 = vrot.lane.b32.xlu0 %v349, 64
    %v373 = vpop.permute.xlu0 %372
    %v375 = vmul.f32 %v370, %v373
    %377 = vrot.lane.b32.xlu0 %v375, 64
    %v378 = vpop.permute.xlu0 %377
    %v380 = vadd.f32 %v328, %v378
    %v381 = vtanh.pop %v380
    %v382 = vsub.f32 1.0, %v370
    %384 = vrot.lane.b32.xlu0 %v381, 96
    %v385 = vpop.permute.xlu0 %384
    %v387 = vmul.f32 %v382, %v385
    %v388 = vmul.f32 %v370, %v251
    %v389 = vadd.f32 %v387, %v388
    %391 = vrot.lane.b32.xlu0 %v326, 96
    %v392 = vpop.permute.xlu0 %391
    %s394 = scalar_lea.vmem %s6, 2
    %395 = vst.msk [vmem:[%s394] sm:$0x3] %vm256, %v392
    %397 = vrot.lane.b32.xlu0 %v389, 96
    %v398 = vpop.permute.xlu0 %397
    %s400 = scalar_lea.vmem %s90, 12
    %401 = vst.msk [vmem:[%s400] sm:$0x3] %vm256, %v398
    %s402 = scalar_lea.vmem %s0, 4
    %v403 = vld [vmem:[%s402] sm:$0x3]
    %v404 = vsel %vm116, %v392, 0
    %406 = vmatpush.msra.mxu0 0.0
    %407 = vmatpush.msra.mxu0 0.0
    %408 = vmatpush.msra.mxu0 0.0
    %409 = vmatpush.msra.mxu0 0.0
    %410 = vmatpush.msra.mxu0 0.0
    %411 = vmatpush.msra.mxu0 0.0
    %412 = vmatpush.msra.mxu0 0.0
    %413 = vmatpush.msra.mxu0 0.0
    %414 = vmatpush.msra.mxu0 0.0
    %415 = vmatpush.msra.mxu0 0.0
    %416 = vmatpush.msra.mxu0 0.0
    %417 = vmatpush.msra.mxu0 0.0
    %418 = vmatpush.msra.mxu0 %v105
    %419 = vmatpush.msra.mxu0 %v104
    %420 = vmatpush.msra.mxu0 %v103
    %421 = vmatpush.msra.mxu0 %v102
    %422 = vmatmul.f32.gmra.mxu0 %v404
    %v423 = vpop.f32.mrf.mxu0
    %v424 = vadd.f32 %v114, %v423
    %425 = vdwg.mxu0
    %v426 = vadd.f32 %v403, %v424
    %v427 = vxor.u32 %v426, 2147483648
    %v428 = vmul.f32 %v427, 1.442695
    %v429 = vpow.pop %v428
    %v430 = vadd.f32 %v429, 1.0
    %v431 = vrcp.pop %v430
    %v432 = vmul.f32 %v430, %v431
    %v433 = vsub.f32 1.0, %v432
    %v434 = vmul.f32 %v431, %v433
    %v435 = vadd.f32 %v431, %v434
    %vm436 = vweird.f32 %v430
    %vm437 = vweird.f32 %v431
    %vm438 = vmor %vm436, %vm437
    %v439 = vsel %vm438, %v431, %v435
    %v440 = vand.u32 2147483647, %v430
    %vm441 = vcmp.eq.f32.partialorder %v440, 8.507059e+37
    %v442 = vand.u32 %v430, 2147483648
    %v443 = vor.u32 1.1754944e-38, %v442
    %v444 = vsel %vm441, %v443, %v439
    %v445 = vmul.f32 1.0, %v444
    %447 = vrot.lane.b32.xlu0 %v424, 64
    %v448 = vpop.permute.xlu0 %447
    %v450 = vmul.f32 %v445, %v448
    %452 = vrot.lane.b32.xlu0 %v450, 64
    %v453 = vpop.permute.xlu0 %452
    %v455 = vadd.f32 %v403, %v453
    %v456 = vtanh.pop %v455
    %v457 = vsub.f32 1.0, %v445
    %459 = vrot.lane.b32.xlu0 %v456, 96
    %v460 = vpop.permute.xlu0 %459
    %v462 = vmul.f32 %v457, %v460
    %v463 = vmul.f32 %v445, %v326
    %v464 = vadd.f32 %v462, %v463
    %s465 = scalar_lea.vmem %s82, 10
    %v466 = vld [vmem:[%s465] sm:$0x3]
    %v467 = vsel %vm116, %v398, 0
    %469 = vmatpush.msra.mxu0 0.0
    %470 = vmatpush.msra.mxu0 0.0
    %471 = vmatpush.msra.mxu0 0.0
    %472 = vmatpush.msra.mxu0 0.0
    %473 = vmatpush.msra.mxu0 0.0
    %474 = vmatpush.msra.mxu0 0.0
    %475 = vmatpush.msra.mxu0 0.0
    %476 = vmatpush.msra.mxu0 0.0
    %477 = vmatpush.msra.mxu0 0.0
    %478 = vmatpush.msra.mxu0 0.0
    %479 = vmatpush.msra.mxu0 0.0
    %480 = vmatpush.msra.mxu0 0.0
    %481 = vmatpush.msra.mxu0 %v109
    %482 = vmatpush.msra.mxu0 %v108
    %483 = vmatpush.msra.mxu0 %v107
    %484 = vmatpush.msra.mxu0 %v106
    %485 = vmatmul.f32.gmra.mxu0 %v467
    %v486 = vpop.f32.mrf.mxu0
    %v487 = vadd.f32 %v185, %v486
    %488 = vdwg.mxu0
    %v489 = vadd.f32 %v466, %v487
    %v490 = vxor.u32 %v489, 2147483648
    %v491 = vmul.f32 %v490, 1.442695
    %v492 = vpow.pop %v491
    %v493 = vadd.f32 %v492, 1.0
    %v494 = vrcp.pop %v493
    %v495 = vmul.f32 %v493, %v494
    %v496 = vsub.f32 1.0, %v495
    %v497 = vmul.f32 %v494, %v496
    %v498 = vadd.f32 %v494, %v497
    %vm499 = vweird.f32 %v493
    %vm500 = vweird.f32 %v494
    %vm501 = vmor %vm499, %vm500
    %v502 = vsel %vm501, %v494, %v498
    %v503 = vand.u32 2147483647, %v493
    %vm504 = vcmp.eq.f32.partialorder %v503, 8.507059e+37
    %v505 = vand.u32 %v493, 2147483648
    %v506 = vor.u32 1.1754944e-38, %v505
    %v507 = vsel %vm504, %v506, %v502
    %v508 = vmul.f32 1.0, %v507
    %510 = vrot.lane.b32.xlu0 %v487, 64
    %v511 = vpop.permute.xlu0 %510
    %v513 = vmul.f32 %v508, %v511
    %515 = vrot.lane.b32.xlu0 %v513, 64
    %v516 = vpop.permute.xlu0 %515
    %v518 = vadd.f32 %v466, %v516
    %v519 = vtanh.pop %v518
    %v520 = vsub.f32 1.0, %v508
    %522 = vrot.lane.b32.xlu0 %v519, 96
    %v523 = vpop.permute.xlu0 %522
    %v525 = vmul.f32 %v520, %v523
    %v526 = vmul.f32 %v508, %v389
    %v527 = vadd.f32 %v525, %v526
    %529 = vrot.lane.b32.xlu0 %v464, 96
    %v530 = vpop.permute.xlu0 %529
    %s532 = scalar_lea.vmem %s6, 4
    %533 = vst.msk [vmem:[%s532] sm:$0x3] %vm256, %v530
    %535 = vrot.lane.b32.xlu0 %v527, 96
    %v536 = vpop.permute.xlu0 %535
    %s538 = scalar_lea.vmem %s90, 10
    %539 = vst.msk [vmem:[%s538] sm:$0x3] %vm256, %v536
    %s540 = scalar_lea.vmem %s0, 6
    %v541 = vld [vmem:[%s540] sm:$0x3]
    %v542 = vsel %vm116, %v530, 0
    %544 = vmatpush.msra.mxu0 0.0
    %545 = vmatpush.msra.mxu0 0.0
    %546 = vmatpush.msra.mxu0 0.0
    %547 = vmatpush.msra.mxu0 0.0
    %548 = vmatpush.msra.mxu0 0.0
    %549 = vmatpush.msra.mxu0 0.0
    %550 = vmatpush.msra.mxu0 0.0
    %551 = vmatpush.msra.mxu0 0.0
    %552 = vmatpush.msra.mxu0 0.0
    %553 = vmatpush.msra.mxu0 0.0
    %554 = vmatpush.msra.mxu0 0.0
    %555 = vmatpush.msra.mxu0 0.0
    %556 = vmatpush.msra.mxu0 %v105
    %557 = vmatpush.msra.mxu0 %v104
    %558 = vmatpush.msra.mxu0 %v103
    %559 = vmatpush.msra.mxu0 %v102
    %560 = vmatmul.f32.gmra.mxu0 %v542
    %v561 = vpop.f32.mrf.mxu0
    %v562 = vadd.f32 %v114, %v561
    %563 = vdwg.mxu0
    %v564 = vadd.f32 %v541, %v562
    %v565 = vxor.u32 %v564, 2147483648
    %v566 = vmul.f32 %v565, 1.442695
    %v567 = vpow.pop %v566
    %v568 = vadd.f32 %v567, 1.0
    %v569 = vrcp.pop %v568
    %v570 = vmul.f32 %v568, %v569
    %v571 = vsub.f32 1.0, %v570
    %v572 = vmul.f32 %v569, %v571
    %v573 = vadd.f32 %v569, %v572
    %vm574 = vweird.f32 %v568
    %vm575 = vweird.f32 %v569
    %vm576 = vmor %vm574, %vm575
    %v577 = vsel %vm576, %v569, %v573
    %v578 = vand.u32 2147483647, %v568
    %vm579 = vcmp.eq.f32.partialorder %v578, 8.507059e+37
    %v580 = vand.u32 %v568, 2147483648
    %v581 = vor.u32 1.1754944e-38, %v580
    %v582 = vsel %vm579, %v581, %v577
    %v583 = vmul.f32 1.0, %v582
    %585 = vrot.lane.b32.xlu0 %v562, 64
    %v586 = vpop.permute.xlu0 %585
    %v588 = vmul.f32 %v583, %v586
    %590 = vrot.lane.b32.xlu0 %v588, 64
    %v591 = vpop.permute.xlu0 %590
    %v593 = vadd.f32 %v541, %v591
    %v594 = vtanh.pop %v593
    %v595 = vsub.f32 1.0, %v583
    %597 = vrot.lane.b32.xlu0 %v594, 96
    %v598 = vpop.permute.xlu0 %597
    %v600 = vmul.f32 %v595, %v598
    %v601 = vmul.f32 %v583, %v464
    %v602 = vadd.f32 %v600, %v601
    %s603 = scalar_lea.vmem %s82, 8
    %v604 = vld [vmem:[%s603] sm:$0x3]
    %v605 = vsel %vm116, %v536, 0
    %607 = vmatpush.msra.mxu0 0.0
    %608 = vmatpush.msra.mxu0 0.0
    %609 = vmatpush.msra.mxu0 0.0
    %610 = vmatpush.msra.mxu0 0.0
    %611 = vmatpush.msra.mxu0 0.0
    %612 = vmatpush.msra.mxu0 0.0
    %613 = vmatpush.msra.mxu0 0.0
    %614 = vmatpush.msra.mxu0 0.0
    %615 = vmatpush.msra.mxu0 0.0
    %616 = vmatpush.msra.mxu0 0.0
    %617 = vmatpush.msra.mxu0 0.0
    %618 = vmatpush.msra.mxu0 0.0
    %619 = vmatpush.msra.mxu0 %v109
    %620 = vmatpush.msra.mxu0 %v108
    %621 = vmatpush.msra.mxu0 %v107
    %622 = vmatpush.msra.mxu0 %v106
    %623 = vmatmul.f32.gmra.mxu0 %v605
    %v624 = vpop.f32.mrf.mxu0
    %v625 = vadd.f32 %v185, %v624
    %626 = vdwg.mxu0
    %v627 = vadd.f32 %v604, %v625
    %v628 = vxor.u32 %v627, 2147483648
    %v629 = vmul.f32 %v628, 1.442695
    %v630 = vpow.pop %v629
    %v631 = vadd.f32 %v630, 1.0
    %v632 = vrcp.pop %v631
    %v633 = vmul.f32 %v631, %v632
    %v634 = vsub.f32 1.0, %v633
    %v635 = vmul.f32 %v632, %v634
    %v636 = vadd.f32 %v632, %v635
    %vm637 = vweird.f32 %v631
    %vm638 = vweird.f32 %v632
    %vm639 = vmor %vm637, %vm638
    %v640 = vsel %vm639, %v632, %v636
    %v641 = vand.u32 2147483647, %v631
    %vm642 = vcmp.eq.f32.partialorder %v641, 8.507059e+37
    %v643 = vand.u32 %v631, 2147483648
    %v644 = vor.u32 1.1754944e-38, %v643
    %v645 = vsel %vm642, %v644, %v640
    %v646 = vmul.f32 1.0, %v645
    %648 = vrot.lane.b32.xlu0 %v625, 64
    %v649 = vpop.permute.xlu0 %648
    %v651 = vmul.f32 %v646, %v649
    %653 = vrot.lane.b32.xlu0 %v651, 64
    %v654 = vpop.permute.xlu0 %653
    %v656 = vadd.f32 %v604, %v654
    %v657 = vtanh.pop %v656
    %v658 = vsub.f32 1.0, %v646
    %660 = vrot.lane.b32.xlu0 %v657, 96
    %v661 = vpop.permute.xlu0 %660
    %v663 = vmul.f32 %v658, %v661
    %v664 = vmul.f32 %v646, %v527
    %v665 = vadd.f32 %v663, %v664
    %667 = vrot.lane.b32.xlu0 %v602, 96
    %v668 = vpop.permute.xlu0 %667
    %s670 = scalar_lea.vmem %s6, 6
    %671 = vst.msk [vmem:[%s670] sm:$0x3] %vm256, %v668
    %673 = vrot.lane.b32.xlu0 %v665, 96
    %v674 = vpop.permute.xlu0 %673
    %s676 = scalar_lea.vmem %s90, 8
    %677 = vst.msk [vmem:[%s676] sm:$0x3] %vm256, %v674
    %s678 = scalar_lea.vmem %s0, 8
    %v679 = vld [vmem:[%s678] sm:$0x3]
    %v680 = vsel %vm116, %v668, 0
    %682 = vmatpush.msra.mxu0 0.0
    %683 = vmatpush.msra.mxu0 0.0
    %684 = vmatpush.msra.mxu0 0.0
    %685 = vmatpush.msra.mxu0 0.0
    %686 = vmatpush.msra.mxu0 0.0
    %687 = vmatpush.msra.mxu0 0.0
    %688 = vmatpush.msra.mxu0 0.0
    %689 = vmatpush.msra.mxu0 0.0
    %690 = vmatpush.msra.mxu0 0.0
    %691 = vmatpush.msra.mxu0 0.0
    %692 = vmatpush.msra.mxu0 0.0
    %693 = vmatpush.msra.mxu0 0.0
    %694 = vmatpush.msra.mxu0 %v105
    %695 = vmatpush.msra.mxu0 %v104
    %696 = vmatpush.msra.mxu0 %v103
    %697 = vmatpush.msra.mxu0 %v102
    %698 = vmatmul.f32.gmra.mxu0 %v680
    %v699 = vpop.f32.mrf.mxu0
    %v700 = vadd.f32 %v114, %v699
    %701 = vdwg.mxu0
    %v702 = vadd.f32 %v679, %v700
    %v703 = vxor.u32 %v702, 2147483648
    %v704 = vmul.f32 %v703, 1.442695
    %v705 = vpow.pop %v704
    %v706 = vadd.f32 %v705, 1.0
    %v707 = vrcp.pop %v706
    %v708 = vmul.f32 %v706, %v707
    %v709 = vsub.f32 1.0, %v708
    %v710 = vmul.f32 %v707, %v709
    %v711 = vadd.f32 %v707, %v710
    %vm712 = vweird.f32 %v706
    %vm713 = vweird.f32 %v707
    %vm714 = vmor %vm712, %vm713
    %v715 = vsel %vm714, %v707, %v711
    %v716 = vand.u32 2147483647, %v706
    %vm717 = vcmp.eq.f32.partialorder %v716, 8.507059e+37
    %v718 = vand.u32 %v706, 2147483648
    %v719 = vor.u32 1.1754944e-38, %v718
    %v720 = vsel %vm717, %v719, %v715
    %v721 = vmul.f32 1.0, %v720
    %723 = vrot.lane.b32.xlu0 %v700, 64
    %v724 = vpop.permute.xlu0 %723
    %v726 = vmul.f32 %v721, %v724
    %728 = vrot.lane.b32.xlu0 %v726, 64
    %v729 = vpop.permute.xlu0 %728
    %v731 = vadd.f32 %v679, %v729
    %v732 = vtanh.pop %v731
    %v733 = vsub.f32 1.0, %v721
    %735 = vrot.lane.b32.xlu0 %v732, 96
    %v736 = vpop.permute.xlu0 %735
    %v738 = vmul.f32 %v733, %v736
    %v739 = vmul.f32 %v721, %v602
    %v740 = vadd.f32 %v738, %v739
    %s741 = scalar_lea.vmem %s82, 6
    %v742 = vld [vmem:[%s741] sm:$0x3]
    %v743 = vsel %vm116, %v674, 0
    %745 = vmatpush.msra.mxu0 0.0
    %746 = vmatpush.msra.mxu0 0.0
    %747 = vmatpush.msra.mxu0 0.0
    %748 = vmatpush.msra.mxu0 0.0
    %749 = vmatpush.msra.mxu0 0.0
    %750 = vmatpush.msra.mxu0 0.0
    %751 = vmatpush.msra.mxu0 0.0
    %752 = vmatpush.msra.mxu0 0.0
    %753 = vmatpush.msra.mxu0 0.0
    %754 = vmatpush.msra.mxu0 0.0
    %755 = vmatpush.msra.mxu0 0.0
    %756 = vmatpush.msra.mxu0 0.0
    %757 = vmatpush.msra.mxu0 %v109
    %758 = vmatpush.msra.mxu0 %v108
    %759 = vmatpush.msra.mxu0 %v107
    %760 = vmatpush.msra.mxu0 %v106
    %761 = vmatmul.f32.gmra.mxu0 %v743
    %v762 = vpop.f32.mrf.mxu0
    %v763 = vadd.f32 %v185, %v762
    %764 = vdwg.mxu0
    %v765 = vadd.f32 %v742, %v763
    %v766 = vxor.u32 %v765, 2147483648
    %v767 = vmul.f32 %v766, 1.442695
    %v768 = vpow.pop %v767
    %v769 = vadd.f32 %v768, 1.0
    %v770 = vrcp.pop %v769
    %v771 = vmul.f32 %v769, %v770
    %v772 = vsub.f32 1.0, %v771
    %v773 = vmul.f32 %v770, %v772
    %v774 = vadd.f32 %v770, %v773
    %vm775 = vweird.f32 %v769
    %vm776 = vweird.f32 %v770
    %vm777 = vmor %vm775, %vm776
    %v778 = vsel %vm777, %v770, %v774
    %v779 = vand.u32 2147483647, %v769
    %vm780 = vcmp.eq.f32.partialorder %v779, 8.507059e+37
    %v781 = vand.u32 %v769, 2147483648
    %v782 = vor.u32 1.1754944e-38, %v781
    %v783 = vsel %vm780, %v782, %v778
    %v784 = vmul.f32 1.0, %v783
    %786 = vrot.lane.b32.xlu0 %v763, 64
    %v787 = vpop.permute.xlu0 %786
    %v789 = vmul.f32 %v784, %v787
    %791 = vrot.lane.b32.xlu0 %v789, 64
    %v792 = vpop.permute.xlu0 %791
    %v794 = vadd.f32 %v742, %v792
    %v795 = vtanh.pop %v794
    %v796 = vsub.f32 1.0, %v784
    %798 = vrot.lane.b32.xlu0 %v795, 96
    %v799 = vpop.permute.xlu0 %798
    %v801 = vmul.f32 %v796, %v799
    %v802 = vmul.f32 %v784, %v665
    %v803 = vadd.f32 %v801, %v802
    %805 = vrot.lane.b32.xlu0 %v740, 96
    %v806 = vpop.permute.xlu0 %805
    %s808 = scalar_lea.vmem %s6, 8
    %809 = vst.msk [vmem:[%s808] sm:$0x3] %vm256, %v806
    %811 = vrot.lane.b32.xlu0 %v803, 96
    %v812 = vpop.permute.xlu0 %811
    %s814 = scalar_lea.vmem %s90, 6
    %815 = vst.msk [vmem:[%s814] sm:$0x3] %vm256, %v812
    %s816 = scalar_lea.vmem %s0, 10
    %v817 = vld [vmem:[%s816] sm:$0x3]
    %v818 = vsel %vm116, %v806, 0
    %820 = vmatpush.msra.mxu0 0.0
    %821 = vmatpush.msra.mxu0 0.0
    %822 = vmatpush.msra.mxu0 0.0
    %823 = vmatpush.msra.mxu0 0.0
    %824 = vmatpush.msra.mxu0 0.0
    %825 = vmatpush.msra.mxu0 0.0
    %826 = vmatpush.msra.mxu0 0.0
    %827 = vmatpush.msra.mxu0 0.0
    %828 = vmatpush.msra.mxu0 0.0
    %829 = vmatpush.msra.mxu0 0.0
    %830 = vmatpush.msra.mxu0 0.0
    %831 = vmatpush.msra.mxu0 0.0
    %832 = vmatpush.msra.mxu0 %v105
    %833 = vmatpush.msra.mxu0 %v104
    %834 = vmatpush.msra.mxu0 %v103
    %835 = vmatpush.msra.mxu0 %v102
    %836 = vmatmul.f32.gmra.mxu0 %v818
    %v837 = vpop.f32.mrf.mxu0
    %v838 = vadd.f32 %v114, %v837
    %839 = vdwg.mxu0
    %v840 = vadd.f32 %v817, %v838
    %v841 = vxor.u32 %v840, 2147483648
    %v842 = vmul.f32 %v841, 1.442695
    %v843 = vpow.pop %v842
    %v844 = vadd.f32 %v843, 1.0
    %v845 = vrcp.pop %v844
    %v846 = vmul.f32 %v844, %v845
    %v847 = vsub.f32 1.0, %v846
    %v848 = vmul.f32 %v845, %v847
    %v849 = vadd.f32 %v845, %v848
    %vm850 = vweird.f32 %v844
    %vm851 = vweird.f32 %v845
    %vm852 = vmor %vm850, %vm851
    %v853 = vsel %vm852, %v845, %v849
    %v854 = vand.u32 2147483647, %v844
    %vm855 = vcmp.eq.f32.partialorder %v854, 8.507059e+37
    %v856 = vand.u32 %v844, 2147483648
    %v857 = vor.u32 1.1754944e-38, %v856
    %v858 = vsel %vm855, %v857, %v853
    %v859 = vmul.f32 1.0, %v858
    %861 = vrot.lane.b32.xlu0 %v838, 64
    %v862 = vpop.permute.xlu0 %861
    %v864 = vmul.f32 %v859, %v862
    %866 = vrot.lane.b32.xlu0 %v864, 64
    %v867 = vpop.permute.xlu0 %866
    %v869 = vadd.f32 %v817, %v867
    %v870 = vtanh.pop %v869
    %v871 = vsub.f32 1.0, %v859
    %873 = vrot.lane.b32.xlu0 %v870, 96
    %v874 = vpop.permute.xlu0 %873
    %v876 = vmul.f32 %v871, %v874
    %v877 = vmul.f32 %v859, %v740
    %v878 = vadd.f32 %v876, %v877
    %s879 = scalar_lea.vmem %s82, 4
    %v880 = vld [vmem:[%s879] sm:$0x3]
    %v881 = vsel %vm116, %v812, 0
    %883 = vmatpush.msra.mxu0 0.0
    %884 = vmatpush.msra.mxu0 0.0
    %885 = vmatpush.msra.mxu0 0.0
    %886 = vmatpush.msra.mxu0 0.0
    %887 = vmatpush.msra.mxu0 0.0
    %888 = vmatpush.msra.mxu0 0.0
    %889 = vmatpush.msra.mxu0 0.0
    %890 = vmatpush.msra.mxu0 0.0
    %891 = vmatpush.msra.mxu0 0.0
    %892 = vmatpush.msra.mxu0 0.0
    %893 = vmatpush.msra.mxu0 0.0
    %894 = vmatpush.msra.mxu0 0.0
    %895 = vmatpush.msra.mxu0 %v109
    %896 = vmatpush.msra.mxu0 %v108
    %897 = vmatpush.msra.mxu0 %v107
    %898 = vmatpush.msra.mxu0 %v106
    %899 = vmatmul.f32.gmra.mxu0 %v881
    %v900 = vpop.f32.mrf.mxu0
    %v901 = vadd.f32 %v185, %v900
    %902 = vdwg.mxu0
    %v903 = vadd.f32 %v880, %v901
    %v904 = vxor.u32 %v903, 2147483648
    %v905 = vmul.f32 %v904, 1.442695
    %v906 = vpow.pop %v905
    %v907 = vadd.f32 %v906, 1.0
    %v908 = vrcp.pop %v907
    %v909 = vmul.f32 %v907, %v908
    %v910 = vsub.f32 1.0, %v909
    %v911 = vmul.f32 %v908, %v910
    %v912 = vadd.f32 %v908, %v911
    %vm913 = vweird.f32 %v907
    %vm914 = vweird.f32 %v908
    %vm915 = vmor %vm913, %vm914
    %v916 = vsel %vm915, %v908, %v912
    %v917 = vand.u32 2147483647, %v907
    %vm918 = vcmp.eq.f32.partialorder %v917, 8.507059e+37
    %v919 = vand.u32 %v907, 2147483648
    %v920 = vor.u32 1.1754944e-38, %v919
    %v921 = vsel %vm918, %v920, %v916
    %v922 = vmul.f32 1.0, %v921
    %924 = vrot.lane.b32.xlu0 %v901, 64
    %v925 = vpop.permute.xlu0 %924
    %v927 = vmul.f32 %v922, %v925
    %929 = vrot.lane.b32.xlu0 %v927, 64
    %v930 = vpop.permute.xlu0 %929
    %v932 = vadd.f32 %v880, %v930
    %v933 = vtanh.pop %v932
    %v934 = vsub.f32 1.0, %v922
    %936 = vrot.lane.b32.xlu0 %v933, 96
    %v937 = vpop.permute.xlu0 %936
    %v939 = vmul.f32 %v934, %v937
    %v940 = vmul.f32 %v922, %v803
    %v941 = vadd.f32 %v939, %v940
    %943 = vrot.lane.b32.xlu0 %v878, 96
    %v944 = vpop.permute.xlu0 %943
    %s946 = scalar_lea.vmem %s6, 10
    %947 = vst.msk [vmem:[%s946] sm:$0x3] %vm256, %v944
    %949 = vrot.lane.b32.xlu0 %v941, 96
    %v950 = vpop.permute.xlu0 %949
    %s952 = scalar_lea.vmem %s90, 4
    %953 = vst.msk [vmem:[%s952] sm:$0x3] %vm256, %v950
    %s954 = scalar_lea.vmem %s0, 12
    %v955 = vld [vmem:[%s954] sm:$0x3]
    %v956 = vsel %vm116, %v944, 0
    %958 = vmatpush.msra.mxu0 0.0
    %959 = vmatpush.msra.mxu0 0.0
    %960 = vmatpush.msra.mxu0 0.0
    %961 = vmatpush.msra.mxu0 0.0
    %962 = vmatpush.msra.mxu0 0.0
    %963 = vmatpush.msra.mxu0 0.0
    %964 = vmatpush.msra.mxu0 0.0
    %965 = vmatpush.msra.mxu0 0.0
    %966 = vmatpush.msra.mxu0 0.0
    %967 = vmatpush.msra.mxu0 0.0
    %968 = vmatpush.msra.mxu0 0.0
    %969 = vmatpush.msra.mxu0 0.0
    %970 = vmatpush.msra.mxu0 %v105
    %971 = vmatpush.msra.mxu0 %v104
    %972 = vmatpush.msra.mxu0 %v103
    %973 = vmatpush.msra.mxu0 %v102
    %974 = vmatmul.f32.gmra.mxu0 %v956
    %v975 = vpop.f32.mrf.mxu0
    %v976 = vadd.f32 %v114, %v975
    %977 = vdwg.mxu0
    %v978 = vadd.f32 %v955, %v976
    %v979 = vxor.u32 %v978, 2147483648
    %v980 = vmul.f32 %v979, 1.442695
    %v981 = vpow.pop %v980
    %v982 = vadd.f32 %v981, 1.0
    %v983 = vrcp.pop %v982
    %v984 = vmul.f32 %v982, %v983
    %v985 = vsub.f32 1.0, %v984
    %v986 = vmul.f32 %v983, %v985
    %v987 = vadd.f32 %v983, %v986
    %vm988 = vweird.f32 %v982
    %vm989 = vweird.f32 %v983
    %vm990 = vmor %vm988, %vm989
    %v991 = vsel %vm990, %v983, %v987
    %v992 = vand.u32 2147483647, %v982
    %vm993 = vcmp.eq.f32.partialorder %v992, 8.507059e+37
    %v994 = vand.u32 %v982, 2147483648
    %v995 = vor.u32 1.1754944e-38, %v994
    %v996 = vsel %vm993, %v995, %v991
    %v997 = vmul.f32 1.0, %v996
    %999 = vrot.lane.b32.xlu0 %v976, 64
    %v1000 = vpop.permute.xlu0 %999
    %v1002 = vmul.f32 %v997, %v1000
    %1004 = vrot.lane.b32.xlu0 %v1002, 64
    %v1005 = vpop.permute.xlu0 %1004
    %v1007 = vadd.f32 %v955, %v1005
    %v1008 = vtanh.pop %v1007
    %v1009 = vsub.f32 1.0, %v997
    %1011 = vrot.lane.b32.xlu0 %v1008, 96
    %v1012 = vpop.permute.xlu0 %1011
    %v1014 = vmul.f32 %v1009, %v1012
    %v1015 = vmul.f32 %v997, %v878
    %v1016 = vadd.f32 %v1014, %v1015
    %s1017 = scalar_lea.vmem %s82, 2
    %v1018 = vld [vmem:[%s1017] sm:$0x3]
    %v1019 = vsel %vm116, %v950, 0
    %1021 = vmatpush.msra.mxu0 0.0
    %1022 = vmatpush.msra.mxu0 0.0
    %1023 = vmatpush.msra.mxu0 0.0
    %1024 = vmatpush.msra.mxu0 0.0
    %1025 = vmatpush.msra.mxu0 0.0
    %1026 = vmatpush.msra.mxu0 0.0
    %1027 = vmatpush.msra.mxu0 0.0
    %1028 = vmatpush.msra.mxu0 0.0
    %1029 = vmatpush.msra.mxu0 0.0
    %1030 = vmatpush.msra.mxu0 0.0
    %1031 = vmatpush.msra.mxu0 0.0
    %1032 = vmatpush.msra.mxu0 0.0
    %1033 = vmatpush.msra.mxu0 %v109
    %1034 = vmatpush.msra.mxu0 %v108
    %1035 = vmatpush.msra.mxu0 %v107
    %1036 = vmatpush.msra.mxu0 %v106
    %1037 = vmatmul.f32.gmra.mxu0 %v1019
    %v1038 = vpop.f32.mrf.mxu0
    %v1039 = vadd.f32 %v185, %v1038
    %1040 = vdwg.mxu0
    %v1041 = vadd.f32 %v1018, %v1039
    %v1042 = vxor.u32 %v1041, 2147483648
    %v1043 = vmul.f32 %v1042, 1.442695
    %v1044 = vpow.pop %v1043
    %v1045 = vadd.f32 %v1044, 1.0
    %v1046 = vrcp.pop %v1045
    %v1047 = vmul.f32 %v1045, %v1046
    %v1048 = vsub.f32 1.0, %v1047
    %v1049 = vmul.f32 %v1046, %v1048
    %v1050 = vadd.f32 %v1046, %v1049
    %vm1051 = vweird.f32 %v1045
    %vm1052 = vweird.f32 %v1046
    %vm1053 = vmor %vm1051, %vm1052
    %v1054 = vsel %vm1053, %v1046, %v1050
    %v1055 = vand.u32 2147483647, %v1045
    %vm1056 = vcmp.eq.f32.partialorder %v1055, 8.507059e+37
    %v1057 = vand.u32 %v1045, 2147483648
    %v1058 = vor.u32 1.1754944e-38, %v1057
    %v1059 = vsel %vm1056, %v1058, %v1054
    %v1060 = vmul.f32 1.0, %v1059
    %1062 = vrot.lane.b32.xlu0 %v1039, 64
    %v1063 = vpop.permute.xlu0 %1062
    %v1065 = vmul.f32 %v1060, %v1063
    %1067 = vrot.lane.b32.xlu0 %v1065, 64
    %v1068 = vpop.permute.xlu0 %1067
    %v1070 = vadd.f32 %v1018, %v1068
    %v1071 = vtanh.pop %v1070
    %v1072 = vsub.f32 1.0, %v1060
    %1074 = vrot.lane.b32.xlu0 %v1071, 96
    %v1075 = vpop.permute.xlu0 %1074
    %v1077 = vmul.f32 %v1072, %v1075
    %v1078 = vmul.f32 %v1060, %v941
    %v1079 = vadd.f32 %v1077, %v1078
    %1081 = vrot.lane.b32.xlu0 %v1016, 96
    %v1082 = vpop.permute.xlu0 %1081
    %s1084 = scalar_lea.vmem %s6, 12
    %1085 = vst.msk [vmem:[%s1084] sm:$0x3] %vm256, %v1082
    %1087 = vrot.lane.b32.xlu0 %v1079, 96
    %v1088 = vpop.permute.xlu0 %1087
    %s1090 = scalar_lea.vmem %s90, 2
    %1091 = vst.msk [vmem:[%s1090] sm:$0x3] %vm256, %v1088
    %s1092 = scalar_lea.vmem %s0, 14
    %v1093 = vld [vmem:[%s1092] sm:$0x3]
    %v1094 = vsel %vm116, %v1082, 0
    %1096 = vmatpush.msra.mxu0 0.0
    %1097 = vmatpush.msra.mxu0 0.0
    %1098 = vmatpush.msra.mxu0 0.0
    %1099 = vmatpush.msra.mxu0 0.0
    %1100 = vmatpush.msra.mxu0 0.0
    %1101 = vmatpush.msra.mxu0 0.0
    %1102 = vmatpush.msra.mxu0 0.0
    %1103 = vmatpush.msra.mxu0 0.0
    %1104 = vmatpush.msra.mxu0 0.0
    %1105 = vmatpush.msra.mxu0 0.0
    %1106 = vmatpush.msra.mxu0 0.0
    %1107 = vmatpush.msra.mxu0 0.0
    %1108 = vmatpush.msra.mxu0 %v105
    %1109 = vmatpush.msra.mxu0 %v104
    %1110 = vmatpush.msra.mxu0 %v103
    %1111 = vmatpush.msra.mxu0 %v102
    %1112 = vmatmul.f32.gmra.mxu0 %v1094
    %v1113 = vpop.f32.mrf.mxu0
    %v1114 = vadd.f32 %v114, %v1113
    %1115 = vdwg.mxu0
    %v1116 = vadd.f32 %v1093, %v1114
    %v1117 = vxor.u32 %v1116, 2147483648
    %v1118 = vmul.f32 %v1117, 1.442695
    %v1119 = vpow.pop %v1118
    %v1120 = vadd.f32 %v1119, 1.0
    %v1121 = vrcp.pop %v1120
    %v1122 = vmul.f32 %v1120, %v1121
    %v1123 = vsub.f32 1.0, %v1122
    %v1124 = vmul.f32 %v1121, %v1123
    %v1125 = vadd.f32 %v1121, %v1124
    %vm1126 = vweird.f32 %v1120
    %vm1127 = vweird.f32 %v1121
    %vm1128 = vmor %vm1126, %vm1127
    %v1129 = vsel %vm1128, %v1121, %v1125
    %v1130 = vand.u32 2147483647, %v1120
    %vm1131 = vcmp.eq.f32.partialorder %v1130, 8.507059e+37
    %v1132 = vand.u32 %v1120, 2147483648
    %v1133 = vor.u32 1.1754944e-38, %v1132
    %v1134 = vsel %vm1131, %v1133, %v1129
    %v1135 = vmul.f32 1.0, %v1134
    %1137 = vrot.lane.b32.xlu0 %v1114, 64
    %v1138 = vpop.permute.xlu0 %1137
    %v1140 = vmul.f32 %v1135, %v1138
    %1142 = vrot.lane.b32.xlu0 %v1140, 64
    %v1143 = vpop.permute.xlu0 %1142
    %v1145 = vadd.f32 %v1093, %v1143
    %v1146 = vtanh.pop %v1145
    %v1147 = vsub.f32 1.0, %v1135
    %1149 = vrot.lane.b32.xlu0 %v1146, 96
    %v1150 = vpop.permute.xlu0 %1149
    %v1152 = vmul.f32 %v1147, %v1150
    %v1153 = vmul.f32 %v1135, %v1016
    %v1154 = vadd.f32 %v1152, %v1153
    %v1155 = vld [vmem:[%s82] sm:$0x3]
    %v1156 = vsel %vm116, %v1088, 0
    %1158 = vmatpush.msra.mxu0 0.0
    %1159 = vmatpush.msra.mxu0 0.0
    %1160 = vmatpush.msra.mxu0 0.0
    %1161 = vmatpush.msra.mxu0 0.0
    %1162 = vmatpush.msra.mxu0 0.0
    %1163 = vmatpush.msra.mxu0 0.0
    %1164 = vmatpush.msra.mxu0 0.0
    %1165 = vmatpush.msra.mxu0 0.0
    %1166 = vmatpush.msra.mxu0 0.0
    %1167 = vmatpush.msra.mxu0 0.0
    %1168 = vmatpush.msra.mxu0 0.0
    %1169 = vmatpush.msra.mxu0 0.0
    %1170 = vmatpush.msra.mxu0 %v109
    %1171 = vmatpush.msra.mxu0 %v108
    %1172 = vmatpush.msra.mxu0 %v107
    %1173 = vmatpush.msra.mxu0 %v106
    %1174 = vmatmul.f32.gmra.mxu0 %v1156
    %v1175 = vpop.f32.mrf.mxu0
    %v1176 = vadd.f32 %v185, %v1175
    %1177 = vdwg.mxu0
    %v1178 = vadd.f32 %v1155, %v1176
    %v1179 = vxor.u32 %v1178, 2147483648
    %v1180 = vmul.f32 %v1179, 1.442695
    %v1181 = vpow.pop %v1180
    %v1182 = vadd.f32 %v1181, 1.0
    %v1183 = vrcp.pop %v1182
    %v1184 = vmul.f32 %v1182, %v1183
    %v1185 = vsub.f32 1.0, %v1184
    %v1186 = vmul.f32 %v1183, %v1185
    %v1187 = vadd.f32 %v1183, %v1186
    %vm1188 = vweird.f32 %v1182
    %vm1189 = vweird.f32 %v1183
    %vm1190 = vmor %vm1188, %vm1189
    %v1191 = vsel %vm1190, %v1183, %v1187
    %v1192 = vand.u32 2147483647, %v1182
    %vm1193 = vcmp.eq.f32.partialorder %v1192, 8.507059e+37
    %v1194 = vand.u32 %v1182, 2147483648
    %v1195 = vor.u32 1.1754944e-38, %v1194
    %v1196 = vsel %vm1193, %v1195, %v1191
    %v1197 = vmul.f32 1.0, %v1196
    %1199 = vrot.lane.b32.xlu0 %v1176, 64
    %v1200 = vpop.permute.xlu0 %1199
    %v1202 = vmul.f32 %v1197, %v1200
    %1204 = vrot.lane.b32.xlu0 %v1202, 64
    %v1205 = vpop.permute.xlu0 %1204
    %v1207 = vadd.f32 %v1155, %v1205
    %v1208 = vtanh.pop %v1207
    %v1209 = vsub.f32 1.0, %v1197
    %1211 = vrot.lane.b32.xlu0 %v1208, 96
    %v1212 = vpop.permute.xlu0 %1211
    %v1214 = vmul.f32 %v1209, %v1212
    %v1215 = vmul.f32 %v1197, %v1079
    %v1216 = vadd.f32 %v1214, %v1215
    %1218 = vrot.lane.b32.xlu0 %v1154, 96
    %v1219 = vpop.permute.xlu0 %1218
    %s1221 = scalar_lea.vmem %s6, 14
    %1222 = vst.msk [vmem:[%s1221] sm:$0x3] %vm256, %v1219
    %1224 = vrot.lane.b32.xlu0 %v1216, 96
    %v1225 = vpop.permute.xlu0 %1224
    %1227 = vst.msk [vmem:[%s90] sm:$0x3] %vm256, %v1225
    %1228 = vst.msk [vmem:[#allocation2] sm:$0x3] %vm256, %v1219
    %1229 = vst.msk [vmem:[#allocation3] sm:$0x3] %vm256, %v1225
    %s1230 = ssub.s32 0, 0
    %s1231 = smul.u32 8, %s1230
    %p1232 = scmp.lt.s32.totalorder %s1231, 7
    %s1233 = scalar_select %p1232, %s1231, 7
    %s1234 = smul.addr %s1233, 2
    %s1235 = scalar_lea.vmem %s7, %s1234
    // Predicated region
    $region38: #{number_enc_forward.5} parent=1 // pred_check
      _
    $region39: #{number_enc_forward.5} parent=1 // pred_check_branch
      %1237 = sbr.rel (0) target = $region41
    $region40: #{number_enc_forward.5} parent=1 // pred_region
      _
    $region41: #{number_enc_forward.5} parent=1 // pred_fallthru
      _
    // Predicated region
    $region42: #{number_enc_forward.5} parent=1 // pred_check
      _
    $region43: #{number_enc_forward.5} parent=1 // pred_check_branch
      %1239 = sbr.rel (0) target = $region45
    $region44: #{number_enc_forward.5} parent=1 // pred_region
      %s1240 = ssub.s32 0, 0
      %s1241 = smul.u32 8, %s1240
    $region45: #{number_enc_forward.5} parent=1 // pred_fallthru
      _
    // Predicated region
    $region46: #{number_enc_forward.5} parent=1 // pred_check
      _
    $region47: #{number_enc_forward.5} parent=1 // pred_check_branch
      %1243 = sbr.rel (0) target = $region49
    $region48: #{number_enc_forward.5} parent=1 // pred_region
      _
    $region49: #{number_enc_forward.5} parent=1 // pred_fallthru
      _
    // Predicated region
    $region50: #{number_enc_forward.5} parent=1 // pred_check
      _
    $region51: #{number_enc_forward.5} parent=1 // pred_check_branch
      %1245 = sbr.rel (0) target = $region53
    $region52: #{number_enc_forward.5} parent=1 // pred_region
      %s1246 = ssub.s32 0, 0
      %s1247 = smul.u32 8, %s1246
      %p1248 = scmp.lt.s32.totalorder %s1247, 7
      %s1249 = scalar_select %p1248, %s1247, 7
      %s1250 = smul.addr %s1249, 2
      %s1251 = scalar_lea.vmem %s7, %s1250
    $region53: #{number_enc_forward.5} parent=1 // pred_fallthru
      _
    %1252 = vsyncpa [#allocation5], 1
    %1253 = vsyncpa [#allocation7], 1

</llo_original>
